<compile_context>
chip_gen: v6e
topology: v6e:2x2x1
jax: 0.10.0
libtpu: 0.0.40
codegen_flags: <defaults>
</compile_context>

<pallas_src>
import functools

import jax
import jax.numpy as jnp
from jax.experimental import pallas as pl
from jax.experimental.pallas import tpu as pltpu


def _round_up(n, m):
    return -(-n // m) * m


def _cdiv(a, b):
    return -(-a // b)


def _detect_num_tensorcores():
    """Best-effort TensorCore count for device 0 (dual-TC v7x -> 2).

    Falls back to 1 (correct for single-TC v5e/v6e); only affects tiling, not
    correctness."""
    try:
        dev = jax.devices()[0]
    except Exception:
        return 1
    for attr in ("num_cores", "core_count"):
        v = getattr(dev, attr, None)
        if isinstance(v, int) and 1 <= v <= 8:
            return v
    return 1


def _choose_tile_b(B, din_p, H, out_p, num_tc):
    """Largest batch tile (multiple of 16 for bf16 sublane packing) such that
    (a) the grid length is (a multiple of) num_tc, so a dual-TC chip gets an
        even split under dimension_semantics=("parallel",), and
    (b) the double-buffered x/out tiles plus the f32 [tile_b, 4H] intermediate
        fit a conservative VMEM budget (leaves room for the resident weights
        even against v7x's 64 MiB per-core VMEM)."""
    per_row_bytes = (2 * din_p * 2     # x tile (bf16, double-buffered)
                     + 2 * out_p * 2   # out tile (bf16, double-buffered)
                     + 4 * H * 4       # fc1 intermediate (f32)
                     + 2 * H * 4)      # h + residual (f32)
    budget = 24 << 20
    max_rows = max(16, (budget // per_row_bytes) // 16 * 16)
    tile = _round_up(_cdiv(_round_up(B, 16), num_tc), 16)
    while tile > max_rows:
        tile = _round_up(_cdiv(tile, 2), 16)
    return int(tile)


def _mlp_resnet_kernel(x_ref, fcw_ref, fcb_ref,
                       w1_ref, b1_ref, w2_ref, b2_ref,
                       outw_ref, outb_ref, o_ref):
    """Fused forward for one batch tile.

    Matmuls run on the MXU with bf16 operands / f32 accumulation; bias add,
    relu and residual add run on the VPU in f32.
    """
    # Input projection: [tb, Dp] @ [Dp, H] + [1, H]  (x_ref already bf16)
    h = jnp.dot(x_ref[...], fcw_ref[...],
                preferred_element_type=jnp.float32) + fcb_ref[...]

    num_blocks = w1_ref.shape[0]  # static python int -> unrolled loop
    # NOTE: python unroll is fine for small num_blocks; for many blocks move
    # the block index to an "arbitrary" grid axis with streamed weights
    # (see TODO at top) to bound vreg live ranges and VMEM residency.
    for blk in range(num_blocks):
        residual = h
        # fc1: [tb, H] @ [H, 4H]
        t = jnp.dot(h.astype(jnp.bfloat16), w1_ref[blk],
                    preferred_element_type=jnp.float32) + b1_ref[blk]
        t = jnp.maximum(t, 0.0)                      # activation (relu)
        # fc2: [tb, 4H] @ [4H, H]
        t = jnp.dot(t.astype(jnp.bfloat16), w2_ref[blk],
                    preferred_element_type=jnp.float32) + b2_ref[blk]
        # residual.shape == t.shape always (invariant asserted at pack time),
        # so the block's `residual` Linear is never applied (matches PyTorch).
        h = residual + t

    h = jnp.maximum(h, 0.0)                          # final activation before out_fc
    # Output projection: [tb, H] @ [H, out_p]  (out_p lane-dense, padded)
    o_ref[...] = (jnp.dot(h.astype(jnp.bfloat16), outw_ref[...],
                          preferred_element_type=jnp.float32)
                  + outb_ref[...]).astype(o_ref.dtype)


def pack_mlp_resnet_params(fc_w, fc_b, w1, b1, w2, b2, out_w, out_b):
    """One-time weight packing (do NOT call per forward pass).

    Pads the input/output feature dims to multiples of 128 (MXU-friendly K,
    lane-dense output), casts weights to bf16 (MXU operands) and biases to
    f32.  Returns (params_dict, meta_dict).
    """
    din, H = fc_w.shape
    nb, H_in, H4 = w1.shape
    out_dim = out_w.shape[1]
    assert H_in == H and H4 == 4 * H
    assert w2.shape == (nb, H4, H), "block fc2 must map 4H -> H"
    # Invariant that justifies skipping each block's `residual` Linear: block
    # input width == block output width == hidden_dim.  If this ever changes,
    # the kernel must add the residual projection.
    assert w1.shape[1] == w2.shape[2] == H, "block in/out widths must equal hidden_dim"
    assert out_w.shape[0] == H

    din_p = _round_up(din, 128)
    out_p = _round_up(out_dim, 128)
    bf16 = jnp.bfloat16

    params = dict(
        fc_w=jnp.pad(fc_w, ((0, din_p - din), (0, 0))).astype(bf16),      # [Dp, H]
        fc_b=fc_b.reshape(1, H).astype(jnp.float32),                       # [1, H]
        w1=w1.astype(bf16),                                                # [nb, H, 4H]
        b1=b1.reshape(nb, 1, H4).astype(jnp.float32),                      # [nb, 1, 4H]
        w2=w2.astype(bf16),                                                # [nb, 4H, H]
        b2=b2.reshape(nb, 1, H).astype(jnp.float32),                       # [nb, 1, H]
        out_w=jnp.pad(out_w, ((0, 0), (0, out_p - out_dim))).astype(bf16), # [H, Op]
        out_b=jnp.pad(out_b.reshape(1, out_dim),
                      ((0, 0), (0, out_p - out_dim))).astype(jnp.float32), # [1, Op]
    )
    meta = dict(din=din, hidden_dim=H, out_dim=out_dim, num_blocks=nb)
    return params, meta


@functools.partial(jax.jit, static_argnames=("out_dim", "num_tc", "tile_b"))
def mlp_resnet_forward(x, params, *, out_dim, num_tc=1, tile_b=None):
    """Per-call forward.  `params` must come from pack_mlp_resnet_params."""
    fc_w, fc_b = params["fc_w"], params["fc_b"]
    w1, b1, w2, b2 = params["w1"], params["b1"], params["w2"], params["b2"]
    out_w, out_b = params["out_w"], params["out_b"]

    B, din = x.shape
    din_p, H = fc_w.shape
    out_p = out_w.shape[1]
    nb = w1.shape[0]
    H4 = 4 * H
    assert din <= din_p and out_dim <= out_p

    if tile_b is None:
        tile_b = _choose_tile_b(B, din_p, H, out_p, num_tc)
    assert tile_b % 16 == 0, "tile_b must be a multiple of 16 for bf16 sublane tiling"

    B_p = _round_up(B, tile_b)
    grid = (B_p // tile_b,)

    # Only per-call activation prep stays in the hot path (weights are packed
    # once, outside).  Zero-padded rows/cols are benign: padded K rows of fc_w
    # are zero, padded batch rows are sliced off, padded out cols are exact 0.
    x_p = jnp.pad(x, ((0, B_p - B), (0, din_p - din))).astype(jnp.bfloat16)

    full = lambda shape: pl.BlockSpec(shape, lambda i: (0,) * len(shape))

    # --- VMEM budget: actual resident footprint + headroom (no floor) -------
    const_bytes = sum(int(v.size) * v.dtype.itemsize
                      for v in (fc_w, fc_b, w1, b1, w2, b2, out_w, out_b))
    tile_bytes = tile_b * (din_p * 2       # x tile (bf16)
                           + out_p * 2     # out tile (bf16)
                           + H4 * 4        # fc1 intermediate (f32)
                           + 2 * H * 4)    # h + residual (f32)
    # Constant-index weights and the x/out tiles are double-buffered by the
    # default BlockSpec pipelining (see TODO re: Buffered(1) for big configs).
    vmem_limit = int(min(100 * 1024 * 1024,
                         2 * const_bytes + 2 * tile_bytes + (8 << 20)))

    # --- advisory cost estimate for the XLA scheduler ------------------------
    flops = 2 * B_p * (din_p * H + nb * (H * H4 + H4 * H) + H * out_p)
    bytes_accessed = x_p.size * 2 + const_bytes + B_p * out_p * 2
    cost = pl.CostEstimate(flops=flops, transcendentals=0,
                           bytes_accessed=bytes_accessed)

    out_padded = pl.pallas_call(
        _mlp_resnet_kernel,
        out_shape=jax.ShapeDtypeStruct((B_p, out_p), jnp.bfloat16),
        grid_spec=pltpu.PrefetchScalarGridSpec(
            num_scalar_prefetch=0,
            grid=grid,
            in_specs=[
                pl.BlockSpec((tile_b, din_p), lambda i: (i, 0)),  # x: tiled over batch
                full((din_p, H)),                                 # fc weight   (bf16)
                full((1, H)),                                     # fc bias     (f32)
                full((nb, H, H4)),                                # block fc1 weights
                full((nb, 1, H4)),                                # block fc1 biases
                full((nb, H4, H)),                                # block fc2 weights
                full((nb, 1, H)),                                 # block fc2 biases
                full((H, out_p)),                                 # out_fc weight
                full((1, out_p)),                                 # out_fc bias
            ],
            out_specs=pl.BlockSpec((tile_b, out_p), lambda i: (i, 0)),
        ),
        compiler_params=pltpu.CompilerParams(
            dimension_semantics=("parallel",),
            vmem_limit_bytes=vmem_limit),
        cost_estimate=cost,
    )(x_p, fc_w, fc_b, w1, b1, w2, b2, out_w, out_b)

    return out_padded[:B, :out_dim].astype(jnp.float32)


def _init_linear(key, fan_in, fan_out):
    """PyTorch nn.Linear-style uniform(-1/sqrt(fan_in), 1/sqrt(fan_in)) init,
    stored as [in, out] (transposed vs. torch's [out, in])."""
    kw, kb = jax.random.split(key)
    bound = 1.0 / jnp.sqrt(jnp.float32(fan_in))
    w = jax.random.uniform(kw, (fan_in, fan_out), jnp.float32, -bound, bound)
    b = jax.random.uniform(kb, (1, fan_out), jnp.float32, -bound, bound)
    return w, b


def _reference_forward(x, fc_w, fc_b, w1, b1, w2, b2, out_w, out_b):
    """Pure-JAX reference emulating the kernel's bf16-operand / f32-accum matmuls."""
    bf = jnp.bfloat16

    def mm(a, b):
        return jnp.dot(a.astype(bf), b.astype(bf), preferred_element_type=jnp.float32)

    h = mm(x, fc_w) + fc_b
    for i in range(w1.shape[0]):
        t = jnp.maximum(mm(h, w1[i]) + b1[i], 0.0)
        t = mm(t, w2[i]) + b2[i]
        h = h + t
    h = jnp.maximum(h, 0.0)
    return mm(h, out_w) + out_b


if __name__ == "__main__":
    # Config consistent with MLPResNet(num_blocks=2, input_dim=8, out_dim=4,
    # hidden_dim=128, activations=relu, use_layer_norm=False, dropout_rate=None).
    # The module's fc expects input_dim + 128 features on its input.
    num_blocks = 2
    input_dim = 8
    out_dim = 4
    hidden_dim = 128
    batch = 256
    din = input_dim + 128  # 136

    key = jax.random.PRNGKey(0)
    keys = jax.random.split(key, 2 + 2 * num_blocks + 2)

    x = jax.random.normal(keys[0], (batch, din), jnp.float32)

    fc_w, fc_b = _init_linear(keys[1], din, hidden_dim)

    w1_list, b1_list, w2_list, b2_list = [], [], [], []
    for i in range(num_blocks):
        w1_i, b1_i = _init_linear(keys[2 + 2 * i], hidden_dim, 4 * hidden_dim)
        w2_i, b2_i = _init_linear(keys[3 + 2 * i], 4 * hidden_dim, hidden_dim)
        w1_list.append(w1_i); b1_list.append(b1_i)
        w2_list.append(w2_i); b2_list.append(b2_i)
    w1 = jnp.stack(w1_list)   # [nb, H, 4H]
    b1 = jnp.stack(b1_list)   # [nb, 1, 4H]
    w2 = jnp.stack(w2_list)   # [nb, 4H, H]
    b2 = jnp.stack(b2_list)   # [nb, 1, H]

    out_w, out_b = _init_linear(keys[2 + 2 * num_blocks], hidden_dim, out_dim)
    # NOTE: each block's unused `residual` Linear exists in the torch module but
    # is never touched in forward (block in/out widths always == hidden_dim), so
    # it is not materialized here; the invariant is asserted in pack_*.

    # --- one-time weight packing (hoisted out of the per-call hot path) -----
    params, meta = pack_mlp_resnet_params(fc_w, fc_b, w1, b1, w2, b2, out_w, out_b)
    params = jax.block_until_ready(params)

    num_tc = _detect_num_tensorcores()   # 1 on v5e/v6e; 2-way split if dual-TC

    out = mlp_resnet_forward(x, params, out_dim=meta["out_dim"], num_tc=num_tc)
    out = jax.block_until_ready(out)

    ref = _reference_forward(x, fc_w, fc_b, w1, b1, w2, b2, out_w, out_b)
    assert out.shape == (batch, out_dim)
    # Output is stored as bf16 in the kernel (then cast back to f32), so allow
    # ~1 bf16 ulp of relative error on top of accumulation-order noise.
    assert jnp.allclose(out, ref, atol=5e-3, rtol=1e-2), "mismatch vs JAX reference"

    print("KERNEL_OK")
</pallas_src>

<mosaic_0001>
module attributes {stable_mosaic.version = 11 : i64} {
  func.func @_mlp_resnet_kernel(%arg0: i32, %arg1: memref<256x256xbf16, #tpu.memory_space<vmem>>, %arg2: memref<256x128xbf16, #tpu.memory_space<vmem>>, %arg3: memref<1x128xf32, #tpu.memory_space<vmem>>, %arg4: memref<2x128x512xbf16, #tpu.memory_space<vmem>>, %arg5: memref<2x1x512xf32, #tpu.memory_space<vmem>>, %arg6: memref<2x512x128xbf16, #tpu.memory_space<vmem>>, %arg7: memref<2x1x128xf32, #tpu.memory_space<vmem>>, %arg8: memref<128x128xbf16, #tpu.memory_space<vmem>>, %arg9: memref<1x128xf32, #tpu.memory_space<vmem>>, %arg10: memref<256x128xbf16, #tpu.memory_space<vmem>>) attributes {dimension_semantics = [#tpu.dimension_semantics<parallel>], iteration_bounds = array<i64: 1>, scalar_prefetch = 0 : i64, scratch_operands = 0 : i64, tpu.core_type = #tpu.core_type<tc>, window_params = [{transform_indices = @transform_0, window_bounds = array<i64: 256, 256>}, {pipeline_mode = #tpu.pipeline_mode<synchronous>, transform_indices = @transform_1, window_bounds = array<i64: 256, 128>}, {pipeline_mode = #tpu.pipeline_mode<synchronous>, transform_indices = @transform_2, window_bounds = array<i64: 1, 128>}, {pipeline_mode = #tpu.pipeline_mode<synchronous>, transform_indices = @transform_3, window_bounds = array<i64: 2, 128, 512>}, {pipeline_mode = #tpu.pipeline_mode<synchronous>, transform_indices = @transform_4, window_bounds = array<i64: 2, 1, 512>}, {pipeline_mode = #tpu.pipeline_mode<synchronous>, transform_indices = @transform_5, window_bounds = array<i64: 2, 512, 128>}, {pipeline_mode = #tpu.pipeline_mode<synchronous>, transform_indices = @transform_6, window_bounds = array<i64: 2, 1, 128>}, {pipeline_mode = #tpu.pipeline_mode<synchronous>, transform_indices = @transform_7, window_bounds = array<i64: 128, 128>}, {pipeline_mode = #tpu.pipeline_mode<synchronous>, transform_indices = @transform_8, window_bounds = array<i64: 1, 128>}, {transform_indices = @transform_9, window_bounds = array<i64: 256, 128>}]} {
    %c0 = arith.constant 0 : index
    %c0_0 = arith.constant 0 : index
    %0 = vector.load %arg1[%c0, %c0_0] : memref<256x256xbf16, #tpu.memory_space<vmem>>, vector<256x256xbf16>
    %c0_1 = arith.constant 0 : index
    %c0_2 = arith.constant 0 : index
    %1 = vector.load %arg2[%c0_1, %c0_2] : memref<256x128xbf16, #tpu.memory_space<vmem>>, vector<256x128xbf16>
    %cst = arith.constant dense<0.000000e+00> : vector<256x128xf32>
    %2 = tpu.matmul %0, %1, %cst {dimension_numbers = #tpu.dot_dimension_numbers<[1], [0], [0], [1], [0, 0, 1, 1], [], []>} : vector<256x256xbf16>, vector<256x128xbf16>, vector<256x128xf32> -> vector<256x128xf32>
    %c0_3 = arith.constant 0 : index
    %c0_4 = arith.constant 0 : index
    %3 = vector.load %arg3[%c0_3, %c0_4] : memref<1x128xf32, #tpu.memory_space<vmem>>, vector<1x128xf32>
    %4 = vector.broadcast %3 : vector<1x128xf32> to vector<256x128xf32>
    %5 = arith.addf %2, %4 : vector<256x128xf32>
    %6 = arith.truncf %5 : vector<256x128xf32> to vector<256x128xbf16>
    %c0_5 = arith.constant 0 : index
    %c0_6 = arith.constant 0 : index
    %c0_7 = arith.constant 0 : index
    %7 = vector.load %arg4[%c0_5, %c0_6, %c0_7] : memref<2x128x512xbf16, #tpu.memory_space<vmem>>, vector<1x128x512xbf16>
    %8 = vector.shape_cast %7 : vector<1x128x512xbf16> to vector<128x512xbf16>
    %cst_8 = arith.constant dense<0.000000e+00> : vector<256x512xf32>
    %9 = tpu.matmul %6, %8, %cst_8 {dimension_numbers = #tpu.dot_dimension_numbers<[1], [0], [0], [1], [0, 0, 1, 1], [], []>} : vector<256x128xbf16>, vector<128x512xbf16>, vector<256x512xf32> -> vector<256x512xf32>
    %c0_9 = arith.constant 0 : index
    %c0_10 = arith.constant 0 : index
    %c0_11 = arith.constant 0 : index
    %10 = vector.load %arg5[%c0_9, %c0_10, %c0_11] : memref<2x1x512xf32, #tpu.memory_space<vmem>>, vector<1x1x512xf32>
    %11 = vector.shape_cast %10 : vector<1x1x512xf32> to vector<1x512xf32>
    %12 = vector.broadcast %11 : vector<1x512xf32> to vector<256x512xf32>
    %13 = arith.addf %9, %12 : vector<256x512xf32>
    %cst_12 = arith.constant 0.000000e+00 : f32
    %14 = vector.broadcast %cst_12 : f32 to vector<256x512xf32>
    %15 = arith.maximumf %13, %14 : vector<256x512xf32>
    %16 = arith.truncf %15 : vector<256x512xf32> to vector<256x512xbf16>
    %c0_13 = arith.constant 0 : index
    %c0_14 = arith.constant 0 : index
    %c0_15 = arith.constant 0 : index
    %17 = vector.load %arg6[%c0_13, %c0_14, %c0_15] : memref<2x512x128xbf16, #tpu.memory_space<vmem>>, vector<1x512x128xbf16>
    %18 = vector.shape_cast %17 : vector<1x512x128xbf16> to vector<512x128xbf16>
    %cst_16 = arith.constant dense<0.000000e+00> : vector<256x128xf32>
    %19 = tpu.matmul %16, %18, %cst_16 {dimension_numbers = #tpu.dot_dimension_numbers<[1], [0], [0], [1], [0, 0, 1, 1], [], []>} : vector<256x512xbf16>, vector<512x128xbf16>, vector<256x128xf32> -> vector<256x128xf32>
    %c0_17 = arith.constant 0 : index
    %c0_18 = arith.constant 0 : index
    %c0_19 = arith.constant 0 : index
    %20 = vector.load %arg7[%c0_17, %c0_18, %c0_19] : memref<2x1x128xf32, #tpu.memory_space<vmem>>, vector<1x1x128xf32>
    %21 = vector.shape_cast %20 : vector<1x1x128xf32> to vector<1x128xf32>
    %22 = vector.broadcast %21 : vector<1x128xf32> to vector<256x128xf32>
    %23 = arith.addf %19, %22 : vector<256x128xf32>
    %24 = arith.addf %5, %23 : vector<256x128xf32>
    %25 = arith.truncf %24 : vector<256x128xf32> to vector<256x128xbf16>
    %c1 = arith.constant 1 : index
    %c0_20 = arith.constant 0 : index
    %c0_21 = arith.constant 0 : index
    %26 = vector.load %arg4[%c1, %c0_20, %c0_21] : memref<2x128x512xbf16, #tpu.memory_space<vmem>>, vector<1x128x512xbf16>
    %27 = vector.shape_cast %26 : vector<1x128x512xbf16> to vector<128x512xbf16>
    %cst_22 = arith.constant dense<0.000000e+00> : vector<256x512xf32>
    %28 = tpu.matmul %25, %27, %cst_22 {dimension_numbers = #tpu.dot_dimension_numbers<[1], [0], [0], [1], [0, 0, 1, 1], [], []>} : vector<256x128xbf16>, vector<128x512xbf16>, vector<256x512xf32> -> vector<256x512xf32>
    %c1_23 = arith.constant 1 : index
    %c0_24 = arith.constant 0 : index
    %c0_25 = arith.constant 0 : index
    %29 = vector.load %arg5[%c1_23, %c0_24, %c0_25] : memref<2x1x512xf32, #tpu.memory_space<vmem>>, vector<1x1x512xf32>
    %30 = vector.shape_cast %29 : vector<1x1x512xf32> to vector<1x512xf32>
    %31 = vector.broadcast %30 : vector<1x512xf32> to vector<256x512xf32>
    %32 = arith.addf %28, %31 : vector<256x512xf32>
    %cst_26 = arith.constant 0.000000e+00 : f32
    %33 = vector.broadcast %cst_26 : f32 to vector<256x512xf32>
    %34 = arith.maximumf %32, %33 : vector<256x512xf32>
    %35 = arith.truncf %34 : vector<256x512xf32> to vector<256x512xbf16>
    %c1_27 = arith.constant 1 : index
    %c0_28 = arith.constant 0 : index
    %c0_29 = arith.constant 0 : index
    %36 = vector.load %arg6[%c1_27, %c0_28, %c0_29] : memref<2x512x128xbf16, #tpu.memory_space<vmem>>, vector<1x512x128xbf16>
    %37 = vector.shape_cast %36 : vector<1x512x128xbf16> to vector<512x128xbf16>
    %cst_30 = arith.constant dense<0.000000e+00> : vector<256x128xf32>
    %38 = tpu.matmul %35, %37, %cst_30 {dimension_numbers = #tpu.dot_dimension_numbers<[1], [0], [0], [1], [0, 0, 1, 1], [], []>} : vector<256x512xbf16>, vector<512x128xbf16>, vector<256x128xf32> -> vector<256x128xf32>
    %c1_31 = arith.constant 1 : index
    %c0_32 = arith.constant 0 : index
    %c0_33 = arith.constant 0 : index
    %39 = vector.load %arg7[%c1_31, %c0_32, %c0_33] : memref<2x1x128xf32, #tpu.memory_space<vmem>>, vector<1x1x128xf32>
    %40 = vector.shape_cast %39 : vector<1x1x128xf32> to vector<1x128xf32>
    %41 = vector.broadcast %40 : vector<1x128xf32> to vector<256x128xf32>
    %42 = arith.addf %38, %41 : vector<256x128xf32>
    %43 = arith.addf %24, %42 : vector<256x128xf32>
    %cst_34 = arith.constant 0.000000e+00 : f32
    %44 = vector.broadcast %cst_34 : f32 to vector<256x128xf32>
    %45 = arith.maximumf %43, %44 : vector<256x128xf32>
    %46 = arith.truncf %45 : vector<256x128xf32> to vector<256x128xbf16>
    %c0_35 = arith.constant 0 : index
    %c0_36 = arith.constant 0 : index
    %47 = vector.load %arg8[%c0_35, %c0_36] : memref<128x128xbf16, #tpu.memory_space<vmem>>, vector<128x128xbf16>
    %cst_37 = arith.constant dense<0.000000e+00> : vector<256x128xf32>
    %48 = tpu.matmul %46, %47, %cst_37 {dimension_numbers = #tpu.dot_dimension_numbers<[1], [0], [0], [1], [0, 0, 1, 1], [], []>} : vector<256x128xbf16>, vector<128x128xbf16>, vector<256x128xf32> -> vector<256x128xf32>
    %c0_38 = arith.constant 0 : index
    %c0_39 = arith.constant 0 : index
    %49 = vector.load %arg9[%c0_38, %c0_39] : memref<1x128xf32, #tpu.memory_space<vmem>>, vector<1x128xf32>
    %50 = vector.broadcast %49 : vector<1x128xf32> to vector<256x128xf32>
    %51 = arith.addf %48, %50 : vector<256x128xf32>
    %52 = arith.truncf %51 : vector<256x128xf32> to vector<256x128xbf16>
    %c0_40 = arith.constant 0 : index
    %c0_41 = arith.constant 0 : index
    %53 = vector.load %arg10[%c0_40, %c0_41] : memref<256x128xbf16, #tpu.memory_space<vmem>>, vector<256x128xbf16>
    tpu.vector_store %arg10[%c0_40, %c0_41], %52 {strides = array<i32>} : memref<256x128xbf16, #tpu.memory_space<vmem>>, vector<256x128xbf16>,
    return
  }
  func.func @transform_0(%arg0: i32) -> (i32, i32) {
    %c0_i32 = arith.constant 0 : i32
    %c0_i32_0 = arith.constant 0 : i32
    return %arg0, %c0_i32 : i32, i32
  }
  func.func @transform_1(%arg0: i32) -> (i32, i32) {
    %c0_i32 = arith.constant 0 : i32
    %c0_i32_0 = arith.constant 0 : i32
    %c0_i32_1 = arith.constant 0 : i32
    return %c0_i32, %c0_i32_0 : i32, i32
  }
  func.func @transform_2(%arg0: i32) -> (i32, i32) {
    %c0_i32 = arith.constant 0 : i32
    %c0_i32_0 = arith.constant 0 : i32
    %c0_i32_1 = arith.constant 0 : i32
    return %c0_i32, %c0_i32_0 : i32, i32
  }
  func.func @transform_3(%arg0: i32) -> (i32, i32, i32) {
    %c0_i32 = arith.constant 0 : i32
    %c0_i32_0 = arith.constant 0 : i32
    %c0_i32_1 = arith.constant 0 : i32
    %c0_i32_2 = arith.constant 0 : i32
    return %c0_i32, %c0_i32_0, %c0_i32_1 : i32, i32, i32
  }
  func.func @transform_4(%arg0: i32) -> (i32, i32, i32) {
    %c0_i32 = arith.constant 0 : i32
    %c0_i32_0 = arith.constant 0 : i32
    %c0_i32_1 = arith.constant 0 : i32
    %c0_i32_2 = arith.constant 0 : i32
    return %c0_i32, %c0_i32_0, %c0_i32_1 : i32, i32, i32
  }
  func.func @transform_5(%arg0: i32) -> (i32, i32, i32) {
    %c0_i32 = arith.constant 0 : i32
    %c0_i32_0 = arith.constant 0 : i32
    %c0_i32_1 = arith.constant 0 : i32
    %c0_i32_2 = arith.constant 0 : i32
    return %c0_i32, %c0_i32_0, %c0_i32_1 : i32, i32, i32
  }
  func.func @transform_6(%arg0: i32) -> (i32, i32, i32) {
    %c0_i32 = arith.constant 0 : i32
    %c0_i32_0 = arith.constant 0 : i32
    %c0_i32_1 = arith.constant 0 : i32
    %c0_i32_2 = arith.constant 0 : i32
    return %c0_i32, %c0_i32_0, %c0_i32_1 : i32, i32, i32
  }
  func.func @transform_7(%arg0: i32) -> (i32, i32) {
    %c0_i32 = arith.constant 0 : i32
    %c0_i32_0 = arith.constant 0 : i32
    %c0_i32_1 = arith.constant 0 : i32
    return %c0_i32, %c0_i32_0 : i32, i32
  }
  func.func @transform_8(%arg0: i32) -> (i32, i32) {
    %c0_i32 = arith.constant 0 : i32
    %c0_i32_0 = arith.constant 0 : i32
    %c0_i32_1 = arith.constant 0 : i32
    return %c0_i32, %c0_i32_0 : i32, i32
  }
  func.func @transform_9(%arg0: i32) -> (i32, i32) {
    %c0_i32 = arith.constant 0 : i32
    %c0_i32_0 = arith.constant 0 : i32
    return %arg0, %c0_i32 : i32, i32
  }
}

</mosaic_0001>

<llo_original>
// kernel: mlp_resnet_forward.1
$region0: #{mlp_resnet_forward.1}
  #allocation0 [shape = 'u32[]', space=smem, size = 0x4, offset = 0x4, fixed_abs, tag = 'smem constant byte address 0x4 - core index']
  #allocation1 [shape = 'u32[144,128]{1,0:T(1,128)}', space=vmem, size = 0x12000, scoped, tag = 'internal scratch']
  %s0 = inlined_call_operand.vmem [shape: bf16[256,256], index: 0, kind: input, shape index: {}]
  %s1 = inlined_call_operand.vmem [shape: bf16[256,128], index: 1, kind: input, shape index: {}]
  %s2 = inlined_call_operand.vmem [shape: f32[1,128], index: 2, kind: input, shape index: {}]
  %s3 = inlined_call_operand.vmem [shape: bf16[2,128,512], index: 3, kind: input, shape index: {}]
  %s4 = inlined_call_operand.vmem [shape: f32[2,1,512], index: 4, kind: input, shape index: {}]
  %s5 = inlined_call_operand.vmem [shape: bf16[2,512,128], index: 5, kind: input, shape index: {}]
  %s6 = inlined_call_operand.vmem [shape: f32[2,1,128], index: 6, kind: input, shape index: {}]
  %s7 = inlined_call_operand.vmem [shape: bf16[128,128], index: 7, kind: input, shape index: {}]
  %s8 = inlined_call_operand.vmem [shape: f32[1,128], index: 8, kind: input, shape index: {}]
  %s9 = inlined_call_operand.vmem [shape: bf16[256,128], index: 9, kind: output, shape index: {}]
  %s10 = sld [smem:[#allocation0]]
  $region46: #{mlp_resnet_forward.1} parent=0
    _
  %s12 = ssub.s32 1, %s10
  %s13 = scalar_select 0, %s12, %s10
  // Predicated region
  $region2: #{mlp_resnet_forward.1} parent=0 // pred_check
    _
  $region3: #{mlp_resnet_forward.1} parent=0 // pred_check_branch
    %15 = sbr.rel (0) target = $region5
  $region4: #{mlp_resnet_forward.1} parent=0 // pred_region
    _
  $region5: #{mlp_resnet_forward.1} parent=0 // pred_fallthru
    _
  // Predicated region
  $region6: #{mlp_resnet_forward.1} parent=0 // pred_check
    _
  $region7: #{mlp_resnet_forward.1} parent=0 // pred_check_branch
    %17 = sbr.rel (0) target = $region9
  $region8: #{mlp_resnet_forward.1} parent=0 // pred_region
    _
  $region9: #{mlp_resnet_forward.1} parent=0 // pred_fallthru
    _
  // Predicated region
  $region10: #{mlp_resnet_forward.1} parent=0 // pred_check
    _
  $region11: #{mlp_resnet_forward.1} parent=0 // pred_check_branch
    %19 = sbr.rel (0) target = $region13
  $region12: #{mlp_resnet_forward.1} parent=0 // pred_region
    _
  $region13: #{mlp_resnet_forward.1} parent=0 // pred_fallthru
    _
  // Predicated region
  $region14: #{mlp_resnet_forward.1} parent=0 // pred_check
    _
  $region15: #{mlp_resnet_forward.1} parent=0 // pred_check_branch
    %21 = sbr.rel (0) target = $region17
  $region16: #{mlp_resnet_forward.1} parent=0 // pred_region
    _
  $region17: #{mlp_resnet_forward.1} parent=0 // pred_fallthru
    _
  // Predicated region
  $region18: #{mlp_resnet_forward.1} parent=0 // pred_check
    _
  $region19: #{mlp_resnet_forward.1} parent=0 // pred_check_branch
    %23 = sbr.rel (0) target = $region21
  $region20: #{mlp_resnet_forward.1} parent=0 // pred_region
    _
  $region21: #{mlp_resnet_forward.1} parent=0 // pred_fallthru
    _
  // Predicated region
  $region22: #{mlp_resnet_forward.1} parent=0 // pred_check
    _
  $region23: #{mlp_resnet_forward.1} parent=0 // pred_check_branch
    %25 = sbr.rel (0) target = $region25
  $region24: #{mlp_resnet_forward.1} parent=0 // pred_region
    _
  $region25: #{mlp_resnet_forward.1} parent=0 // pred_fallthru
    _
  // Predicated region
  $region26: #{mlp_resnet_forward.1} parent=0 // pred_check
    _
  $region27: #{mlp_resnet_forward.1} parent=0 // pred_check_branch
    %27 = sbr.rel (0) target = $region29
  $region28: #{mlp_resnet_forward.1} parent=0 // pred_region
    _
  $region29: #{mlp_resnet_forward.1} parent=0 // pred_fallthru
    _
  // Predicated region
  $region30: #{mlp_resnet_forward.1} parent=0 // pred_check
    _
  $region31: #{mlp_resnet_forward.1} parent=0 // pred_check_branch
    %29 = sbr.rel (0) target = $region33
  $region32: #{mlp_resnet_forward.1} parent=0 // pred_region
    _
  $region33: #{mlp_resnet_forward.1} parent=0 // pred_fallthru
    _
  // Predicated region
  $region34: #{mlp_resnet_forward.1} parent=0 // pred_check
    _
  $region35: #{mlp_resnet_forward.1} parent=0 // pred_check_branch
    %31 = sbr.rel (0) target = $region37
  $region36: #{mlp_resnet_forward.1} parent=0 // pred_region
    _
  $region37: #{mlp_resnet_forward.1} parent=0 // pred_fallthru
    _
  %v33 = vld [vmem:[%s0] sm:$0xff]
  %v34 = vld [vmem:[%s0 + $0x8] sm:$0xff]
  %v35 = vld [vmem:[%s0 + $0x10] sm:$0xff]
  %v36 = vld [vmem:[%s0 + $0x18] sm:$0xff]
  %v37 = vld [vmem:[%s0 + $0x20] sm:$0xff]
  %v38 = vld [vmem:[%s0 + $0x28] sm:$0xff]
  %v39 = vld [vmem:[%s0 + $0x30] sm:$0xff]
  %v40 = vld [vmem:[%s0 + $0x38] sm:$0xff]
  %v41 = vld [vmem:[%s0 + $0x40] sm:$0xff]
  %v42 = vld [vmem:[%s0 + $0x48] sm:$0xff]
  %v43 = vld [vmem:[%s0 + $0x50] sm:$0xff]
  %v44 = vld [vmem:[%s0 + $0x58] sm:$0xff]
  %v45 = vld [vmem:[%s0 + $0x60] sm:$0xff]
  %v46 = vld [vmem:[%s0 + $0x68] sm:$0xff]
  %v47 = vld [vmem:[%s0 + $0x70] sm:$0xff]
  %v48 = vld [vmem:[%s0 + $0x78] sm:$0xff]
  %v49 = vld [vmem:[%s0 + $0x80] sm:$0xff]
  %v50 = vld [vmem:[%s0 + $0x88] sm:$0xff]
  %v51 = vld [vmem:[%s0 + $0x90] sm:$0xff]
  %v52 = vld [vmem:[%s0 + $0x98] sm:$0xff]
  %v53 = vld [vmem:[%s0 + $0xa0] sm:$0xff]
  %v54 = vld [vmem:[%s0 + $0xa8] sm:$0xff]
  %v55 = vld [vmem:[%s0 + $0xb0] sm:$0xff]
  %v56 = vld [vmem:[%s0 + $0xb8] sm:$0xff]
  %v57 = vld [vmem:[%s0 + $0xc0] sm:$0xff]
  %v58 = vld [vmem:[%s0 + $0xc8] sm:$0xff]
  %v59 = vld [vmem:[%s0 + $0xd0] sm:$0xff]
  %v60 = vld [vmem:[%s0 + $0xd8] sm:$0xff]
  %v61 = vld [vmem:[%s0 + $0xe0] sm:$0xff]
  %v62 = vld [vmem:[%s0 + $0xe8] sm:$0xff]
  %v63 = vld [vmem:[%s0 + $0xf0] sm:$0xff]
  %v64 = vld [vmem:[%s0 + $0xf8] sm:$0xff]
  %v65 = vld [vmem:[%s1] sm:$0xf]
  %v66 = vld [vmem:[%s1 + $0x4] sm:$0xf]
  %v67 = vld [vmem:[%s1 + $0x8] sm:$0xf]
  %v68 = vld [vmem:[%s1 + $0xc] sm:$0xf]
  %v69 = vld [vmem:[%s1 + $0x10] sm:$0xf]
  %v70 = vld [vmem:[%s1 + $0x14] sm:$0xf]
  %v71 = vld [vmem:[%s1 + $0x18] sm:$0xf]
  %v72 = vld [vmem:[%s1 + $0x1c] sm:$0xf]
  %v73 = vld [vmem:[%s1 + $0x20] sm:$0xf]
  %v74 = vld [vmem:[%s1 + $0x24] sm:$0xf]
  %v75 = vld [vmem:[%s1 + $0x28] sm:$0xf]
  %v76 = vld [vmem:[%s1 + $0x2c] sm:$0xf]
  %v77 = vld [vmem:[%s1 + $0x30] sm:$0xf]
  %v78 = vld [vmem:[%s1 + $0x34] sm:$0xf]
  %v79 = vld [vmem:[%s1 + $0x38] sm:$0xf]
  %v80 = vld [vmem:[%s1 + $0x3c] sm:$0xf]
  %v81 = vld [vmem:[%s1 + $0x40] sm:$0xf]
  %v82 = vld [vmem:[%s1 + $0x44] sm:$0xf]
  %v83 = vld [vmem:[%s1 + $0x48] sm:$0xf]
  %v84 = vld [vmem:[%s1 + $0x4c] sm:$0xf]
  %v85 = vld [vmem:[%s1 + $0x50] sm:$0xf]
  %v86 = vld [vmem:[%s1 + $0x54] sm:$0xf]
  %v87 = vld [vmem:[%s1 + $0x58] sm:$0xf]
  %v88 = vld [vmem:[%s1 + $0x5c] sm:$0xf]
  %v89 = vld [vmem:[%s1 + $0x60] sm:$0xf]
  %v90 = vld [vmem:[%s1 + $0x64] sm:$0xf]
  %v91 = vld [vmem:[%s1 + $0x68] sm:$0xf]
  %v92 = vld [vmem:[%s1 + $0x6c] sm:$0xf]
  %v93 = vld [vmem:[%s1 + $0x70] sm:$0xf]
  %v94 = vld [vmem:[%s1 + $0x74] sm:$0xf]
  %v95 = vld [vmem:[%s1 + $0x78] sm:$0xf]
  %v96 = vld [vmem:[%s1 + $0x7c] sm:$0xf]
  %v97 = vld [vmem:[%s2] sm:$0x1]
  %v99 = vlaneseq
  %v100 = vshrl.u32 %v99, 7
  %v101 = vsub.s32 0, %v100
  %v102 = vrot.slane %v97, %v101
  %v136 = vunpack.c.l.b16 %v33
  %v137 = vunpack.c.h.b16 %v33
  %v138 = vunpack.c.l.b16 %v34
  %v139 = vunpack.c.h.b16 %v34
  %v140 = vunpack.c.l.b16 %v35
  %v141 = vunpack.c.h.b16 %v35
  %v142 = vunpack.c.l.b16 %v36
  %v143 = vunpack.c.h.b16 %v36
  %v144 = vunpack.c.l.b16 %v37
  %v145 = vunpack.c.h.b16 %v37
  %v146 = vunpack.c.l.b16 %v38
  %v147 = vunpack.c.h.b16 %v38
  %v148 = vunpack.c.l.b16 %v39
  %v149 = vunpack.c.h.b16 %v39
  %v150 = vunpack.c.l.b16 %v40
  %v151 = vunpack.c.h.b16 %v40
  %v152 = vunpack.c.l.b16 %v41
  %v153 = vunpack.c.h.b16 %v41
  %v154 = vunpack.c.l.b16 %v42
  %v155 = vunpack.c.h.b16 %v42
  %v156 = vunpack.c.l.b16 %v43
  %v157 = vunpack.c.h.b16 %v43
  %v158 = vunpack.c.l.b16 %v44
  %v159 = vunpack.c.h.b16 %v44
  %v160 = vunpack.c.l.b16 %v45
  %v161 = vunpack.c.h.b16 %v45
  %v162 = vunpack.c.l.b16 %v46
  %v163 = vunpack.c.h.b16 %v46
  %v164 = vunpack.c.l.b16 %v47
  %v165 = vunpack.c.h.b16 %v47
  %v166 = vunpack.c.l.b16 %v48
  %v167 = vunpack.c.h.b16 %v48
  %v168 = vunpack.c.l.b16 %v49
  %v169 = vunpack.c.h.b16 %v49
  %v170 = vunpack.c.l.b16 %v50
  %v171 = vunpack.c.h.b16 %v50
  %v172 = vunpack.c.l.b16 %v51
  %v173 = vunpack.c.h.b16 %v51
  %v174 = vunpack.c.l.b16 %v52
  %v175 = vunpack.c.h.b16 %v52
  %v176 = vunpack.c.l.b16 %v53
  %v177 = vunpack.c.h.b16 %v53
  %v178 = vunpack.c.l.b16 %v54
  %v179 = vunpack.c.h.b16 %v54
  %v180 = vunpack.c.l.b16 %v55
  %v181 = vunpack.c.h.b16 %v55
  %v182 = vunpack.c.l.b16 %v56
  %v183 = vunpack.c.h.b16 %v56
  %v184 = vunpack.c.l.b16 %v57
  %v185 = vunpack.c.h.b16 %v57
  %v186 = vunpack.c.l.b16 %v58
  %v187 = vunpack.c.h.b16 %v58
  %v188 = vunpack.c.l.b16 %v59
  %v189 = vunpack.c.h.b16 %v59
  %v190 = vunpack.c.l.b16 %v60
  %v191 = vunpack.c.h.b16 %v60
  %v192 = vunpack.c.l.b16 %v61
  %v193 = vunpack.c.h.b16 %v61
  %v194 = vunpack.c.l.b16 %v62
  %v195 = vunpack.c.h.b16 %v62
  %v196 = vunpack.c.l.b16 %v63
  %v197 = vunpack.c.h.b16 %v63
  %v198 = vunpack.c.l.b16 %v64
  %v199 = vunpack.c.h.b16 %v64
  %v200 = vpack.c.b16 %v138, %v136
  %v201 = vpack.c.b16 %v139, %v137
  %v202 = vpack.c.b16 %v142, %v140
  %v203 = vpack.c.b16 %v143, %v141
  %v204 = vpack.c.b16 %v146, %v144
  %v205 = vpack.c.b16 %v147, %v145
  %v206 = vpack.c.b16 %v150, %v148
  %v207 = vpack.c.b16 %v151, %v149
  %v208 = vpack.c.b16 %v154, %v152
  %v209 = vpack.c.b16 %v155, %v153
  %v210 = vpack.c.b16 %v158, %v156
  %v211 = vpack.c.b16 %v159, %v157
  %v212 = vpack.c.b16 %v162, %v160
  %v213 = vpack.c.b16 %v163, %v161
  %v214 = vpack.c.b16 %v166, %v164
  %v215 = vpack.c.b16 %v167, %v165
  %v216 = vpack.c.b16 %v170, %v168
  %v217 = vpack.c.b16 %v171, %v169
  %v218 = vpack.c.b16 %v174, %v172
  %v219 = vpack.c.b16 %v175, %v173
  %v220 = vpack.c.b16 %v178, %v176
  %v221 = vpack.c.b16 %v179, %v177
  %v222 = vpack.c.b16 %v182, %v180
  %v223 = vpack.c.b16 %v183, %v181
  %v224 = vpack.c.b16 %v186, %v184
  %v225 = vpack.c.b16 %v187, %v185
  %v226 = vpack.c.b16 %v190, %v188
  %v227 = vpack.c.b16 %v191, %v189
  %v228 = vpack.c.b16 %v194, %v192
  %v229 = vpack.c.b16 %v195, %v193
  %v230 = vpack.c.b16 %v198, %v196
  %v231 = vpack.c.b16 %v199, %v197
  %v296 = vunpack.c.l.b16 %v65
  %v297 = vunpack.c.l.b16 %v66
  %v298 = vunpack.c.l.b16 %v67
  %v299 = vunpack.c.l.b16 %v68
  %v300 = vunpack.c.l.b16 %v69
  %v301 = vunpack.c.l.b16 %v70
  %v302 = vunpack.c.l.b16 %v71
  %v303 = vunpack.c.l.b16 %v72
  %v304 = vunpack.c.l.b16 %v73
  %v305 = vunpack.c.l.b16 %v74
  %v306 = vunpack.c.l.b16 %v75
  %v307 = vunpack.c.l.b16 %v76
  %v308 = vunpack.c.l.b16 %v77
  %v309 = vunpack.c.l.b16 %v78
  %v310 = vunpack.c.l.b16 %v79
  %v311 = vunpack.c.l.b16 %v80
  %v312 = vunpack.c.l.b16 %v81
  %v313 = vunpack.c.l.b16 %v82
  %v314 = vunpack.c.l.b16 %v83
  %v315 = vunpack.c.l.b16 %v84
  %v316 = vunpack.c.l.b16 %v85
  %v317 = vunpack.c.l.b16 %v86
  %v318 = vunpack.c.l.b16 %v87
  %v319 = vunpack.c.l.b16 %v88
  %v320 = vunpack.c.l.b16 %v89
  %v321 = vunpack.c.l.b16 %v90
  %v322 = vunpack.c.l.b16 %v91
  %v323 = vunpack.c.l.b16 %v92
  %v324 = vunpack.c.l.b16 %v93
  %v325 = vunpack.c.l.b16 %v94
  %v326 = vunpack.c.l.b16 %v95
  %v327 = vunpack.c.l.b16 %v96
  %v328 = vpack.c.b16 %v297, %v296
  %v329 = vpack.c.b16 %v299, %v298
  %v330 = vpack.c.b16 %v301, %v300
  %v331 = vpack.c.b16 %v303, %v302
  %v332 = vpack.c.b16 %v305, %v304
  %v333 = vpack.c.b16 %v307, %v306
  %v334 = vpack.c.b16 %v309, %v308
  %v335 = vpack.c.b16 %v311, %v310
  %v336 = vpack.c.b16 %v313, %v312
  %v337 = vpack.c.b16 %v315, %v314
  %v338 = vpack.c.b16 %v317, %v316
  %v339 = vpack.c.b16 %v319, %v318
  %v340 = vpack.c.b16 %v321, %v320
  %v341 = vpack.c.b16 %v323, %v322
  %v342 = vpack.c.b16 %v325, %v324
  %v343 = vpack.c.b16 %v327, %v326
  %360 = vmatprep.subr.bf16.mxu0 0
  %361 = vmatpush1.bf16.msra.mxu0 %v335
  %362 = vmatprep.subr.bf16.mxu0 0
  %363 = vmatpush1.bf16.msra.mxu0 %v334
  %364 = vmatprep.subr.bf16.mxu0 0
  %365 = vmatpush1.bf16.msra.mxu0 %v333
  %366 = vmatprep.subr.bf16.mxu0 0
  %367 = vmatpush1.bf16.msra.mxu0 %v332
  %368 = vmatprep.subr.bf16.mxu0 0
  %369 = vmatpush1.bf16.msra.mxu0 %v331
  %370 = vmatprep.subr.bf16.mxu0 0
  %371 = vmatpush1.bf16.msra.mxu0 %v330
  %372 = vmatprep.subr.bf16.mxu0 0
  %373 = vmatpush1.bf16.msra.mxu0 %v329
  %374 = vmatprep.subr.bf16.mxu0 0
  %375 = vmatpush1.bf16.msra.mxu0 %v328
  %376 = vmatprep.subr.bf16.mxu0 0
  %377 = vmatpush2.bf16.msra.mxu0 %v343
  %378 = vmatprep.subr.bf16.mxu0 0
  %379 = vmatpush2.bf16.msra.mxu0 %v342
  %380 = vmatprep.subr.bf16.mxu0 0
  %381 = vmatpush2.bf16.msra.mxu0 %v341
  %382 = vmatprep.subr.bf16.mxu0 0
  %383 = vmatpush2.bf16.msra.mxu0 %v340
  %384 = vmatprep.subr.bf16.mxu0 0
  %385 = vmatpush2.bf16.msra.mxu0 %v339
  %386 = vmatprep.subr.bf16.mxu0 0
  %387 = vmatpush2.bf16.msra.mxu0 %v338
  %388 = vmatprep.subr.bf16.mxu0 0
  %389 = vmatpush2.bf16.msra.mxu0 %v337
  %390 = vmatprep.subr.bf16.mxu0 0
  %391 = vmatpush2.bf16.msra.mxu0 %v336
  %392 = vmatprep.mubr.bf16.mxu0 %v201
  %393 = vmatmul.mubr.bf16.gmra.mxu0 %v200
  %v394 = vpop.f32.mrf.mxu0
  %v395 = vadd.f32 %v102, %v394
  %v396 = vpop.f32.mrf.mxu0
  %v397 = vpop.f32.mrf.mxu0
  %v398 = vadd.f32 %v102, %v397
  %v399 = vpop.f32.mrf.mxu0
  %400 = vmatprep.mubr.bf16.mxu0 %v203
  %401 = vmatmul.mubr.bf16.gmra.mxu0 %v202
  %v402 = vpop.f32.mrf.mxu0
  %v403 = vadd.f32 %v102, %v402
  %v404 = vpop.f32.mrf.mxu0
  %v405 = vpop.f32.mrf.mxu0
  %v406 = vadd.f32 %v102, %v405
  %v407 = vpop.f32.mrf.mxu0
  %408 = vmatprep.mubr.bf16.mxu0 %v205
  %409 = vmatmul.mubr.bf16.gmra.mxu0 %v204
  %v410 = vpop.f32.mrf.mxu0
  %v411 = vadd.f32 %v102, %v410
  %v412 = vpop.f32.mrf.mxu0
  %v413 = vpop.f32.mrf.mxu0
  %v414 = vadd.f32 %v102, %v413
  %v415 = vpop.f32.mrf.mxu0
  %416 = vmatprep.mubr.bf16.mxu0 %v207
  %417 = vmatmul.mubr.bf16.gmra.mxu0 %v206
  %v418 = vpop.f32.mrf.mxu0
  %v419 = vadd.f32 %v102, %v418
  %v420 = vpop.f32.mrf.mxu0
  %v421 = vpop.f32.mrf.mxu0
  %v422 = vadd.f32 %v102, %v421
  %v423 = vpop.f32.mrf.mxu0
  %424 = vmatprep.mubr.bf16.mxu0 %v209
  %425 = vmatmul.mubr.bf16.gmra.mxu0 %v208
  %v426 = vpop.f32.mrf.mxu0
  %v427 = vadd.f32 %v102, %v426
  %v428 = vpop.f32.mrf.mxu0
  %v429 = vpop.f32.mrf.mxu0
  %v430 = vadd.f32 %v102, %v429
  %v431 = vpop.f32.mrf.mxu0
  %432 = vmatprep.mubr.bf16.mxu0 %v211
  %433 = vmatmul.mubr.bf16.gmra.mxu0 %v210
  %v434 = vpop.f32.mrf.mxu0
  %v435 = vadd.f32 %v102, %v434
  %v436 = vpop.f32.mrf.mxu0
  %v437 = vpop.f32.mrf.mxu0
  %v438 = vadd.f32 %v102, %v437
  %v439 = vpop.f32.mrf.mxu0
  %440 = vmatprep.mubr.bf16.mxu0 %v213
  %441 = vmatmul.mubr.bf16.gmra.mxu0 %v212
  %v442 = vpop.f32.mrf.mxu0
  %v443 = vadd.f32 %v102, %v442
  %v444 = vpop.f32.mrf.mxu0
  %v445 = vpop.f32.mrf.mxu0
  %v446 = vadd.f32 %v102, %v445
  %v447 = vpop.f32.mrf.mxu0
  %448 = vmatprep.mubr.bf16.mxu0 %v215
  %449 = vmatmul.mubr.bf16.gmra.mxu0 %v214
  %v450 = vpop.f32.mrf.mxu0
  %v451 = vadd.f32 %v102, %v450
  %v452 = vpop.f32.mrf.mxu0
  %v453 = vpop.f32.mrf.mxu0
  %v454 = vadd.f32 %v102, %v453
  %v455 = vpop.f32.mrf.mxu0
  %456 = vmatprep.mubr.bf16.mxu0 %v217
  %457 = vmatmul.mubr.bf16.gmra.mxu0 %v216
  %v458 = vpop.f32.mrf.mxu0
  %v459 = vadd.f32 %v102, %v458
  %v460 = vpop.f32.mrf.mxu0
  %v461 = vpop.f32.mrf.mxu0
  %v462 = vadd.f32 %v102, %v461
  %v463 = vpop.f32.mrf.mxu0
  %464 = vmatprep.mubr.bf16.mxu0 %v219
  %465 = vmatmul.mubr.bf16.gmra.mxu0 %v218
  %v466 = vpop.f32.mrf.mxu0
  %v467 = vadd.f32 %v102, %v466
  %v468 = vpop.f32.mrf.mxu0
  %v469 = vpop.f32.mrf.mxu0
  %v470 = vadd.f32 %v102, %v469
  %v471 = vpop.f32.mrf.mxu0
  %472 = vmatprep.mubr.bf16.mxu0 %v221
  %473 = vmatmul.mubr.bf16.gmra.mxu0 %v220
  %v474 = vpop.f32.mrf.mxu0
  %v475 = vadd.f32 %v102, %v474
  %v476 = vpop.f32.mrf.mxu0
  %v477 = vpop.f32.mrf.mxu0
  %v478 = vadd.f32 %v102, %v477
  %v479 = vpop.f32.mrf.mxu0
  %480 = vmatprep.mubr.bf16.mxu0 %v223
  %481 = vmatmul.mubr.bf16.gmra.mxu0 %v222
  %v482 = vpop.f32.mrf.mxu0
  %v483 = vadd.f32 %v102, %v482
  %v484 = vpop.f32.mrf.mxu0
  %v485 = vpop.f32.mrf.mxu0
  %v486 = vadd.f32 %v102, %v485
  %v487 = vpop.f32.mrf.mxu0
  %488 = vmatprep.mubr.bf16.mxu0 %v225
  %489 = vmatmul.mubr.bf16.gmra.mxu0 %v224
  %v490 = vpop.f32.mrf.mxu0
  %v491 = vadd.f32 %v102, %v490
  %v492 = vpop.f32.mrf.mxu0
  %v493 = vpop.f32.mrf.mxu0
  %v494 = vadd.f32 %v102, %v493
  %v495 = vpop.f32.mrf.mxu0
  %496 = vmatprep.mubr.bf16.mxu0 %v227
  %497 = vmatmul.mubr.bf16.gmra.mxu0 %v226
  %v498 = vpop.f32.mrf.mxu0
  %v499 = vadd.f32 %v102, %v498
  %v500 = vpop.f32.mrf.mxu0
  %v501 = vpop.f32.mrf.mxu0
  %v502 = vadd.f32 %v102, %v501
  %v503 = vpop.f32.mrf.mxu0
  %504 = vmatprep.mubr.bf16.mxu0 %v229
  %505 = vmatmul.mubr.bf16.gmra.mxu0 %v228
  %v506 = vpop.f32.mrf.mxu0
  %v507 = vadd.f32 %v102, %v506
  %v508 = vpop.f32.mrf.mxu0
  %v509 = vpop.f32.mrf.mxu0
  %v510 = vadd.f32 %v102, %v509
  %v511 = vpop.f32.mrf.mxu0
  %512 = vmatprep.mubr.bf16.mxu0 %v231
  %513 = vmatmul.mubr.bf16.gmra.mxu0 %v230
  %v514 = vpop.f32.mrf.mxu0
  %v515 = vadd.f32 %v102, %v514
  %v516 = vpop.f32.mrf.mxu0
  %v517 = vpop.f32.mrf.mxu0
  %v518 = vadd.f32 %v102, %v517
  %v519 = vpop.f32.mrf.mxu0
  %520 = vdwg.mxu0
  %v521 = vpack.c.bf16 %v398, %v395
  %v522 = vpack.c.bf16 %v406, %v403
  %v523 = vpack.c.bf16 %v414, %v411
  %v524 = vpack.c.bf16 %v422, %v419
  %v525 = vpack.c.bf16 %v430, %v427
  %v526 = vpack.c.bf16 %v438, %v435
  %v527 = vpack.c.bf16 %v446, %v443
  %v528 = vpack.c.bf16 %v454, %v451
  %v529 = vpack.c.bf16 %v462, %v459
  %v530 = vpack.c.bf16 %v470, %v467
  %v531 = vpack.c.bf16 %v478, %v475
  %v532 = vpack.c.bf16 %v486, %v483
  %v533 = vpack.c.bf16 %v494, %v491
  %v534 = vpack.c.bf16 %v502, %v499
  %v535 = vpack.c.bf16 %v510, %v507
  %v536 = vpack.c.bf16 %v518, %v515
  %v537 = vld [vmem:[%s3] sm:$0xff]
  %v538 = vld [vmem:[%s3 + $0x8] sm:$0xff]
  %v539 = vld [vmem:[%s3 + $0x10] sm:$0xff]
  %v540 = vld [vmem:[%s3 + $0x18] sm:$0xff]
  %v541 = vld [vmem:[%s3 + $0x20] sm:$0xff]
  %v542 = vld [vmem:[%s3 + $0x28] sm:$0xff]
  %v543 = vld [vmem:[%s3 + $0x30] sm:$0xff]
  %v544 = vld [vmem:[%s3 + $0x38] sm:$0xff]
  %v545 = vld [vmem:[%s3 + $0x40] sm:$0xff]
  %v546 = vld [vmem:[%s3 + $0x48] sm:$0xff]
  %v547 = vld [vmem:[%s3 + $0x50] sm:$0xff]
  %v548 = vld [vmem:[%s3 + $0x58] sm:$0xff]
  %v549 = vld [vmem:[%s3 + $0x60] sm:$0xff]
  %v550 = vld [vmem:[%s3 + $0x68] sm:$0xff]
  %v551 = vld [vmem:[%s3 + $0x70] sm:$0xff]
  %v552 = vld [vmem:[%s3 + $0x78] sm:$0xff]
  %v553 = vld [vmem:[%s3 + $0x80] sm:$0xff]
  %v554 = vld [vmem:[%s3 + $0x88] sm:$0xff]
  %v555 = vld [vmem:[%s3 + $0x90] sm:$0xff]
  %v556 = vld [vmem:[%s3 + $0x98] sm:$0xff]
  %v557 = vld [vmem:[%s3 + $0xa0] sm:$0xff]
  %v558 = vld [vmem:[%s3 + $0xa8] sm:$0xff]
  %v559 = vld [vmem:[%s3 + $0xb0] sm:$0xff]
  %v560 = vld [vmem:[%s3 + $0xb8] sm:$0xff]
  %v561 = vld [vmem:[%s3 + $0xc0] sm:$0xff]
  %v562 = vld [vmem:[%s3 + $0xc8] sm:$0xff]
  %v563 = vld [vmem:[%s3 + $0xd0] sm:$0xff]
  %v564 = vld [vmem:[%s3 + $0xd8] sm:$0xff]
  %v565 = vld [vmem:[%s3 + $0xe0] sm:$0xff]
  %v566 = vld [vmem:[%s3 + $0xe8] sm:$0xff]
  %v567 = vld [vmem:[%s3 + $0xf0] sm:$0xff]
  %v568 = vld [vmem:[%s3 + $0xf8] sm:$0xff]
  %v569 = vld [vmem:[%s4] sm:$0xf]
  %v571 = vlaneseq
  %v572 = vshrl.u32 %v571, 7
  %v573 = vsub.s32 0, %v572
  %v574 = vrot.slane %v569, %v573
  %v575 = vlaneseq
  %v576 = vshrl.u32 %v575, 7
  %v577 = vsub.s32 1, %v576
  %v578 = vrot.slane %v569, %v577
  %v579 = vlaneseq
  %v580 = vshrl.u32 %v579, 7
  %v581 = vsub.s32 2, %v580
  %v582 = vrot.slane %v569, %v581
  %v583 = vlaneseq
  %v584 = vshrl.u32 %v583, 7
  %v585 = vsub.s32 3, %v584
  %v586 = vrot.slane %v569, %v585
  %v623 = vunpack.c.l.b16 %v537
  %v624 = vunpack.c.h.b16 %v537
  %v625 = vunpack.c.l.b16 %v538
  %v626 = vunpack.c.h.b16 %v538
  %v627 = vunpack.c.l.b16 %v539
  %v628 = vunpack.c.h.b16 %v539
  %v629 = vunpack.c.l.b16 %v540
  %v630 = vunpack.c.h.b16 %v540
  %v631 = vunpack.c.l.b16 %v541
  %v632 = vunpack.c.h.b16 %v541
  %v633 = vunpack.c.l.b16 %v542
  %v634 = vunpack.c.h.b16 %v542
  %v635 = vunpack.c.l.b16 %v543
  %v636 = vunpack.c.h.b16 %v543
  %v637 = vunpack.c.l.b16 %v544
  %v638 = vunpack.c.h.b16 %v544
  %v639 = vunpack.c.l.b16 %v545
  %v640 = vunpack.c.h.b16 %v545
  %v641 = vunpack.c.l.b16 %v546
  %v642 = vunpack.c.h.b16 %v546
  %v643 = vunpack.c.l.b16 %v547
  %v644 = vunpack.c.h.b16 %v547
  %v645 = vunpack.c.l.b16 %v548
  %v646 = vunpack.c.h.b16 %v548
  %v647 = vunpack.c.l.b16 %v549
  %v648 = vunpack.c.h.b16 %v549
  %v649 = vunpack.c.l.b16 %v550
  %v650 = vunpack.c.h.b16 %v550
  %v651 = vunpack.c.l.b16 %v551
  %v652 = vunpack.c.h.b16 %v551
  %v653 = vunpack.c.l.b16 %v552
  %v654 = vunpack.c.h.b16 %v552
  %v655 = vunpack.c.l.b16 %v553
  %v656 = vunpack.c.h.b16 %v553
  %v657 = vunpack.c.l.b16 %v554
  %v658 = vunpack.c.h.b16 %v554
  %v659 = vunpack.c.l.b16 %v555
  %v660 = vunpack.c.h.b16 %v555
  %v661 = vunpack.c.l.b16 %v556
  %v662 = vunpack.c.h.b16 %v556
  %v663 = vunpack.c.l.b16 %v557
  %v664 = vunpack.c.h.b16 %v557
  %v665 = vunpack.c.l.b16 %v558
  %v666 = vunpack.c.h.b16 %v558
  %v667 = vunpack.c.l.b16 %v559
  %v668 = vunpack.c.h.b16 %v559
  %v669 = vunpack.c.l.b16 %v560
  %v670 = vunpack.c.h.b16 %v560
  %v671 = vunpack.c.l.b16 %v561
  %v672 = vunpack.c.h.b16 %v561
  %v673 = vunpack.c.l.b16 %v562
  %v674 = vunpack.c.h.b16 %v562
  %v675 = vunpack.c.l.b16 %v563
  %v676 = vunpack.c.h.b16 %v563
  %v677 = vunpack.c.l.b16 %v564
  %v678 = vunpack.c.h.b16 %v564
  %v679 = vunpack.c.l.b16 %v565
  %v680 = vunpack.c.h.b16 %v565
  %v681 = vunpack.c.l.b16 %v566
  %v682 = vunpack.c.h.b16 %v566
  %v683 = vunpack.c.l.b16 %v567
  %v684 = vunpack.c.h.b16 %v567
  %v685 = vunpack.c.l.b16 %v568
  %v686 = vunpack.c.h.b16 %v568
  %v687 = vpack.c.b16 %v627, %v623
  %v688 = vpack.c.b16 %v628, %v624
  %v689 = vpack.c.b16 %v629, %v625
  %v690 = vpack.c.b16 %v630, %v626
  %v691 = vpack.c.b16 %v635, %v631
  %v692 = vpack.c.b16 %v636, %v632
  %v693 = vpack.c.b16 %v637, %v633
  %v694 = vpack.c.b16 %v638, %v634
  %v695 = vpack.c.b16 %v643, %v639
  %v696 = vpack.c.b16 %v644, %v640
  %v697 = vpack.c.b16 %v645, %v641
  %v698 = vpack.c.b16 %v646, %v642
  %v699 = vpack.c.b16 %v651, %v647
  %v700 = vpack.c.b16 %v652, %v648
  %v701 = vpack.c.b16 %v653, %v649
  %v702 = vpack.c.b16 %v654, %v650
  %v703 = vpack.c.b16 %v659, %v655
  %v704 = vpack.c.b16 %v660, %v656
  %v705 = vpack.c.b16 %v661, %v657
  %v706 = vpack.c.b16 %v662, %v658
  %v707 = vpack.c.b16 %v667, %v663
  %v708 = vpack.c.b16 %v668, %v664
  %v709 = vpack.c.b16 %v669, %v665
  %v710 = vpack.c.b16 %v670, %v666
  %v711 = vpack.c.b16 %v675, %v671
  %v712 = vpack.c.b16 %v676, %v672
  %v713 = vpack.c.b16 %v677, %v673
  %v714 = vpack.c.b16 %v678, %v674
  %v715 = vpack.c.b16 %v683, %v679
  %v716 = vpack.c.b16 %v684, %v680
  %v717 = vpack.c.b16 %v685, %v681
  %v718 = vpack.c.b16 %v686, %v682
  %751 = vmatprep.subr.bf16.mxu0 %v716
  %752 = vmatpush1.bf16.msra.mxu0 %v715
  %753 = vmatprep.subr.bf16.mxu0 %v712
  %754 = vmatpush1.bf16.msra.mxu0 %v711
  %755 = vmatprep.subr.bf16.mxu0 %v708
  %756 = vmatpush1.bf16.msra.mxu0 %v707
  %757 = vmatprep.subr.bf16.mxu0 %v704
  %758 = vmatpush1.bf16.msra.mxu0 %v703
  %759 = vmatprep.subr.bf16.mxu0 %v700
  %760 = vmatpush1.bf16.msra.mxu0 %v699
  %761 = vmatprep.subr.bf16.mxu0 %v696
  %762 = vmatpush1.bf16.msra.mxu0 %v695
  %763 = vmatprep.subr.bf16.mxu0 %v692
  %764 = vmatpush1.bf16.msra.mxu0 %v691
  %765 = vmatprep.subr.bf16.mxu0 %v688
  %766 = vmatpush1.bf16.msra.mxu0 %v687
  %767 = vmatprep.subr.bf16.mxu0 0
  %768 = vmatpush2.bf16.msra.mxu0 0
  %769 = vmatprep.subr.bf16.mxu0 0
  %770 = vmatpush2.bf16.msra.mxu0 0
  %771 = vmatprep.subr.bf16.mxu0 0
  %772 = vmatpush2.bf16.msra.mxu0 0
  %773 = vmatprep.subr.bf16.mxu0 0
  %774 = vmatpush2.bf16.msra.mxu0 0
  %775 = vmatprep.subr.bf16.mxu0 0
  %776 = vmatpush2.bf16.msra.mxu0 0
  %777 = vmatprep.subr.bf16.mxu0 0
  %778 = vmatpush2.bf16.msra.mxu0 0
  %779 = vmatprep.subr.bf16.mxu0 0
  %780 = vmatpush2.bf16.msra.mxu0 0
  %781 = vmatprep.subr.bf16.mxu0 0
  %782 = vmatpush2.bf16.msra.mxu0 0
  %783 = vmatprep.mubr.bf16.mxu0 0
  %784 = vmatmul.mubr.bf16.gmra.mxu0 %v521
  %v785 = vpop.f32.mrf.mxu0
  %v786 = vadd.f32 %v574, %v785
  %v787 = vpop.f32.mrf.mxu0
  %v788 = vadd.f32 %v578, %v787
  %v789 = vpop.f32.mrf.mxu0
  %v790 = vadd.f32 %v574, %v789
  %v791 = vpop.f32.mrf.mxu0
  %v792 = vadd.f32 %v578, %v791
  %793 = vmatprep.mubr.bf16.mxu0 0
  %794 = vmatmul.mubr.bf16.gmra.mxu0 %v522
  %v795 = vpop.f32.mrf.mxu0
  %v796 = vadd.f32 %v574, %v795
  %v797 = vpop.f32.mrf.mxu0
  %v798 = vadd.f32 %v578, %v797
  %v799 = vpop.f32.mrf.mxu0
  %v800 = vadd.f32 %v574, %v799
  %v801 = vpop.f32.mrf.mxu0
  %v802 = vadd.f32 %v578, %v801
  %803 = vmatprep.mubr.bf16.mxu0 0
  %804 = vmatmul.mubr.bf16.gmra.mxu0 %v523
  %v805 = vpop.f32.mrf.mxu0
  %v806 = vadd.f32 %v574, %v805
  %v807 = vpop.f32.mrf.mxu0
  %v808 = vadd.f32 %v578, %v807
  %v809 = vpop.f32.mrf.mxu0
  %v810 = vadd.f32 %v574, %v809
  %v811 = vpop.f32.mrf.mxu0
  %v812 = vadd.f32 %v578, %v811
  %813 = vmatprep.mubr.bf16.mxu0 0
  %814 = vmatmul.mubr.bf16.gmra.mxu0 %v524
  %v815 = vpop.f32.mrf.mxu0
  %v816 = vadd.f32 %v574, %v815
  %v817 = vpop.f32.mrf.mxu0
  %v818 = vadd.f32 %v578, %v817
  %v819 = vpop.f32.mrf.mxu0
  %v820 = vadd.f32 %v574, %v819
  %v821 = vpop.f32.mrf.mxu0
  %v822 = vadd.f32 %v578, %v821
  %823 = vmatprep.mubr.bf16.mxu0 0
  %824 = vmatmul.mubr.bf16.gmra.mxu0 %v525
  %v825 = vpop.f32.mrf.mxu0
  %v826 = vadd.f32 %v574, %v825
  %v827 = vpop.f32.mrf.mxu0
  %v828 = vadd.f32 %v578, %v827
  %v829 = vpop.f32.mrf.mxu0
  %v830 = vadd.f32 %v574, %v829
  %v831 = vpop.f32.mrf.mxu0
  %v832 = vadd.f32 %v578, %v831
  %833 = vmatprep.mubr.bf16.mxu0 0
  %834 = vmatmul.mubr.bf16.gmra.mxu0 %v526
  %v835 = vpop.f32.mrf.mxu0
  %v836 = vadd.f32 %v574, %v835
  %v837 = vpop.f32.mrf.mxu0
  %v838 = vadd.f32 %v578, %v837
  %v839 = vpop.f32.mrf.mxu0
  %v840 = vadd.f32 %v574, %v839
  %v841 = vpop.f32.mrf.mxu0
  %v842 = vadd.f32 %v578, %v841
  %843 = vmatprep.mubr.bf16.mxu0 0
  %844 = vmatmul.mubr.bf16.gmra.mxu0 %v527
  %v845 = vpop.f32.mrf.mxu0
  %v846 = vadd.f32 %v574, %v845
  %v847 = vpop.f32.mrf.mxu0
  %v848 = vadd.f32 %v578, %v847
  %v849 = vpop.f32.mrf.mxu0
  %v850 = vadd.f32 %v574, %v849
  %v851 = vpop.f32.mrf.mxu0
  %v852 = vadd.f32 %v578, %v851
  %853 = vmatprep.mubr.bf16.mxu0 0
  %854 = vmatmul.mubr.bf16.gmra.mxu0 %v528
  %v855 = vpop.f32.mrf.mxu0
  %v856 = vadd.f32 %v574, %v855
  %v857 = vpop.f32.mrf.mxu0
  %v858 = vadd.f32 %v578, %v857
  %v859 = vpop.f32.mrf.mxu0
  %v860 = vadd.f32 %v574, %v859
  %v861 = vpop.f32.mrf.mxu0
  %v862 = vadd.f32 %v578, %v861
  %863 = vmatprep.mubr.bf16.mxu0 0
  %864 = vmatmul.mubr.bf16.gmra.mxu0 %v529
  %v865 = vpop.f32.mrf.mxu0
  %v866 = vadd.f32 %v574, %v865
  %v867 = vpop.f32.mrf.mxu0
  %v868 = vadd.f32 %v578, %v867
  %v869 = vpop.f32.mrf.mxu0
  %v870 = vadd.f32 %v574, %v869
  %v871 = vpop.f32.mrf.mxu0
  %v872 = vadd.f32 %v578, %v871
  %873 = vmatprep.mubr.bf16.mxu0 0
  %874 = vmatmul.mubr.bf16.gmra.mxu0 %v530
  %v875 = vpop.f32.mrf.mxu0
  %v876 = vadd.f32 %v574, %v875
  %v877 = vpop.f32.mrf.mxu0
  %v878 = vadd.f32 %v578, %v877
  %v879 = vpop.f32.mrf.mxu0
  %v880 = vadd.f32 %v574, %v879
  %v881 = vpop.f32.mrf.mxu0
  %v882 = vadd.f32 %v578, %v881
  %883 = vmatprep.mubr.bf16.mxu0 0
  %884 = vmatmul.mubr.bf16.gmra.mxu0 %v531
  %v885 = vpop.f32.mrf.mxu0
  %v886 = vadd.f32 %v574, %v885
  %v887 = vpop.f32.mrf.mxu0
  %v888 = vadd.f32 %v578, %v887
  %v889 = vpop.f32.mrf.mxu0
  %v890 = vadd.f32 %v574, %v889
  %v891 = vpop.f32.mrf.mxu0
  %v892 = vadd.f32 %v578, %v891
  %893 = vmatprep.mubr.bf16.mxu0 0
  %894 = vmatmul.mubr.bf16.gmra.mxu0 %v532
  %v895 = vpop.f32.mrf.mxu0
  %v896 = vadd.f32 %v574, %v895
  %v897 = vpop.f32.mrf.mxu0
  %v898 = vadd.f32 %v578, %v897
  %v899 = vpop.f32.mrf.mxu0
  %v900 = vadd.f32 %v574, %v899
  %v901 = vpop.f32.mrf.mxu0
  %v902 = vadd.f32 %v578, %v901
  %903 = vmatprep.mubr.bf16.mxu0 0
  %904 = vmatmul.mubr.bf16.gmra.mxu0 %v533
  %v905 = vpop.f32.mrf.mxu0
  %v906 = vadd.f32 %v574, %v905
  %v907 = vpop.f32.mrf.mxu0
  %v908 = vadd.f32 %v578, %v907
  %v909 = vpop.f32.mrf.mxu0
  %v910 = vadd.f32 %v574, %v909
  %v911 = vpop.f32.mrf.mxu0
  %v912 = vadd.f32 %v578, %v911
  %913 = vmatprep.mubr.bf16.mxu0 0
  %914 = vmatmul.mubr.bf16.gmra.mxu0 %v534
  %v915 = vpop.f32.mrf.mxu0
  %v916 = vadd.f32 %v574, %v915
  %v917 = vpop.f32.mrf.mxu0
  %v918 = vadd.f32 %v578, %v917
  %v919 = vpop.f32.mrf.mxu0
  %v920 = vadd.f32 %v574, %v919
  %v921 = vpop.f32.mrf.mxu0
  %v922 = vadd.f32 %v578, %v921
  %923 = vmatprep.mubr.bf16.mxu0 0
  %924 = vmatmul.mubr.bf16.gmra.mxu0 %v535
  %v925 = vpop.f32.mrf.mxu0
  %v926 = vadd.f32 %v574, %v925
  %v927 = vpop.f32.mrf.mxu0
  %v928 = vadd.f32 %v578, %v927
  %v929 = vpop.f32.mrf.mxu0
  %v930 = vadd.f32 %v574, %v929
  %v931 = vpop.f32.mrf.mxu0
  %v932 = vadd.f32 %v578, %v931
  %933 = vmatprep.mubr.bf16.mxu0 0
  %934 = vmatmul.mubr.bf16.gmra.mxu0 %v536
  %v935 = vpop.f32.mrf.mxu0
  %v936 = vadd.f32 %v574, %v935
  %v937 = vpop.f32.mrf.mxu0
  %v938 = vadd.f32 %v578, %v937
  %v939 = vpop.f32.mrf.mxu0
  %v940 = vadd.f32 %v574, %v939
  %v941 = vpop.f32.mrf.mxu0
  %v942 = vadd.f32 %v578, %v941
  %943 = vdwg.mxu0
  %944 = vmatprep.subr.bf16.mxu0 %v718
  %945 = vmatpush1.bf16.msra.mxu0 %v717
  %946 = vmatprep.subr.bf16.mxu0 %v714
  %947 = vmatpush1.bf16.msra.mxu0 %v713
  %948 = vmatprep.subr.bf16.mxu0 %v710
  %949 = vmatpush1.bf16.msra.mxu0 %v709
  %950 = vmatprep.subr.bf16.mxu0 %v706
  %951 = vmatpush1.bf16.msra.mxu0 %v705
  %952 = vmatprep.subr.bf16.mxu0 %v702
  %953 = vmatpush1.bf16.msra.mxu0 %v701
  %954 = vmatprep.subr.bf16.mxu0 %v698
  %955 = vmatpush1.bf16.msra.mxu0 %v697
  %956 = vmatprep.subr.bf16.mxu0 %v694
  %957 = vmatpush1.bf16.msra.mxu0 %v693
  %958 = vmatprep.subr.bf16.mxu0 %v690
  %959 = vmatpush1.bf16.msra.mxu0 %v689
  %960 = vmatprep.subr.bf16.mxu0 0
  %961 = vmatpush2.bf16.msra.mxu0 0
  %962 = vmatprep.subr.bf16.mxu0 0
  %963 = vmatpush2.bf16.msra.mxu0 0
  %964 = vmatprep.subr.bf16.mxu0 0
  %965 = vmatpush2.bf16.msra.mxu0 0
  %966 = vmatprep.subr.bf16.mxu0 0
  %967 = vmatpush2.bf16.msra.mxu0 0
  %968 = vmatprep.subr.bf16.mxu0 0
  %969 = vmatpush2.bf16.msra.mxu0 0
  %970 = vmatprep.subr.bf16.mxu0 0
  %971 = vmatpush2.bf16.msra.mxu0 0
  %972 = vmatprep.subr.bf16.mxu0 0
  %973 = vmatpush2.bf16.msra.mxu0 0
  %974 = vmatprep.subr.bf16.mxu0 0
  %975 = vmatpush2.bf16.msra.mxu0 0
  %976 = vmatprep.mubr.bf16.mxu0 0
  %977 = vmatmul.mubr.bf16.gmra.mxu0 %v521
  %v978 = vpop.f32.mrf.mxu0
  %v979 = vadd.f32 %v582, %v978
  %v980 = vpop.f32.mrf.mxu0
  %v981 = vadd.f32 %v586, %v980
  %v982 = vpop.f32.mrf.mxu0
  %v983 = vadd.f32 %v582, %v982
  %v984 = vpop.f32.mrf.mxu0
  %v985 = vadd.f32 %v586, %v984
  %986 = vmatprep.mubr.bf16.mxu0 0
  %987 = vmatmul.mubr.bf16.gmra.mxu0 %v522
  %v988 = vpop.f32.mrf.mxu0
  %v989 = vadd.f32 %v582, %v988
  %v990 = vpop.f32.mrf.mxu0
  %v991 = vadd.f32 %v586, %v990
  %v992 = vpop.f32.mrf.mxu0
  %v993 = vadd.f32 %v582, %v992
  %v994 = vpop.f32.mrf.mxu0
  %v995 = vadd.f32 %v586, %v994
  %996 = vmatprep.mubr.bf16.mxu0 0
  %997 = vmatmul.mubr.bf16.gmra.mxu0 %v523
  %v998 = vpop.f32.mrf.mxu0
  %v999 = vadd.f32 %v582, %v998
  %v1000 = vpop.f32.mrf.mxu0
  %v1001 = vadd.f32 %v586, %v1000
  %v1002 = vpop.f32.mrf.mxu0
  %v1003 = vadd.f32 %v582, %v1002
  %v1004 = vpop.f32.mrf.mxu0
  %v1005 = vadd.f32 %v586, %v1004
  %1006 = vmatprep.mubr.bf16.mxu0 0
  %1007 = vmatmul.mubr.bf16.gmra.mxu0 %v524
  %v1008 = vpop.f32.mrf.mxu0
  %v1009 = vadd.f32 %v582, %v1008
  %v1010 = vpop.f32.mrf.mxu0
  %v1011 = vadd.f32 %v586, %v1010
  %v1012 = vpop.f32.mrf.mxu0
  %v1013 = vadd.f32 %v582, %v1012
  %v1014 = vpop.f32.mrf.mxu0
  %v1015 = vadd.f32 %v586, %v1014
  %1016 = vmatprep.mubr.bf16.mxu0 0
  %1017 = vmatmul.mubr.bf16.gmra.mxu0 %v525
  %v1018 = vpop.f32.mrf.mxu0
  %v1019 = vadd.f32 %v582, %v1018
  %v1020 = vpop.f32.mrf.mxu0
  %v1021 = vadd.f32 %v586, %v1020
  %v1022 = vpop.f32.mrf.mxu0
  %v1023 = vadd.f32 %v582, %v1022
  %v1024 = vpop.f32.mrf.mxu0
  %v1025 = vadd.f32 %v586, %v1024
  %1026 = vmatprep.mubr.bf16.mxu0 0
  %1027 = vmatmul.mubr.bf16.gmra.mxu0 %v526
  %v1028 = vpop.f32.mrf.mxu0
  %v1029 = vadd.f32 %v582, %v1028
  %v1030 = vpop.f32.mrf.mxu0
  %v1031 = vadd.f32 %v586, %v1030
  %v1032 = vpop.f32.mrf.mxu0
  %v1033 = vadd.f32 %v582, %v1032
  %v1034 = vpop.f32.mrf.mxu0
  %v1035 = vadd.f32 %v586, %v1034
  %1036 = vmatprep.mubr.bf16.mxu0 0
  %1037 = vmatmul.mubr.bf16.gmra.mxu0 %v527
  %v1038 = vpop.f32.mrf.mxu0
  %v1039 = vadd.f32 %v582, %v1038
  %v1040 = vpop.f32.mrf.mxu0
  %v1041 = vadd.f32 %v586, %v1040
  %v1042 = vpop.f32.mrf.mxu0
  %v1043 = vadd.f32 %v582, %v1042
  %v1044 = vpop.f32.mrf.mxu0
  %v1045 = vadd.f32 %v586, %v1044
  %1046 = vmatprep.mubr.bf16.mxu0 0
  %1047 = vmatmul.mubr.bf16.gmra.mxu0 %v528
  %v1048 = vpop.f32.mrf.mxu0
  %v1049 = vadd.f32 %v582, %v1048
  %v1050 = vpop.f32.mrf.mxu0
  %v1051 = vadd.f32 %v586, %v1050
  %v1052 = vpop.f32.mrf.mxu0
  %v1053 = vadd.f32 %v582, %v1052
  %v1054 = vpop.f32.mrf.mxu0
  %v1055 = vadd.f32 %v586, %v1054
  %1056 = vmatprep.mubr.bf16.mxu0 0
  %1057 = vmatmul.mubr.bf16.gmra.mxu0 %v529
  %v1058 = vpop.f32.mrf.mxu0
  %v1059 = vadd.f32 %v582, %v1058
  %v1060 = vpop.f32.mrf.mxu0
  %v1061 = vadd.f32 %v586, %v1060
  %v1062 = vpop.f32.mrf.mxu0
  %v1063 = vadd.f32 %v582, %v1062
  %v1064 = vpop.f32.mrf.mxu0
  %v1065 = vadd.f32 %v586, %v1064
  %1066 = vmatprep.mubr.bf16.mxu0 0
  %1067 = vmatmul.mubr.bf16.gmra.mxu0 %v530
  %v1068 = vpop.f32.mrf.mxu0
  %v1069 = vadd.f32 %v582, %v1068
  %v1070 = vpop.f32.mrf.mxu0
  %v1071 = vadd.f32 %v586, %v1070
  %v1072 = vpop.f32.mrf.mxu0
  %v1073 = vadd.f32 %v582, %v1072
  %v1074 = vpop.f32.mrf.mxu0
  %v1075 = vadd.f32 %v586, %v1074
  %1076 = vmatprep.mubr.bf16.mxu0 0
  %1077 = vmatmul.mubr.bf16.gmra.mxu0 %v531
  %v1078 = vpop.f32.mrf.mxu0
  %v1079 = vadd.f32 %v582, %v1078
  %v1080 = vpop.f32.mrf.mxu0
  %v1081 = vadd.f32 %v586, %v1080
  %v1082 = vpop.f32.mrf.mxu0
  %v1083 = vadd.f32 %v582, %v1082
  %v1084 = vpop.f32.mrf.mxu0
  %v1085 = vadd.f32 %v586, %v1084
  %1086 = vmatprep.mubr.bf16.mxu0 0
  %1087 = vmatmul.mubr.bf16.gmra.mxu0 %v532
  %v1088 = vpop.f32.mrf.mxu0
  %v1089 = vadd.f32 %v582, %v1088
  %v1090 = vpop.f32.mrf.mxu0
  %v1091 = vadd.f32 %v586, %v1090
  %v1092 = vpop.f32.mrf.mxu0
  %v1093 = vadd.f32 %v582, %v1092
  %v1094 = vpop.f32.mrf.mxu0
  %v1095 = vadd.f32 %v586, %v1094
  %1096 = vmatprep.mubr.bf16.mxu0 0
  %1097 = vmatmul.mubr.bf16.gmra.mxu0 %v533
  %v1098 = vpop.f32.mrf.mxu0
  %v1099 = vadd.f32 %v582, %v1098
  %v1100 = vpop.f32.mrf.mxu0
  %v1101 = vadd.f32 %v586, %v1100
  %v1102 = vpop.f32.mrf.mxu0
  %v1103 = vadd.f32 %v582, %v1102
  %v1104 = vpop.f32.mrf.mxu0
  %v1105 = vadd.f32 %v586, %v1104
  %1106 = vmatprep.mubr.bf16.mxu0 0
  %1107 = vmatmul.mubr.bf16.gmra.mxu0 %v534
  %v1108 = vpop.f32.mrf.mxu0
  %v1109 = vadd.f32 %v582, %v1108
  %v1110 = vpop.f32.mrf.mxu0
  %v1111 = vadd.f32 %v586, %v1110
  %v1112 = vpop.f32.mrf.mxu0
  %v1113 = vadd.f32 %v582, %v1112
  %v1114 = vpop.f32.mrf.mxu0
  %v1115 = vadd.f32 %v586, %v1114
  %1116 = vmatprep.mubr.bf16.mxu0 0
  %1117 = vmatmul.mubr.bf16.gmra.mxu0 %v535
  %v1118 = vpop.f32.mrf.mxu0
  %v1119 = vadd.f32 %v582, %v1118
  %v1120 = vpop.f32.mrf.mxu0
  %v1121 = vadd.f32 %v586, %v1120
  %v1122 = vpop.f32.mrf.mxu0
  %v1123 = vadd.f32 %v582, %v1122
  %v1124 = vpop.f32.mrf.mxu0
  %v1125 = vadd.f32 %v586, %v1124
  %1126 = vmatprep.mubr.bf16.mxu0 0
  %1127 = vmatmul.mubr.bf16.gmra.mxu0 %v536
  %v1128 = vpop.f32.mrf.mxu0
  %v1129 = vadd.f32 %v582, %v1128
  %v1130 = vpop.f32.mrf.mxu0
  %v1131 = vadd.f32 %v586, %v1130
  %v1132 = vpop.f32.mrf.mxu0
  %v1133 = vadd.f32 %v582, %v1132
  %v1134 = vpop.f32.mrf.mxu0
  %v1135 = vadd.f32 %v586, %v1134
  %1136 = vdwg.mxu0
  %v1137 = vmax.f32 %v786, 0.0
  %v1138 = vmax.f32 %v788, 0.0
  %v1139 = vmax.f32 %v979, 0.0
  %v1140 = vmax.f32 %v981, 0.0
  %v1141 = vmax.f32 %v790, 0.0
  %v1142 = vmax.f32 %v792, 0.0
  %v1143 = vmax.f32 %v983, 0.0
  %v1144 = vmax.f32 %v985, 0.0
  %v1145 = vmax.f32 %v796, 0.0
  %v1146 = vmax.f32 %v798, 0.0
  %v1147 = vmax.f32 %v989, 0.0
  %v1148 = vmax.f32 %v991, 0.0
  %v1149 = vmax.f32 %v800, 0.0
  %v1150 = vmax.f32 %v802, 0.0
  %v1151 = vmax.f32 %v993, 0.0
  %v1152 = vmax.f32 %v995, 0.0
  %v1153 = vmax.f32 %v806, 0.0
  %v1154 = vmax.f32 %v808, 0.0
  %v1155 = vmax.f32 %v999, 0.0
  %v1156 = vmax.f32 %v1001, 0.0
  %v1157 = vmax.f32 %v810, 0.0
  %v1158 = vmax.f32 %v812, 0.0
  %v1159 = vmax.f32 %v1003, 0.0
  %v1160 = vmax.f32 %v1005, 0.0
  %v1161 = vmax.f32 %v816, 0.0
  %v1162 = vmax.f32 %v818, 0.0
  %v1163 = vmax.f32 %v1009, 0.0
  %v1164 = vmax.f32 %v1011, 0.0
  %v1165 = vmax.f32 %v820, 0.0
  %v1166 = vmax.f32 %v822, 0.0
  %v1167 = vmax.f32 %v1013, 0.0
  %v1168 = vmax.f32 %v1015, 0.0
  %v1169 = vmax.f32 %v826, 0.0
  %v1170 = vmax.f32 %v828, 0.0
  %v1171 = vmax.f32 %v1019, 0.0
  %v1172 = vmax.f32 %v1021, 0.0
  %v1173 = vmax.f32 %v830, 0.0
  %v1174 = vmax.f32 %v832, 0.0
  %v1175 = vmax.f32 %v1023, 0.0
  %v1176 = vmax.f32 %v1025, 0.0
  %v1177 = vmax.f32 %v836, 0.0
  %v1178 = vmax.f32 %v838, 0.0
  %v1179 = vmax.f32 %v1029, 0.0
  %v1180 = vmax.f32 %v1031, 0.0
  %v1181 = vmax.f32 %v840, 0.0
  %v1182 = vmax.f32 %v842, 0.0
  %v1183 = vmax.f32 %v1033, 0.0
  %v1184 = vmax.f32 %v1035, 0.0
  %v1185 = vmax.f32 %v846, 0.0
  %v1186 = vmax.f32 %v848, 0.0
  %v1187 = vmax.f32 %v1039, 0.0
  %v1188 = vmax.f32 %v1041, 0.0
  %v1189 = vmax.f32 %v850, 0.0
  %v1190 = vmax.f32 %v852, 0.0
  %v1191 = vmax.f32 %v1043, 0.0
  %v1192 = vmax.f32 %v1045, 0.0
  %v1193 = vmax.f32 %v856, 0.0
  %v1194 = vmax.f32 %v858, 0.0
  %v1195 = vmax.f32 %v1049, 0.0
  %v1196 = vmax.f32 %v1051, 0.0
  %v1197 = vmax.f32 %v860, 0.0
  %v1198 = vmax.f32 %v862, 0.0
  %v1199 = vmax.f32 %v1053, 0.0
  %v1200 = vmax.f32 %v1055, 0.0
  %v1201 = vmax.f32 %v866, 0.0
  %v1202 = vmax.f32 %v868, 0.0
  %v1203 = vmax.f32 %v1059, 0.0
  %v1204 = vmax.f32 %v1061, 0.0
  %v1205 = vmax.f32 %v870, 0.0
  %v1206 = vmax.f32 %v872, 0.0
  %v1207 = vmax.f32 %v1063, 0.0
  %v1208 = vmax.f32 %v1065, 0.0
  %v1209 = vmax.f32 %v876, 0.0
  %v1210 = vmax.f32 %v878, 0.0
  %v1211 = vmax.f32 %v1069, 0.0
  %v1212 = vmax.f32 %v1071, 0.0
  %v1213 = vmax.f32 %v880, 0.0
  %v1214 = vmax.f32 %v882, 0.0
  %v1215 = vmax.f32 %v1073, 0.0
  %v1216 = vmax.f32 %v1075, 0.0
  %v1217 = vmax.f32 %v886, 0.0
  %v1218 = vmax.f32 %v888, 0.0
  %v1219 = vmax.f32 %v1079, 0.0
  %v1220 = vmax.f32 %v1081, 0.0
  %v1221 = vmax.f32 %v890, 0.0
  %v1222 = vmax.f32 %v892, 0.0
  %v1223 = vmax.f32 %v1083, 0.0
  %v1224 = vmax.f32 %v1085, 0.0
  %v1225 = vmax.f32 %v896, 0.0
  %v1226 = vmax.f32 %v898, 0.0
  %v1227 = vmax.f32 %v1089, 0.0
  %v1228 = vmax.f32 %v1091, 0.0
  %v1229 = vmax.f32 %v900, 0.0
  %v1230 = vmax.f32 %v902, 0.0
  %v1231 = vmax.f32 %v1093, 0.0
  %v1232 = vmax.f32 %v1095, 0.0
  %v1233 = vmax.f32 %v906, 0.0
  %v1234 = vmax.f32 %v908, 0.0
  %v1235 = vmax.f32 %v1099, 0.0
  %v1236 = vmax.f32 %v1101, 0.0
  %v1237 = vmax.f32 %v910, 0.0
  %v1238 = vmax.f32 %v912, 0.0
  %v1239 = vmax.f32 %v1103, 0.0
  %v1240 = vmax.f32 %v1105, 0.0
  %v1241 = vmax.f32 %v916, 0.0
  %v1242 = vmax.f32 %v918, 0.0
  %v1243 = vmax.f32 %v1109, 0.0
  %v1244 = vmax.f32 %v1111, 0.0
  %v1245 = vmax.f32 %v920, 0.0
  %v1246 = vmax.f32 %v922, 0.0
  %v1247 = vmax.f32 %v1113, 0.0
  %v1248 = vmax.f32 %v1115, 0.0
  %v1249 = vmax.f32 %v926, 0.0
  %v1250 = vmax.f32 %v928, 0.0
  %v1251 = vmax.f32 %v1119, 0.0
  %v1252 = vmax.f32 %v1121, 0.0
  %v1253 = vmax.f32 %v930, 0.0
  %v1254 = vmax.f32 %v932, 0.0
  %v1255 = vmax.f32 %v1123, 0.0
  %v1256 = vmax.f32 %v1125, 0.0
  %v1257 = vmax.f32 %v936, 0.0
  %v1258 = vmax.f32 %v938, 0.0
  %v1259 = vmax.f32 %v1129, 0.0
  %v1260 = vmax.f32 %v1131, 0.0
  %v1261 = vmax.f32 %v940, 0.0
  %v1262 = vmax.f32 %v942, 0.0
  %v1263 = vmax.f32 %v1133, 0.0
  %v1264 = vmax.f32 %v1135, 0.0
  %v1265 = vpack.c.bf16 %v1141, %v1137
  %v1266 = vpack.c.bf16 %v1142, %v1138
  %v1267 = vpack.c.bf16 %v1143, %v1139
  %v1268 = vpack.c.bf16 %v1144, %v1140
  %v1269 = vpack.c.bf16 %v1149, %v1145
  %v1270 = vpack.c.bf16 %v1150, %v1146
  %v1271 = vpack.c.bf16 %v1151, %v1147
  %v1272 = vpack.c.bf16 %v1152, %v1148
  %v1273 = vpack.c.bf16 %v1157, %v1153
  %v1274 = vpack.c.bf16 %v1158, %v1154
  %v1275 = vpack.c.bf16 %v1159, %v1155
  %v1276 = vpack.c.bf16 %v1160, %v1156
  %v1277 = vpack.c.bf16 %v1165, %v1161
  %v1278 = vpack.c.bf16 %v1166, %v1162
  %v1279 = vpack.c.bf16 %v1167, %v1163
  %v1280 = vpack.c.bf16 %v1168, %v1164
  %v1281 = vpack.c.bf16 %v1173, %v1169
  %v1282 = vpack.c.bf16 %v1174, %v1170
  %v1283 = vpack.c.bf16 %v1175, %v1171
  %v1284 = vpack.c.bf16 %v1176, %v1172
  %v1285 = vpack.c.bf16 %v1181, %v1177
  %v1286 = vpack.c.bf16 %v1182, %v1178
  %v1287 = vpack.c.bf16 %v1183, %v1179
  %v1288 = vpack.c.bf16 %v1184, %v1180
  %v1289 = vpack.c.bf16 %v1189, %v1185
  %v1290 = vpack.c.bf16 %v1190, %v1186
  %v1291 = vpack.c.bf16 %v1191, %v1187
  %v1292 = vpack.c.bf16 %v1192, %v1188
  %v1293 = vpack.c.bf16 %v1197, %v1193
  %v1294 = vpack.c.bf16 %v1198, %v1194
  %v1295 = vpack.c.bf16 %v1199, %v1195
  %v1296 = vpack.c.bf16 %v1200, %v1196
  %v1297 = vpack.c.bf16 %v1205, %v1201
  %v1298 = vpack.c.bf16 %v1206, %v1202
  %v1299 = vpack.c.bf16 %v1207, %v1203
  %v1300 = vpack.c.bf16 %v1208, %v1204
  %v1301 = vpack.c.bf16 %v1213, %v1209
  %v1302 = vpack.c.bf16 %v1214, %v1210
  %v1303 = vpack.c.bf16 %v1215, %v1211
  %v1304 = vpack.c.bf16 %v1216, %v1212
  %v1305 = vpack.c.bf16 %v1221, %v1217
  %v1306 = vpack.c.bf16 %v1222, %v1218
  %v1307 = vpack.c.bf16 %v1223, %v1219
  %v1308 = vpack.c.bf16 %v1224, %v1220
  %v1309 = vpack.c.bf16 %v1229, %v1225
  %v1310 = vpack.c.bf16 %v1230, %v1226
  %v1311 = vpack.c.bf16 %v1231, %v1227
  %v1312 = vpack.c.bf16 %v1232, %v1228
  %v1313 = vpack.c.bf16 %v1237, %v1233
  %v1314 = vpack.c.bf16 %v1238, %v1234
  %v1315 = vpack.c.bf16 %v1239, %v1235
  %v1316 = vpack.c.bf16 %v1240, %v1236
  %v1317 = vpack.c.bf16 %v1245, %v1241
  %v1318 = vpack.c.bf16 %v1246, %v1242
  %v1319 = vpack.c.bf16 %v1247, %v1243
  %v1320 = vpack.c.bf16 %v1248, %v1244
  %v1321 = vpack.c.bf16 %v1253, %v1249
  %v1322 = vpack.c.bf16 %v1254, %v1250
  %v1323 = vpack.c.bf16 %v1255, %v1251
  %v1324 = vpack.c.bf16 %v1256, %v1252
  %v1325 = vpack.c.bf16 %v1261, %v1257
  %v1326 = vpack.c.bf16 %v1262, %v1258
  %v1327 = vpack.c.bf16 %v1263, %v1259
  %v1328 = vpack.c.bf16 %v1264, %v1260
  %v1329 = vld [vmem:[%s5] sm:$0xf]
  %v1330 = vld [vmem:[%s5 + $0x4] sm:$0xf]
  %v1331 = vld [vmem:[%s5 + $0x8] sm:$0xf]
  %v1332 = vld [vmem:[%s5 + $0xc] sm:$0xf]
  %v1333 = vld [vmem:[%s5 + $0x10] sm:$0xf]
  %v1334 = vld [vmem:[%s5 + $0x14] sm:$0xf]
  %v1335 = vld [vmem:[%s5 + $0x18] sm:$0xf]
  %v1336 = vld [vmem:[%s5 + $0x1c] sm:$0xf]
  %v1337 = vld [vmem:[%s5 + $0x20] sm:$0xf]
  %v1338 = vld [vmem:[%s5 + $0x24] sm:$0xf]
  %v1339 = vld [vmem:[%s5 + $0x28] sm:$0xf]
  %v1340 = vld [vmem:[%s5 + $0x2c] sm:$0xf]
  %v1341 = vld [vmem:[%s5 + $0x30] sm:$0xf]
  %v1342 = vld [vmem:[%s5 + $0x34] sm:$0xf]
  %v1343 = vld [vmem:[%s5 + $0x38] sm:$0xf]
  %v1344 = vld [vmem:[%s5 + $0x3c] sm:$0xf]
  %v1345 = vld [vmem:[%s5 + $0x40] sm:$0xf]
  %v1346 = vld [vmem:[%s5 + $0x44] sm:$0xf]
  %v1347 = vld [vmem:[%s5 + $0x48] sm:$0xf]
  %v1348 = vld [vmem:[%s5 + $0x4c] sm:$0xf]
  %v1349 = vld [vmem:[%s5 + $0x50] sm:$0xf]
  %v1350 = vld [vmem:[%s5 + $0x54] sm:$0xf]
  %v1351 = vld [vmem:[%s5 + $0x58] sm:$0xf]
  %v1352 = vld [vmem:[%s5 + $0x5c] sm:$0xf]
  %v1353 = vld [vmem:[%s5 + $0x60] sm:$0xf]
  %v1354 = vld [vmem:[%s5 + $0x64] sm:$0xf]
  %v1355 = vld [vmem:[%s5 + $0x68] sm:$0xf]
  %v1356 = vld [vmem:[%s5 + $0x6c] sm:$0xf]
  %v1357 = vld [vmem:[%s5 + $0x70] sm:$0xf]
  %v1358 = vld [vmem:[%s5 + $0x74] sm:$0xf]
  %v1359 = vld [vmem:[%s5 + $0x78] sm:$0xf]
  %v1360 = vld [vmem:[%s5 + $0x7c] sm:$0xf]
  %v1361 = vld [vmem:[%s5 + $0x80] sm:$0xf]
  %v1362 = vld [vmem:[%s5 + $0x84] sm:$0xf]
  %v1363 = vld [vmem:[%s5 + $0x88] sm:$0xf]
  %v1364 = vld [vmem:[%s5 + $0x8c] sm:$0xf]
  %v1365 = vld [vmem:[%s5 + $0x90] sm:$0xf]
  %v1366 = vld [vmem:[%s5 + $0x94] sm:$0xf]
  %v1367 = vld [vmem:[%s5 + $0x98] sm:$0xf]
  %v1368 = vld [vmem:[%s5 + $0x9c] sm:$0xf]
  %v1369 = vld [vmem:[%s5 + $0xa0] sm:$0xf]
  %v1370 = vld [vmem:[%s5 + $0xa4] sm:$0xf]
  %v1371 = vld [vmem:[%s5 + $0xa8] sm:$0xf]
  %v1372 = vld [vmem:[%s5 + $0xac] sm:$0xf]
  %v1373 = vld [vmem:[%s5 + $0xb0] sm:$0xf]
  %v1374 = vld [vmem:[%s5 + $0xb4] sm:$0xf]
  %v1375 = vld [vmem:[%s5 + $0xb8] sm:$0xf]
  %v1376 = vld [vmem:[%s5 + $0xbc] sm:$0xf]
  %v1377 = vld [vmem:[%s5 + $0xc0] sm:$0xf]
  %v1378 = vld [vmem:[%s5 + $0xc4] sm:$0xf]
  %v1379 = vld [vmem:[%s5 + $0xc8] sm:$0xf]
  %v1380 = vld [vmem:[%s5 + $0xcc] sm:$0xf]
  %v1381 = vld [vmem:[%s5 + $0xd0] sm:$0xf]
  %v1382 = vld [vmem:[%s5 + $0xd4] sm:$0xf]
  %v1383 = vld [vmem:[%s5 + $0xd8] sm:$0xf]
  %v1384 = vld [vmem:[%s5 + $0xdc] sm:$0xf]
  %v1385 = vld [vmem:[%s5 + $0xe0] sm:$0xf]
  %v1386 = vld [vmem:[%s5 + $0xe4] sm:$0xf]
  %v1387 = vld [vmem:[%s5 + $0xe8] sm:$0xf]
  %v1388 = vld [vmem:[%s5 + $0xec] sm:$0xf]
  %v1389 = vld [vmem:[%s5 + $0xf0] sm:$0xf]
  %v1390 = vld [vmem:[%s5 + $0xf4] sm:$0xf]
  %v1391 = vld [vmem:[%s5 + $0xf8] sm:$0xf]
  %v1392 = vld [vmem:[%s5 + $0xfc] sm:$0xf]
  %v1393 = vld [vmem:[%s6] sm:$0x1]
  %v1395 = vlaneseq
  %v1396 = vshrl.u32 %v1395, 7
  %v1397 = vsub.s32 0, %v1396
  %v1398 = vrot.slane %v1393, %v1397
  %v1464 = vunpack.c.l.b16 %v1329
  %v1465 = vunpack.c.l.b16 %v1330
  %v1466 = vunpack.c.l.b16 %v1331
  %v1467 = vunpack.c.l.b16 %v1332
  %v1468 = vunpack.c.l.b16 %v1333
  %v1469 = vunpack.c.l.b16 %v1334
  %v1470 = vunpack.c.l.b16 %v1335
  %v1471 = vunpack.c.l.b16 %v1336
  %v1472 = vunpack.c.l.b16 %v1337
  %v1473 = vunpack.c.l.b16 %v1338
  %v1474 = vunpack.c.l.b16 %v1339
  %v1475 = vunpack.c.l.b16 %v1340
  %v1476 = vunpack.c.l.b16 %v1341
  %v1477 = vunpack.c.l.b16 %v1342
  %v1478 = vunpack.c.l.b16 %v1343
  %v1479 = vunpack.c.l.b16 %v1344
  %v1480 = vunpack.c.l.b16 %v1345
  %v1481 = vunpack.c.l.b16 %v1346
  %v1482 = vunpack.c.l.b16 %v1347
  %v1483 = vunpack.c.l.b16 %v1348
  %v1484 = vunpack.c.l.b16 %v1349
  %v1485 = vunpack.c.l.b16 %v1350
  %v1486 = vunpack.c.l.b16 %v1351
  %v1487 = vunpack.c.l.b16 %v1352
  %v1488 = vunpack.c.l.b16 %v1353
  %v1489 = vunpack.c.l.b16 %v1354
  %v1490 = vunpack.c.l.b16 %v1355
  %v1491 = vunpack.c.l.b16 %v1356
  %v1492 = vunpack.c.l.b16 %v1357
  %v1493 = vunpack.c.l.b16 %v1358
  %v1494 = vunpack.c.l.b16 %v1359
  %v1495 = vunpack.c.l.b16 %v1360
  %v1496 = vunpack.c.l.b16 %v1361
  %v1497 = vunpack.c.l.b16 %v1362
  %v1498 = vunpack.c.l.b16 %v1363
  %v1499 = vunpack.c.l.b16 %v1364
  %v1500 = vunpack.c.l.b16 %v1365
  %v1501 = vunpack.c.l.b16 %v1366
  %v1502 = vunpack.c.l.b16 %v1367
  %v1503 = vunpack.c.l.b16 %v1368
  %v1504 = vunpack.c.l.b16 %v1369
  %v1505 = vunpack.c.l.b16 %v1370
  %v1506 = vunpack.c.l.b16 %v1371
  %v1507 = vunpack.c.l.b16 %v1372
  %v1508 = vunpack.c.l.b16 %v1373
  %v1509 = vunpack.c.l.b16 %v1374
  %v1510 = vunpack.c.l.b16 %v1375
  %v1511 = vunpack.c.l.b16 %v1376
  %v1512 = vunpack.c.l.b16 %v1377
  %v1513 = vunpack.c.l.b16 %v1378
  %v1514 = vunpack.c.l.b16 %v1379
  %v1515 = vunpack.c.l.b16 %v1380
  %v1516 = vunpack.c.l.b16 %v1381
  %v1517 = vunpack.c.l.b16 %v1382
  %v1518 = vunpack.c.l.b16 %v1383
  %v1519 = vunpack.c.l.b16 %v1384
  %v1520 = vunpack.c.l.b16 %v1385
  %v1521 = vunpack.c.l.b16 %v1386
  %v1522 = vunpack.c.l.b16 %v1387
  %v1523 = vunpack.c.l.b16 %v1388
  %v1524 = vunpack.c.l.b16 %v1389
  %v1525 = vunpack.c.l.b16 %v1390
  %v1526 = vunpack.c.l.b16 %v1391
  %v1527 = vunpack.c.l.b16 %v1392
  %v1528 = vpack.c.b16 %v1465, %v1464
  %v1529 = vpack.c.b16 %v1467, %v1466
  %v1530 = vpack.c.b16 %v1469, %v1468
  %v1531 = vpack.c.b16 %v1471, %v1470
  %v1532 = vpack.c.b16 %v1473, %v1472
  %v1533 = vpack.c.b16 %v1475, %v1474
  %v1534 = vpack.c.b16 %v1477, %v1476
  %v1535 = vpack.c.b16 %v1479, %v1478
  %v1536 = vpack.c.b16 %v1481, %v1480
  %v1537 = vpack.c.b16 %v1483, %v1482
  %v1538 = vpack.c.b16 %v1485, %v1484
  %v1539 = vpack.c.b16 %v1487, %v1486
  %v1540 = vpack.c.b16 %v1489, %v1488
  %v1541 = vpack.c.b16 %v1491, %v1490
  %v1542 = vpack.c.b16 %v1493, %v1492
  %v1543 = vpack.c.b16 %v1495, %v1494
  %v1544 = vpack.c.b16 %v1497, %v1496
  %v1545 = vpack.c.b16 %v1499, %v1498
  %v1546 = vpack.c.b16 %v1501, %v1500
  %v1547 = vpack.c.b16 %v1503, %v1502
  %v1548 = vpack.c.b16 %v1505, %v1504
  %v1549 = vpack.c.b16 %v1507, %v1506
  %v1550 = vpack.c.b16 %v1509, %v1508
  %v1551 = vpack.c.b16 %v1511, %v1510
  %v1552 = vpack.c.b16 %v1513, %v1512
  %v1553 = vpack.c.b16 %v1515, %v1514
  %v1554 = vpack.c.b16 %v1517, %v1516
  %v1555 = vpack.c.b16 %v1519, %v1518
  %v1556 = vpack.c.b16 %v1521, %v1520
  %v1557 = vpack.c.b16 %v1523, %v1522
  %v1558 = vpack.c.b16 %v1525, %v1524
  %v1559 = vpack.c.b16 %v1527, %v1526
  %1592 = vmatprep.subr.bf16.mxu0 0
  %1593 = vmatpush1.bf16.msra.mxu0 %v1535
  %1594 = vmatprep.subr.bf16.mxu0 0
  %1595 = vmatpush1.bf16.msra.mxu0 %v1534
  %1596 = vmatprep.subr.bf16.mxu0 0
  %1597 = vmatpush1.bf16.msra.mxu0 %v1533
  %1598 = vmatprep.subr.bf16.mxu0 0
  %1599 = vmatpush1.bf16.msra.mxu0 %v1532
  %1600 = vmatprep.subr.bf16.mxu0 0
  %1601 = vmatpush1.bf16.msra.mxu0 %v1531
  %1602 = vmatprep.subr.bf16.mxu0 0
  %1603 = vmatpush1.bf16.msra.mxu0 %v1530
  %1604 = vmatprep.subr.bf16.mxu0 0
  %1605 = vmatpush1.bf16.msra.mxu0 %v1529
  %1606 = vmatprep.subr.bf16.mxu0 0
  %1607 = vmatpush1.bf16.msra.mxu0 %v1528
  %1608 = vmatprep.subr.bf16.mxu0 0
  %1609 = vmatpush2.bf16.msra.mxu0 %v1543
  %1610 = vmatprep.subr.bf16.mxu0 0
  %1611 = vmatpush2.bf16.msra.mxu0 %v1542
  %1612 = vmatprep.subr.bf16.mxu0 0
  %1613 = vmatpush2.bf16.msra.mxu0 %v1541
  %1614 = vmatprep.subr.bf16.mxu0 0
  %1615 = vmatpush2.bf16.msra.mxu0 %v1540
  %1616 = vmatprep.subr.bf16.mxu0 0
  %1617 = vmatpush2.bf16.msra.mxu0 %v1539
  %1618 = vmatprep.subr.bf16.mxu0 0
  %1619 = vmatpush2.bf16.msra.mxu0 %v1538
  %1620 = vmatprep.subr.bf16.mxu0 0
  %1621 = vmatpush2.bf16.msra.mxu0 %v1537
  %1622 = vmatprep.subr.bf16.mxu0 0
  %1623 = vmatpush2.bf16.msra.mxu0 %v1536
  %1624 = vmatprep.mubr.bf16.mxu0 %v1266
  %1625 = vmatmul.mubr.bf16.gmra.mxu0 %v1265
  %v1626 = vpop.f32.mrf.mxu0
  %v1627 = vadd.f32 %v1398, %v1626
  %v1628 = vpop.f32.mrf.mxu0
  %v1629 = vpop.f32.mrf.mxu0
  %v1630 = vadd.f32 %v1398, %v1629
  %v1631 = vpop.f32.mrf.mxu0
  %1632 = vmatprep.mubr.bf16.mxu0 %v1270
  %1633 = vmatmul.mubr.bf16.gmra.mxu0 %v1269
  %v1634 = vpop.f32.mrf.mxu0
  %v1635 = vadd.f32 %v1398, %v1634
  %v1636 = vpop.f32.mrf.mxu0
  %v1637 = vpop.f32.mrf.mxu0
  %v1638 = vadd.f32 %v1398, %v1637
  %v1639 = vpop.f32.mrf.mxu0
  %1640 = vmatprep.mubr.bf16.mxu0 %v1274
  %1641 = vmatmul.mubr.bf16.gmra.mxu0 %v1273
  %v1642 = vpop.f32.mrf.mxu0
  %v1643 = vadd.f32 %v1398, %v1642
  %v1644 = vpop.f32.mrf.mxu0
  %v1645 = vpop.f32.mrf.mxu0
  %v1646 = vadd.f32 %v1398, %v1645
  %v1647 = vpop.f32.mrf.mxu0
  %1648 = vmatprep.mubr.bf16.mxu0 %v1278
  %1649 = vmatmul.mubr.bf16.gmra.mxu0 %v1277
  %v1650 = vpop.f32.mrf.mxu0
  %v1651 = vadd.f32 %v1398, %v1650
  %v1652 = vpop.f32.mrf.mxu0
  %v1653 = vpop.f32.mrf.mxu0
  %v1654 = vadd.f32 %v1398, %v1653
  %v1655 = vpop.f32.mrf.mxu0
  %1656 = vmatprep.mubr.bf16.mxu0 %v1282
  %1657 = vmatmul.mubr.bf16.gmra.mxu0 %v1281
  %v1658 = vpop.f32.mrf.mxu0
  %v1659 = vadd.f32 %v1398, %v1658
  %v1660 = vpop.f32.mrf.mxu0
  %v1661 = vpop.f32.mrf.mxu0
  %v1662 = vadd.f32 %v1398, %v1661
  %v1663 = vpop.f32.mrf.mxu0
  %1664 = vmatprep.mubr.bf16.mxu0 %v1286
  %1665 = vmatmul.mubr.bf16.gmra.mxu0 %v1285
  %v1666 = vpop.f32.mrf.mxu0
  %v1667 = vadd.f32 %v1398, %v1666
  %v1668 = vpop.f32.mrf.mxu0
  %v1669 = vpop.f32.mrf.mxu0
  %v1670 = vadd.f32 %v1398, %v1669
  %v1671 = vpop.f32.mrf.mxu0
  %1672 = vmatprep.mubr.bf16.mxu0 %v1290
  %1673 = vmatmul.mubr.bf16.gmra.mxu0 %v1289
  %v1674 = vpop.f32.mrf.mxu0
  %v1675 = vadd.f32 %v1398, %v1674
  %v1676 = vpop.f32.mrf.mxu0
  %v1677 = vpop.f32.mrf.mxu0
  %v1678 = vadd.f32 %v1398, %v1677
  %v1679 = vpop.f32.mrf.mxu0
  %1680 = vmatprep.mubr.bf16.mxu0 %v1294
  %1681 = vmatmul.mubr.bf16.gmra.mxu0 %v1293
  %v1682 = vpop.f32.mrf.mxu0
  %v1683 = vadd.f32 %v1398, %v1682
  %v1684 = vpop.f32.mrf.mxu0
  %v1685 = vpop.f32.mrf.mxu0
  %v1686 = vadd.f32 %v1398, %v1685
  %v1687 = vpop.f32.mrf.mxu0
  %1688 = vmatprep.mubr.bf16.mxu0 %v1298
  %1689 = vmatmul.mubr.bf16.gmra.mxu0 %v1297
  %v1690 = vpop.f32.mrf.mxu0
  %v1691 = vadd.f32 %v1398, %v1690
  %v1692 = vpop.f32.mrf.mxu0
  %v1693 = vpop.f32.mrf.mxu0
  %v1694 = vadd.f32 %v1398, %v1693
  %v1695 = vpop.f32.mrf.mxu0
  %1696 = vmatprep.mubr.bf16.mxu0 %v1302
  %1697 = vmatmul.mubr.bf16.gmra.mxu0 %v1301
  %v1698 = vpop.f32.mrf.mxu0
  %v1699 = vadd.f32 %v1398, %v1698
  %v1700 = vpop.f32.mrf.mxu0
  %v1701 = vpop.f32.mrf.mxu0
  %v1702 = vadd.f32 %v1398, %v1701
  %v1703 = vpop.f32.mrf.mxu0
  %1704 = vmatprep.mubr.bf16.mxu0 %v1306
  %1705 = vmatmul.mubr.bf16.gmra.mxu0 %v1305
  %v1706 = vpop.f32.mrf.mxu0
  %v1707 = vadd.f32 %v1398, %v1706
  %v1708 = vpop.f32.mrf.mxu0
  %v1709 = vpop.f32.mrf.mxu0
  %v1710 = vadd.f32 %v1398, %v1709
  %v1711 = vpop.f32.mrf.mxu0
  %1712 = vmatprep.mubr.bf16.mxu0 %v1310
  %1713 = vmatmul.mubr.bf16.gmra.mxu0 %v1309
  %v1714 = vpop.f32.mrf.mxu0
  %v1715 = vadd.f32 %v1398, %v1714
  %v1716 = vpop.f32.mrf.mxu0
  %v1717 = vpop.f32.mrf.mxu0
  %v1718 = vadd.f32 %v1398, %v1717
  %v1719 = vpop.f32.mrf.mxu0
  %1720 = vmatprep.mubr.bf16.mxu0 %v1314
  %1721 = vmatmul.mubr.bf16.gmra.mxu0 %v1313
  %v1722 = vpop.f32.mrf.mxu0
  %v1723 = vadd.f32 %v1398, %v1722
  %v1724 = vpop.f32.mrf.mxu0
  %v1725 = vpop.f32.mrf.mxu0
  %v1726 = vadd.f32 %v1398, %v1725
  %v1727 = vpop.f32.mrf.mxu0
  %1728 = vmatprep.mubr.bf16.mxu0 %v1318
  %1729 = vmatmul.mubr.bf16.gmra.mxu0 %v1317
  %v1730 = vpop.f32.mrf.mxu0
  %v1731 = vadd.f32 %v1398, %v1730
  %v1732 = vpop.f32.mrf.mxu0
  %v1733 = vpop.f32.mrf.mxu0
  %v1734 = vadd.f32 %v1398, %v1733
  %v1735 = vpop.f32.mrf.mxu0
  %1736 = vmatprep.mubr.bf16.mxu0 %v1322
  %1737 = vmatmul.mubr.bf16.gmra.mxu0 %v1321
  %v1738 = vpop.f32.mrf.mxu0
  %v1739 = vadd.f32 %v1398, %v1738
  %v1740 = vpop.f32.mrf.mxu0
  %v1741 = vpop.f32.mrf.mxu0
  %v1742 = vadd.f32 %v1398, %v1741
  %v1743 = vpop.f32.mrf.mxu0
  %1744 = vmatprep.mubr.bf16.mxu0 %v1326
  %1745 = vmatmul.mubr.bf16.gmra.mxu0 %v1325
  %v1746 = vpop.f32.mrf.mxu0
  %v1747 = vadd.f32 %v1398, %v1746
  %v1748 = vpop.f32.mrf.mxu0
  %v1749 = vpop.f32.mrf.mxu0
  %v1750 = vadd.f32 %v1398, %v1749
  %v1751 = vpop.f32.mrf.mxu0
  %1752 = vdwg.mxu0
  %1753 = vmatprep.subr.bf16.mxu0 0
  %1754 = vmatpush1.bf16.msra.mxu0 %v1551
  %1755 = vmatprep.subr.bf16.mxu0 0
  %1756 = vmatpush1.bf16.msra.mxu0 %v1550
  %1757 = vmatprep.subr.bf16.mxu0 0
  %1758 = vmatpush1.bf16.msra.mxu0 %v1549
  %1759 = vmatprep.subr.bf16.mxu0 0
  %1760 = vmatpush1.bf16.msra.mxu0 %v1548
  %1761 = vmatprep.subr.bf16.mxu0 0
  %1762 = vmatpush1.bf16.msra.mxu0 %v1547
  %1763 = vmatprep.subr.bf16.mxu0 0
  %1764 = vmatpush1.bf16.msra.mxu0 %v1546
  %1765 = vmatprep.subr.bf16.mxu0 0
  %1766 = vmatpush1.bf16.msra.mxu0 %v1545
  %1767 = vmatprep.subr.bf16.mxu0 0
  %1768 = vmatpush1.bf16.msra.mxu0 %v1544
  %1769 = vmatprep.subr.bf16.mxu0 0
  %1770 = vmatpush2.bf16.msra.mxu0 %v1559
  %1771 = vmatprep.subr.bf16.mxu0 0
  %1772 = vmatpush2.bf16.msra.mxu0 %v1558
  %1773 = vmatprep.subr.bf16.mxu0 0
  %1774 = vmatpush2.bf16.msra.mxu0 %v1557
  %1775 = vmatprep.subr.bf16.mxu0 0
  %1776 = vmatpush2.bf16.msra.mxu0 %v1556
  %1777 = vmatprep.subr.bf16.mxu0 0
  %1778 = vmatpush2.bf16.msra.mxu0 %v1555
  %1779 = vmatprep.subr.bf16.mxu0 0
  %1780 = vmatpush2.bf16.msra.mxu0 %v1554
  %1781 = vmatprep.subr.bf16.mxu0 0
  %1782 = vmatpush2.bf16.msra.mxu0 %v1553
  %1783 = vmatprep.subr.bf16.mxu0 0
  %1784 = vmatpush2.bf16.msra.mxu0 %v1552
  %1785 = vmatprep.mubr.bf16.mxu0 %v1268
  %1786 = vmatmul.mubr.bf16.gmra.mxu0 %v1267
  %v1787 = vpop.f32.mrf.mxu0
  %v1788 = vadd.f32 %v1627, %v1787
  %v1789 = vpop.f32.mrf.mxu0
  %v1790 = vpop.f32.mrf.mxu0
  %v1791 = vadd.f32 %v1630, %v1790
  %v1792 = vpop.f32.mrf.mxu0
  %1793 = vmatprep.mubr.bf16.mxu0 %v1272
  %1794 = vmatmul.mubr.bf16.gmra.mxu0 %v1271
  %v1795 = vpop.f32.mrf.mxu0
  %v1796 = vadd.f32 %v1635, %v1795
  %v1797 = vpop.f32.mrf.mxu0
  %v1798 = vpop.f32.mrf.mxu0
  %v1799 = vadd.f32 %v1638, %v1798
  %v1800 = vpop.f32.mrf.mxu0
  %1801 = vmatprep.mubr.bf16.mxu0 %v1276
  %1802 = vmatmul.mubr.bf16.gmra.mxu0 %v1275
  %v1803 = vpop.f32.mrf.mxu0
  %v1804 = vadd.f32 %v1643, %v1803
  %v1805 = vpop.f32.mrf.mxu0
  %v1806 = vpop.f32.mrf.mxu0
  %v1807 = vadd.f32 %v1646, %v1806
  %v1808 = vpop.f32.mrf.mxu0
  %1809 = vmatprep.mubr.bf16.mxu0 %v1280
  %1810 = vmatmul.mubr.bf16.gmra.mxu0 %v1279
  %v1811 = vpop.f32.mrf.mxu0
  %v1812 = vadd.f32 %v1651, %v1811
  %v1813 = vpop.f32.mrf.mxu0
  %v1814 = vpop.f32.mrf.mxu0
  %v1815 = vadd.f32 %v1654, %v1814
  %v1816 = vpop.f32.mrf.mxu0
  %1817 = vmatprep.mubr.bf16.mxu0 %v1284
  %1818 = vmatmul.mubr.bf16.gmra.mxu0 %v1283
  %v1819 = vpop.f32.mrf.mxu0
  %v1820 = vadd.f32 %v1659, %v1819
  %v1821 = vpop.f32.mrf.mxu0
  %v1822 = vpop.f32.mrf.mxu0
  %v1823 = vadd.f32 %v1662, %v1822
  %v1824 = vpop.f32.mrf.mxu0
  %1825 = vmatprep.mubr.bf16.mxu0 %v1288
  %1826 = vmatmul.mubr.bf16.gmra.mxu0 %v1287
  %v1827 = vpop.f32.mrf.mxu0
  %v1828 = vadd.f32 %v1667, %v1827
  %v1829 = vpop.f32.mrf.mxu0
  %v1830 = vpop.f32.mrf.mxu0
  %v1831 = vadd.f32 %v1670, %v1830
  %v1832 = vpop.f32.mrf.mxu0
  %1833 = vmatprep.mubr.bf16.mxu0 %v1292
  %1834 = vmatmul.mubr.bf16.gmra.mxu0 %v1291
  %v1835 = vpop.f32.mrf.mxu0
  %v1836 = vadd.f32 %v1675, %v1835
  %v1837 = vpop.f32.mrf.mxu0
  %v1838 = vpop.f32.mrf.mxu0
  %v1839 = vadd.f32 %v1678, %v1838
  %v1840 = vpop.f32.mrf.mxu0
  %1841 = vmatprep.mubr.bf16.mxu0 %v1296
  %1842 = vmatmul.mubr.bf16.gmra.mxu0 %v1295
  %v1843 = vpop.f32.mrf.mxu0
  %v1844 = vadd.f32 %v1683, %v1843
  %v1845 = vpop.f32.mrf.mxu0
  %v1846 = vpop.f32.mrf.mxu0
  %v1847 = vadd.f32 %v1686, %v1846
  %v1848 = vpop.f32.mrf.mxu0
  %1849 = vmatprep.mubr.bf16.mxu0 %v1300
  %1850 = vmatmul.mubr.bf16.gmra.mxu0 %v1299
  %v1851 = vpop.f32.mrf.mxu0
  %v1852 = vadd.f32 %v1691, %v1851
  %v1853 = vpop.f32.mrf.mxu0
  %v1854 = vpop.f32.mrf.mxu0
  %v1855 = vadd.f32 %v1694, %v1854
  %v1856 = vpop.f32.mrf.mxu0
  %1857 = vmatprep.mubr.bf16.mxu0 %v1304
  %1858 = vmatmul.mubr.bf16.gmra.mxu0 %v1303
  %v1859 = vpop.f32.mrf.mxu0
  %v1860 = vadd.f32 %v1699, %v1859
  %v1861 = vpop.f32.mrf.mxu0
  %v1862 = vpop.f32.mrf.mxu0
  %v1863 = vadd.f32 %v1702, %v1862
  %v1864 = vpop.f32.mrf.mxu0
  %1865 = vmatprep.mubr.bf16.mxu0 %v1308
  %1866 = vmatmul.mubr.bf16.gmra.mxu0 %v1307
  %v1867 = vpop.f32.mrf.mxu0
  %v1868 = vadd.f32 %v1707, %v1867
  %v1869 = vpop.f32.mrf.mxu0
  %v1870 = vpop.f32.mrf.mxu0
  %v1871 = vadd.f32 %v1710, %v1870
  %v1872 = vpop.f32.mrf.mxu0
  %1873 = vmatprep.mubr.bf16.mxu0 %v1312
  %1874 = vmatmul.mubr.bf16.gmra.mxu0 %v1311
  %v1875 = vpop.f32.mrf.mxu0
  %v1876 = vadd.f32 %v1715, %v1875
  %v1877 = vpop.f32.mrf.mxu0
  %v1878 = vpop.f32.mrf.mxu0
  %v1879 = vadd.f32 %v1718, %v1878
  %v1880 = vpop.f32.mrf.mxu0
  %1881 = vmatprep.mubr.bf16.mxu0 %v1316
  %1882 = vmatmul.mubr.bf16.gmra.mxu0 %v1315
  %v1883 = vpop.f32.mrf.mxu0
  %v1884 = vadd.f32 %v1723, %v1883
  %v1885 = vpop.f32.mrf.mxu0
  %v1886 = vpop.f32.mrf.mxu0
  %v1887 = vadd.f32 %v1726, %v1886
  %v1888 = vpop.f32.mrf.mxu0
  %1889 = vmatprep.mubr.bf16.mxu0 %v1320
  %1890 = vmatmul.mubr.bf16.gmra.mxu0 %v1319
  %v1891 = vpop.f32.mrf.mxu0
  %v1892 = vadd.f32 %v1731, %v1891
  %v1893 = vpop.f32.mrf.mxu0
  %v1894 = vpop.f32.mrf.mxu0
  %v1895 = vadd.f32 %v1734, %v1894
  %v1896 = vpop.f32.mrf.mxu0
  %1897 = vmatprep.mubr.bf16.mxu0 %v1324
  %1898 = vmatmul.mubr.bf16.gmra.mxu0 %v1323
  %v1899 = vpop.f32.mrf.mxu0
  %v1900 = vadd.f32 %v1739, %v1899
  %v1901 = vpop.f32.mrf.mxu0
  %v1902 = vpop.f32.mrf.mxu0
  %v1903 = vadd.f32 %v1742, %v1902
  %v1904 = vpop.f32.mrf.mxu0
  %1905 = vmatprep.mubr.bf16.mxu0 %v1328
  %1906 = vmatmul.mubr.bf16.gmra.mxu0 %v1327
  %v1907 = vpop.f32.mrf.mxu0
  %v1908 = vadd.f32 %v1747, %v1907
  %v1909 = vpop.f32.mrf.mxu0
  %v1910 = vpop.f32.mrf.mxu0
  %v1911 = vadd.f32 %v1750, %v1910
  %v1912 = vpop.f32.mrf.mxu0
  %1913 = vdwg.mxu0
  %v1914 = vadd.f32 %v395, %v1788
  %v1915 = vadd.f32 %v398, %v1791
  %v1916 = vadd.f32 %v403, %v1796
  %v1917 = vadd.f32 %v406, %v1799
  %v1918 = vadd.f32 %v411, %v1804
  %v1919 = vadd.f32 %v414, %v1807
  %v1920 = vadd.f32 %v419, %v1812
  %v1921 = vadd.f32 %v422, %v1815
  %v1922 = vadd.f32 %v427, %v1820
  %v1923 = vadd.f32 %v430, %v1823
  %v1924 = vadd.f32 %v435, %v1828
  %v1925 = vadd.f32 %v438, %v1831
  %v1926 = vadd.f32 %v443, %v1836
  %v1927 = vadd.f32 %v446, %v1839
  %v1928 = vadd.f32 %v451, %v1844
  %v1929 = vadd.f32 %v454, %v1847
  %v1930 = vadd.f32 %v459, %v1852
  %v1931 = vadd.f32 %v462, %v1855
  %v1932 = vadd.f32 %v467, %v1860
  %v1933 = vadd.f32 %v470, %v1863
  %v1934 = vadd.f32 %v475, %v1868
  %v1935 = vadd.f32 %v478, %v1871
  %v1936 = vadd.f32 %v483, %v1876
  %v1937 = vadd.f32 %v486, %v1879
  %v1938 = vadd.f32 %v491, %v1884
  %v1939 = vadd.f32 %v494, %v1887
  %v1940 = vadd.f32 %v499, %v1892
  %v1941 = vadd.f32 %v502, %v1895
  %v1942 = vadd.f32 %v507, %v1900
  %v1943 = vadd.f32 %v510, %v1903
  %v1944 = vadd.f32 %v515, %v1908
  %v1945 = vadd.f32 %v518, %v1911
  %v1946 = vpack.c.bf16 %v1915, %v1914
  %v1947 = vpack.c.bf16 %v1917, %v1916
  %v1948 = vpack.c.bf16 %v1919, %v1918
  %v1949 = vpack.c.bf16 %v1921, %v1920
  %v1950 = vpack.c.bf16 %v1923, %v1922
  %v1951 = vpack.c.bf16 %v1925, %v1924
  %v1952 = vpack.c.bf16 %v1927, %v1926
  %v1953 = vpack.c.bf16 %v1929, %v1928
  %v1954 = vpack.c.bf16 %v1931, %v1930
  %v1955 = vpack.c.bf16 %v1933, %v1932
  %v1956 = vpack.c.bf16 %v1935, %v1934
  %v1957 = vpack.c.bf16 %v1937, %v1936
  %v1958 = vpack.c.bf16 %v1939, %v1938
  %v1959 = vpack.c.bf16 %v1941, %v1940
  %v1960 = vpack.c.bf16 %v1943, %v1942
  %v1961 = vpack.c.bf16 %v1945, %v1944
  %s1962 = scalar_lea.vmem %s3, 256
  %v1963 = vld [vmem:[%s1962] sm:$0xff]
  %v1964 = vld [vmem:[%s1962 + $0x8] sm:$0xff]
  %v1965 = vld [vmem:[%s1962 + $0x10] sm:$0xff]
  %v1966 = vld [vmem:[%s1962 + $0x18] sm:$0xff]
  %v1967 = vld [vmem:[%s1962 + $0x20] sm:$0xff]
  %v1968 = vld [vmem:[%s1962 + $0x28] sm:$0xff]
  %v1969 = vld [vmem:[%s1962 + $0x30] sm:$0xff]
  %v1970 = vld [vmem:[%s1962 + $0x38] sm:$0xff]
  %v1971 = vld [vmem:[%s1962 + $0x40] sm:$0xff]
  %v1972 = vld [vmem:[%s1962 + $0x48] sm:$0xff]
  %v1973 = vld [vmem:[%s1962 + $0x50] sm:$0xff]
  %v1974 = vld [vmem:[%s1962 + $0x58] sm:$0xff]
  %v1975 = vld [vmem:[%s1962 + $0x60] sm:$0xff]
  %v1976 = vld [vmem:[%s1962 + $0x68] sm:$0xff]
  %v1977 = vld [vmem:[%s1962 + $0x70] sm:$0xff]
  %v1978 = vld [vmem:[%s1962 + $0x78] sm:$0xff]
  %v1979 = vld [vmem:[%s1962 + $0x80] sm:$0xff]
  %v1980 = vld [vmem:[%s1962 + $0x88] sm:$0xff]
  %v1981 = vld [vmem:[%s1962 + $0x90] sm:$0xff]
  %v1982 = vld [vmem:[%s1962 + $0x98] sm:$0xff]
  %v1983 = vld [vmem:[%s1962 + $0xa0] sm:$0xff]
  %v1984 = vld [vmem:[%s1962 + $0xa8] sm:$0xff]
  %v1985 = vld [vmem:[%s1962 + $0xb0] sm:$0xff]
  %v1986 = vld [vmem:[%s1962 + $0xb8] sm:$0xff]
  %v1987 = vld [vmem:[%s1962 + $0xc0] sm:$0xff]
  %v1988 = vld [vmem:[%s1962 + $0xc8] sm:$0xff]
  %v1989 = vld [vmem:[%s1962 + $0xd0] sm:$0xff]
  %v1990 = vld [vmem:[%s1962 + $0xd8] sm:$0xff]
  %v1991 = vld [vmem:[%s1962 + $0xe0] sm:$0xff]
  %v1992 = vld [vmem:[%s1962 + $0xe8] sm:$0xff]
  %v1993 = vld [vmem:[%s1962 + $0xf0] sm:$0xff]
  %v1994 = vld [vmem:[%s1962 + $0xf8] sm:$0xff]
  %s1995 = scalar_lea.vmem %s4, 4
  %v1996 = vld [vmem:[%s1995] sm:$0xf]
  %v1998 = vlaneseq
  %v1999 = vshrl.u32 %v1998, 7
  %v2000 = vsub.s32 0, %v1999
  %v2001 = vrot.slane %v1996, %v2000
  %v2002 = vlaneseq
  %v2003 = vshrl.u32 %v2002, 7
  %v2004 = vsub.s32 1, %v2003
  %v2005 = vrot.slane %v1996, %v2004
  %v2006 = vlaneseq
  %v2007 = vshrl.u32 %v2006, 7
  %v2008 = vsub.s32 2, %v2007
  %v2009 = vrot.slane %v1996, %v2008
  %v2010 = vlaneseq
  %v2011 = vshrl.u32 %v2010, 7
  %v2012 = vsub.s32 3, %v2011
  %v2013 = vrot.slane %v1996, %v2012
  %v2050 = vunpack.c.l.b16 %v1963
  %v2051 = vunpack.c.h.b16 %v1963
  %v2052 = vunpack.c.l.b16 %v1964
  %v2053 = vunpack.c.h.b16 %v1964
  %v2054 = vunpack.c.l.b16 %v1965
  %v2055 = vunpack.c.h.b16 %v1965
  %v2056 = vunpack.c.l.b16 %v1966
  %v2057 = vunpack.c.h.b16 %v1966
  %v2058 = vunpack.c.l.b16 %v1967
  %v2059 = vunpack.c.h.b16 %v1967
  %v2060 = vunpack.c.l.b16 %v1968
  %v2061 = vunpack.c.h.b16 %v1968
  %v2062 = vunpack.c.l.b16 %v1969
  %v2063 = vunpack.c.h.b16 %v1969
  %v2064 = vunpack.c.l.b16 %v1970
  %v2065 = vunpack.c.h.b16 %v1970
  %v2066 = vunpack.c.l.b16 %v1971
  %v2067 = vunpack.c.h.b16 %v1971
  %v2068 = vunpack.c.l.b16 %v1972
  %v2069 = vunpack.c.h.b16 %v1972
  %v2070 = vunpack.c.l.b16 %v1973
  %v2071 = vunpack.c.h.b16 %v1973
  %v2072 = vunpack.c.l.b16 %v1974
  %v2073 = vunpack.c.h.b16 %v1974
  %v2074 = vunpack.c.l.b16 %v1975
  %v2075 = vunpack.c.h.b16 %v1975
  %v2076 = vunpack.c.l.b16 %v1976
  %v2077 = vunpack.c.h.b16 %v1976
  %v2078 = vunpack.c.l.b16 %v1977
  %v2079 = vunpack.c.h.b16 %v1977
  %v2080 = vunpack.c.l.b16 %v1978
  %v2081 = vunpack.c.h.b16 %v1978
  %v2082 = vunpack.c.l.b16 %v1979
  %v2083 = vunpack.c.h.b16 %v1979
  %v2084 = vunpack.c.l.b16 %v1980
  %v2085 = vunpack.c.h.b16 %v1980
  %v2086 = vunpack.c.l.b16 %v1981
  %v2087 = vunpack.c.h.b16 %v1981
  %v2088 = vunpack.c.l.b16 %v1982
  %v2089 = vunpack.c.h.b16 %v1982
  %v2090 = vunpack.c.l.b16 %v1983
  %v2091 = vunpack.c.h.b16 %v1983
  %v2092 = vunpack.c.l.b16 %v1984
  %v2093 = vunpack.c.h.b16 %v1984
  %v2094 = vunpack.c.l.b16 %v1985
  %v2095 = vunpack.c.h.b16 %v1985
  %v2096 = vunpack.c.l.b16 %v1986
  %v2097 = vunpack.c.h.b16 %v1986
  %v2098 = vunpack.c.l.b16 %v1987
  %v2099 = vunpack.c.h.b16 %v1987
  %v2100 = vunpack.c.l.b16 %v1988
  %v2101 = vunpack.c.h.b16 %v1988
  %v2102 = vunpack.c.l.b16 %v1989
  %v2103 = vunpack.c.h.b16 %v1989
  %v2104 = vunpack.c.l.b16 %v1990
  %v2105 = vunpack.c.h.b16 %v1990
  %v2106 = vunpack.c.l.b16 %v1991
  %v2107 = vunpack.c.h.b16 %v1991
  %v2108 = vunpack.c.l.b16 %v1992
  %v2109 = vunpack.c.h.b16 %v1992
  %v2110 = vunpack.c.l.b16 %v1993
  %v2111 = vunpack.c.h.b16 %v1993
  %v2112 = vunpack.c.l.b16 %v1994
  %v2113 = vunpack.c.h.b16 %v1994
  %v2114 = vpack.c.b16 %v2054, %v2050
  %v2115 = vpack.c.b16 %v2055, %v2051
  %v2116 = vpack.c.b16 %v2056, %v2052
  %v2117 = vpack.c.b16 %v2057, %v2053
  %v2118 = vpack.c.b16 %v2062, %v2058
  %v2119 = vpack.c.b16 %v2063, %v2059
  %v2120 = vpack.c.b16 %v2064, %v2060
  %v2121 = vpack.c.b16 %v2065, %v2061
  %v2122 = vpack.c.b16 %v2070, %v2066
  %v2123 = vpack.c.b16 %v2071, %v2067
  %v2124 = vpack.c.b16 %v2072, %v2068
  %v2125 = vpack.c.b16 %v2073, %v2069
  %v2126 = vpack.c.b16 %v2078, %v2074
  %v2127 = vpack.c.b16 %v2079, %v2075
  %v2128 = vpack.c.b16 %v2080, %v2076
  %v2129 = vpack.c.b16 %v2081, %v2077
  %v2130 = vpack.c.b16 %v2086, %v2082
  %v2131 = vpack.c.b16 %v2087, %v2083
  %v2132 = vpack.c.b16 %v2088, %v2084
  %v2133 = vpack.c.b16 %v2089, %v2085
  %v2134 = vpack.c.b16 %v2094, %v2090
  %v2135 = vpack.c.b16 %v2095, %v2091
  %v2136 = vpack.c.b16 %v2096, %v2092
  %v2137 = vpack.c.b16 %v2097, %v2093
  %v2138 = vpack.c.b16 %v2102, %v2098
  %v2139 = vpack.c.b16 %v2103, %v2099
  %v2140 = vpack.c.b16 %v2104, %v2100
  %v2141 = vpack.c.b16 %v2105, %v2101
  %v2142 = vpack.c.b16 %v2110, %v2106
  %v2143 = vpack.c.b16 %v2111, %v2107
  %v2144 = vpack.c.b16 %v2112, %v2108
  %v2145 = vpack.c.b16 %v2113, %v2109
  %2178 = vmatprep.subr.bf16.mxu0 %v2143
  %2179 = vmatpush1.bf16.msra.mxu0 %v2142
  %2180 = vmatprep.subr.bf16.mxu0 %v2139
  %2181 = vmatpush1.bf16.msra.mxu0 %v2138
  %2182 = vmatprep.subr.bf16.mxu0 %v2135
  %2183 = vmatpush1.bf16.msra.mxu0 %v2134
  %2184 = vmatprep.subr.bf16.mxu0 %v2131
  %2185 = vmatpush1.bf16.msra.mxu0 %v2130
  %2186 = vmatprep.subr.bf16.mxu0 %v2127
  %2187 = vmatpush1.bf16.msra.mxu0 %v2126
  %2188 = vmatprep.subr.bf16.mxu0 %v2123
  %2189 = vmatpush1.bf16.msra.mxu0 %v2122
  %2190 = vmatprep.subr.bf16.mxu0 %v2119
  %2191 = vmatpush1.bf16.msra.mxu0 %v2118
  %2192 = vmatprep.subr.bf16.mxu0 %v2115
  %2193 = vmatpush1.bf16.msra.mxu0 %v2114
  %2194 = vmatprep.subr.bf16.mxu0 0
  %2195 = vmatpush2.bf16.msra.mxu0 0
  %2196 = vmatprep.subr.bf16.mxu0 0
  %2197 = vmatpush2.bf16.msra.mxu0 0
  %2198 = vmatprep.subr.bf16.mxu0 0
  %2199 = vmatpush2.bf16.msra.mxu0 0
  %2200 = vmatprep.subr.bf16.mxu0 0
  %2201 = vmatpush2.bf16.msra.mxu0 0
  %2202 = vmatprep.subr.bf16.mxu0 0
  %2203 = vmatpush2.bf16.msra.mxu0 0
  %2204 = vmatprep.subr.bf16.mxu0 0
  %2205 = vmatpush2.bf16.msra.mxu0 0
  %2206 = vmatprep.subr.bf16.mxu0 0
  %2207 = vmatpush2.bf16.msra.mxu0 0
  %2208 = vmatprep.subr.bf16.mxu0 0
  %2209 = vmatpush2.bf16.msra.mxu0 0
  %2210 = vmatprep.mubr.bf16.mxu0 0
  %2211 = vmatmul.mubr.bf16.gmra.mxu0 %v1946
  %v2212 = vpop.f32.mrf.mxu0
  %v2213 = vadd.f32 %v2001, %v2212
  %v2214 = vpop.f32.mrf.mxu0
  %v2215 = vadd.f32 %v2005, %v2214
  %v2216 = vpop.f32.mrf.mxu0
  %v2217 = vadd.f32 %v2001, %v2216
  %v2218 = vpop.f32.mrf.mxu0
  %v2219 = vadd.f32 %v2005, %v2218
  %2220 = vmatprep.mubr.bf16.mxu0 0
  %2221 = vmatmul.mubr.bf16.gmra.mxu0 %v1947
  %v2222 = vpop.f32.mrf.mxu0
  %v2223 = vadd.f32 %v2001, %v2222
  %v2224 = vpop.f32.mrf.mxu0
  %v2225 = vadd.f32 %v2005, %v2224
  %v2226 = vpop.f32.mrf.mxu0
  %v2227 = vadd.f32 %v2001, %v2226
  %v2228 = vpop.f32.mrf.mxu0
  %v2229 = vadd.f32 %v2005, %v2228
  %2230 = vmatprep.mubr.bf16.mxu0 0
  %2231 = vmatmul.mubr.bf16.gmra.mxu0 %v1948
  %v2232 = vpop.f32.mrf.mxu0
  %v2233 = vadd.f32 %v2001, %v2232
  %v2234 = vpop.f32.mrf.mxu0
  %v2235 = vadd.f32 %v2005, %v2234
  %v2236 = vpop.f32.mrf.mxu0
  %v2237 = vadd.f32 %v2001, %v2236
  %v2238 = vpop.f32.mrf.mxu0
  %v2239 = vadd.f32 %v2005, %v2238
  %2240 = vmatprep.mubr.bf16.mxu0 0
  %2241 = vmatmul.mubr.bf16.gmra.mxu0 %v1949
  %v2242 = vpop.f32.mrf.mxu0
  %v2243 = vadd.f32 %v2001, %v2242
  %v2244 = vpop.f32.mrf.mxu0
  %v2245 = vadd.f32 %v2005, %v2244
  %v2246 = vpop.f32.mrf.mxu0
  %v2247 = vadd.f32 %v2001, %v2246
  %v2248 = vpop.f32.mrf.mxu0
  %v2249 = vadd.f32 %v2005, %v2248
  %2250 = vmatprep.mubr.bf16.mxu0 0
  %2251 = vmatmul.mubr.bf16.gmra.mxu0 %v1950
  %v2252 = vpop.f32.mrf.mxu0
  %v2253 = vadd.f32 %v2001, %v2252
  %v2254 = vpop.f32.mrf.mxu0
  %v2255 = vadd.f32 %v2005, %v2254
  %v2256 = vpop.f32.mrf.mxu0
  %v2257 = vadd.f32 %v2001, %v2256
  %v2258 = vpop.f32.mrf.mxu0
  %v2259 = vadd.f32 %v2005, %v2258
  %2260 = vmatprep.mubr.bf16.mxu0 0
  %2261 = vmatmul.mubr.bf16.gmra.mxu0 %v1951
  %v2262 = vpop.f32.mrf.mxu0
  %v2263 = vadd.f32 %v2001, %v2262
  %v2264 = vpop.f32.mrf.mxu0
  %v2265 = vadd.f32 %v2005, %v2264
  %v2266 = vpop.f32.mrf.mxu0
  %v2267 = vadd.f32 %v2001, %v2266
  %v2268 = vpop.f32.mrf.mxu0
  %v2269 = vadd.f32 %v2005, %v2268
  %2270 = vmatprep.mubr.bf16.mxu0 0
  %2271 = vmatmul.mubr.bf16.gmra.mxu0 %v1952
  %v2272 = vpop.f32.mrf.mxu0
  %v2273 = vadd.f32 %v2001, %v2272
  %v2274 = vpop.f32.mrf.mxu0
  %v2275 = vadd.f32 %v2005, %v2274
  %v2276 = vpop.f32.mrf.mxu0
  %v2277 = vadd.f32 %v2001, %v2276
  %v2278 = vpop.f32.mrf.mxu0
  %v2279 = vadd.f32 %v2005, %v2278
  %2280 = vmatprep.mubr.bf16.mxu0 0
  %2281 = vmatmul.mubr.bf16.gmra.mxu0 %v1953
  %v2282 = vpop.f32.mrf.mxu0
  %v2283 = vadd.f32 %v2001, %v2282
  %v2284 = vpop.f32.mrf.mxu0
  %v2285 = vadd.f32 %v2005, %v2284
  %v2286 = vpop.f32.mrf.mxu0
  %v2287 = vadd.f32 %v2001, %v2286
  %v2288 = vpop.f32.mrf.mxu0
  %v2289 = vadd.f32 %v2005, %v2288
  %2290 = vmatprep.mubr.bf16.mxu0 0
  %2291 = vmatmul.mubr.bf16.gmra.mxu0 %v1954
  %v2292 = vpop.f32.mrf.mxu0
  %v2293 = vadd.f32 %v2001, %v2292
  %v2294 = vpop.f32.mrf.mxu0
  %v2295 = vadd.f32 %v2005, %v2294
  %v2296 = vpop.f32.mrf.mxu0
  %v2297 = vadd.f32 %v2001, %v2296
  %v2298 = vpop.f32.mrf.mxu0
  %v2299 = vadd.f32 %v2005, %v2298
  %2300 = vmatprep.mubr.bf16.mxu0 0
  %2301 = vmatmul.mubr.bf16.gmra.mxu0 %v1955
  %v2302 = vpop.f32.mrf.mxu0
  %v2303 = vadd.f32 %v2001, %v2302
  %v2304 = vpop.f32.mrf.mxu0
  %v2305 = vadd.f32 %v2005, %v2304
  %v2306 = vpop.f32.mrf.mxu0
  %v2307 = vadd.f32 %v2001, %v2306
  %v2308 = vpop.f32.mrf.mxu0
  %v2309 = vadd.f32 %v2005, %v2308
  %2310 = vmatprep.mubr.bf16.mxu0 0
  %2311 = vmatmul.mubr.bf16.gmra.mxu0 %v1956
  %v2312 = vpop.f32.mrf.mxu0
  %v2313 = vadd.f32 %v2001, %v2312
  %v2314 = vpop.f32.mrf.mxu0
  %v2315 = vadd.f32 %v2005, %v2314
  %v2316 = vpop.f32.mrf.mxu0
  %v2317 = vadd.f32 %v2001, %v2316
  %v2318 = vpop.f32.mrf.mxu0
  %v2319 = vadd.f32 %v2005, %v2318
  %2320 = vmatprep.mubr.bf16.mxu0 0
  %2321 = vmatmul.mubr.bf16.gmra.mxu0 %v1957
  %v2322 = vpop.f32.mrf.mxu0
  %v2323 = vadd.f32 %v2001, %v2322
  %v2324 = vpop.f32.mrf.mxu0
  %v2325 = vadd.f32 %v2005, %v2324
  %v2326 = vpop.f32.mrf.mxu0
  %v2327 = vadd.f32 %v2001, %v2326
  %v2328 = vpop.f32.mrf.mxu0
  %v2329 = vadd.f32 %v2005, %v2328
  %2330 = vmatprep.mubr.bf16.mxu0 0
  %2331 = vmatmul.mubr.bf16.gmra.mxu0 %v1958
  %v2332 = vpop.f32.mrf.mxu0
  %v2333 = vadd.f32 %v2001, %v2332
  %v2334 = vpop.f32.mrf.mxu0
  %v2335 = vadd.f32 %v2005, %v2334
  %v2336 = vpop.f32.mrf.mxu0
  %v2337 = vadd.f32 %v2001, %v2336
  %v2338 = vpop.f32.mrf.mxu0
  %v2339 = vadd.f32 %v2005, %v2338
  %2340 = vmatprep.mubr.bf16.mxu0 0
  %2341 = vmatmul.mubr.bf16.gmra.mxu0 %v1959
  %v2342 = vpop.f32.mrf.mxu0
  %v2343 = vadd.f32 %v2001, %v2342
  %v2344 = vpop.f32.mrf.mxu0
  %v2345 = vadd.f32 %v2005, %v2344
  %v2346 = vpop.f32.mrf.mxu0
  %v2347 = vadd.f32 %v2001, %v2346
  %v2348 = vpop.f32.mrf.mxu0
  %v2349 = vadd.f32 %v2005, %v2348
  %2350 = vmatprep.mubr.bf16.mxu0 0
  %2351 = vmatmul.mubr.bf16.gmra.mxu0 %v1960
  %v2352 = vpop.f32.mrf.mxu0
  %v2353 = vadd.f32 %v2001, %v2352
  %v2354 = vpop.f32.mrf.mxu0
  %v2355 = vadd.f32 %v2005, %v2354
  %v2356 = vpop.f32.mrf.mxu0
  %v2357 = vadd.f32 %v2001, %v2356
  %v2358 = vpop.f32.mrf.mxu0
  %v2359 = vadd.f32 %v2005, %v2358
  %2360 = vmatprep.mubr.bf16.mxu0 0
  %2361 = vmatmul.mubr.bf16.gmra.mxu0 %v1961
  %v2362 = vpop.f32.mrf.mxu0
  %v2363 = vadd.f32 %v2001, %v2362
  %v2364 = vpop.f32.mrf.mxu0
  %v2365 = vadd.f32 %v2005, %v2364
  %v2366 = vpop.f32.mrf.mxu0
  %v2367 = vadd.f32 %v2001, %v2366
  %v2368 = vpop.f32.mrf.mxu0
  %v2369 = vadd.f32 %v2005, %v2368
  %2370 = vdwg.mxu0
  %2371 = vmatprep.subr.bf16.mxu0 %v2145
  %2372 = vmatpush1.bf16.msra.mxu0 %v2144
  %2373 = vmatprep.subr.bf16.mxu0 %v2141
  %2374 = vmatpush1.bf16.msra.mxu0 %v2140
  %2375 = vmatprep.subr.bf16.mxu0 %v2137
  %2376 = vmatpush1.bf16.msra.mxu0 %v2136
  %2377 = vmatprep.subr.bf16.mxu0 %v2133
  %2378 = vmatpush1.bf16.msra.mxu0 %v2132
  %2379 = vmatprep.subr.bf16.mxu0 %v2129
  %2380 = vmatpush1.bf16.msra.mxu0 %v2128
  %2381 = vmatprep.subr.bf16.mxu0 %v2125
  %2382 = vmatpush1.bf16.msra.mxu0 %v2124
  %2383 = vmatprep.subr.bf16.mxu0 %v2121
  %2384 = vmatpush1.bf16.msra.mxu0 %v2120
  %2385 = vmatprep.subr.bf16.mxu0 %v2117
  %2386 = vmatpush1.bf16.msra.mxu0 %v2116
  %2387 = vmatprep.subr.bf16.mxu0 0
  %2388 = vmatpush2.bf16.msra.mxu0 0
  %2389 = vmatprep.subr.bf16.mxu0 0
  %2390 = vmatpush2.bf16.msra.mxu0 0
  %2391 = vmatprep.subr.bf16.mxu0 0
  %2392 = vmatpush2.bf16.msra.mxu0 0
  %2393 = vmatprep.subr.bf16.mxu0 0
  %2394 = vmatpush2.bf16.msra.mxu0 0
  %2395 = vmatprep.subr.bf16.mxu0 0
  %2396 = vmatpush2.bf16.msra.mxu0 0
  %2397 = vmatprep.subr.bf16.mxu0 0
  %2398 = vmatpush2.bf16.msra.mxu0 0
  %2399 = vmatprep.subr.bf16.mxu0 0
  %2400 = vmatpush2.bf16.msra.mxu0 0
  %2401 = vmatprep.subr.bf16.mxu0 0
  %2402 = vmatpush2.bf16.msra.mxu0 0
  %2403 = vmatprep.mubr.bf16.mxu0 0
  %2404 = vmatmul.mubr.bf16.gmra.mxu0 %v1946
  %v2405 = vpop.f32.mrf.mxu0
  %v2406 = vadd.f32 %v2009, %v2405
  %v2407 = vpop.f32.mrf.mxu0
  %v2408 = vadd.f32 %v2013, %v2407
  %v2409 = vpop.f32.mrf.mxu0
  %v2410 = vadd.f32 %v2009, %v2409
  %v2411 = vpop.f32.mrf.mxu0
  %v2412 = vadd.f32 %v2013, %v2411
  %2413 = vmatprep.mubr.bf16.mxu0 0
  %2414 = vmatmul.mubr.bf16.gmra.mxu0 %v1947
  %v2415 = vpop.f32.mrf.mxu0
  %v2416 = vadd.f32 %v2009, %v2415
  %v2417 = vpop.f32.mrf.mxu0
  %v2418 = vadd.f32 %v2013, %v2417
  %v2419 = vpop.f32.mrf.mxu0
  %v2420 = vadd.f32 %v2009, %v2419
  %v2421 = vpop.f32.mrf.mxu0
  %v2422 = vadd.f32 %v2013, %v2421
  %2423 = vmatprep.mubr.bf16.mxu0 0
  %2424 = vmatmul.mubr.bf16.gmra.mxu0 %v1948
  %v2425 = vpop.f32.mrf.mxu0
  %v2426 = vadd.f32 %v2009, %v2425
  %v2427 = vpop.f32.mrf.mxu0
  %v2428 = vadd.f32 %v2013, %v2427
  %v2429 = vpop.f32.mrf.mxu0
  %v2430 = vadd.f32 %v2009, %v2429
  %v2431 = vpop.f32.mrf.mxu0
  %v2432 = vadd.f32 %v2013, %v2431
  %2433 = vmatprep.mubr.bf16.mxu0 0
  %2434 = vmatmul.mubr.bf16.gmra.mxu0 %v1949
  %v2435 = vpop.f32.mrf.mxu0
  %v2436 = vadd.f32 %v2009, %v2435
  %v2437 = vpop.f32.mrf.mxu0
  %v2438 = vadd.f32 %v2013, %v2437
  %v2439 = vpop.f32.mrf.mxu0
  %v2440 = vadd.f32 %v2009, %v2439
  %v2441 = vpop.f32.mrf.mxu0
  %v2442 = vadd.f32 %v2013, %v2441
  %2443 = vmatprep.mubr.bf16.mxu0 0
  %2444 = vmatmul.mubr.bf16.gmra.mxu0 %v1950
  %v2445 = vpop.f32.mrf.mxu0
  %v2446 = vadd.f32 %v2009, %v2445
  %v2447 = vpop.f32.mrf.mxu0
  %v2448 = vadd.f32 %v2013, %v2447
  %v2449 = vpop.f32.mrf.mxu0
  %v2450 = vadd.f32 %v2009, %v2449
  %v2451 = vpop.f32.mrf.mxu0
  %v2452 = vadd.f32 %v2013, %v2451
  %2453 = vmatprep.mubr.bf16.mxu0 0
  %2454 = vmatmul.mubr.bf16.gmra.mxu0 %v1951
  %v2455 = vpop.f32.mrf.mxu0
  %v2456 = vadd.f32 %v2009, %v2455
  %v2457 = vpop.f32.mrf.mxu0
  %v2458 = vadd.f32 %v2013, %v2457
  %v2459 = vpop.f32.mrf.mxu0
  %v2460 = vadd.f32 %v2009, %v2459
  %v2461 = vpop.f32.mrf.mxu0
  %v2462 = vadd.f32 %v2013, %v2461
  %2463 = vmatprep.mubr.bf16.mxu0 0
  %2464 = vmatmul.mubr.bf16.gmra.mxu0 %v1952
  %v2465 = vpop.f32.mrf.mxu0
  %v2466 = vadd.f32 %v2009, %v2465
  %v2467 = vpop.f32.mrf.mxu0
  %v2468 = vadd.f32 %v2013, %v2467
  %v2469 = vpop.f32.mrf.mxu0
  %v2470 = vadd.f32 %v2009, %v2469
  %v2471 = vpop.f32.mrf.mxu0
  %v2472 = vadd.f32 %v2013, %v2471
  %2473 = vmatprep.mubr.bf16.mxu0 0
  %2474 = vmatmul.mubr.bf16.gmra.mxu0 %v1953
  %v2475 = vpop.f32.mrf.mxu0
  %v2476 = vadd.f32 %v2009, %v2475
  %v2477 = vpop.f32.mrf.mxu0
  %v2478 = vadd.f32 %v2013, %v2477
  %v2479 = vpop.f32.mrf.mxu0
  %v2480 = vadd.f32 %v2009, %v2479
  %v2481 = vpop.f32.mrf.mxu0
  %v2482 = vadd.f32 %v2013, %v2481
  %2483 = vmatprep.mubr.bf16.mxu0 0
  %2484 = vmatmul.mubr.bf16.gmra.mxu0 %v1954
  %v2485 = vpop.f32.mrf.mxu0
  %v2486 = vadd.f32 %v2009, %v2485
  %v2487 = vpop.f32.mrf.mxu0
  %v2488 = vadd.f32 %v2013, %v2487
  %v2489 = vpop.f32.mrf.mxu0
  %v2490 = vadd.f32 %v2009, %v2489
  %v2491 = vpop.f32.mrf.mxu0
  %v2492 = vadd.f32 %v2013, %v2491
  %2493 = vmatprep.mubr.bf16.mxu0 0
  %2494 = vmatmul.mubr.bf16.gmra.mxu0 %v1955
  %v2495 = vpop.f32.mrf.mxu0
  %v2496 = vadd.f32 %v2009, %v2495
  %v2497 = vpop.f32.mrf.mxu0
  %v2498 = vadd.f32 %v2013, %v2497
  %v2499 = vpop.f32.mrf.mxu0
  %v2500 = vadd.f32 %v2009, %v2499
  %v2501 = vpop.f32.mrf.mxu0
  %v2502 = vadd.f32 %v2013, %v2501
  %2503 = vmatprep.mubr.bf16.mxu0 0
  %2504 = vmatmul.mubr.bf16.gmra.mxu0 %v1956
  %v2505 = vpop.f32.mrf.mxu0
  %v2506 = vadd.f32 %v2009, %v2505
  %v2507 = vpop.f32.mrf.mxu0
  %v2508 = vadd.f32 %v2013, %v2507
  %v2509 = vpop.f32.mrf.mxu0
  %v2510 = vadd.f32 %v2009, %v2509
  %v2511 = vpop.f32.mrf.mxu0
  %v2512 = vadd.f32 %v2013, %v2511
  %2513 = vmatprep.mubr.bf16.mxu0 0
  %2514 = vmatmul.mubr.bf16.gmra.mxu0 %v1957
  %v2515 = vpop.f32.mrf.mxu0
  %v2516 = vadd.f32 %v2009, %v2515
  %v2517 = vpop.f32.mrf.mxu0
  %v2518 = vadd.f32 %v2013, %v2517
  %v2519 = vpop.f32.mrf.mxu0
  %v2520 = vadd.f32 %v2009, %v2519
  %v2521 = vpop.f32.mrf.mxu0
  %v2522 = vadd.f32 %v2013, %v2521
  %2523 = vmatprep.mubr.bf16.mxu0 0
  %2524 = vmatmul.mubr.bf16.gmra.mxu0 %v1958
  %v2525 = vpop.f32.mrf.mxu0
  %v2526 = vadd.f32 %v2009, %v2525
  %v2527 = vpop.f32.mrf.mxu0
  %v2528 = vadd.f32 %v2013, %v2527
  %v2529 = vpop.f32.mrf.mxu0
  %v2530 = vadd.f32 %v2009, %v2529
  %v2531 = vpop.f32.mrf.mxu0
  %v2532 = vadd.f32 %v2013, %v2531
  %2533 = vmatprep.mubr.bf16.mxu0 0
  %2534 = vmatmul.mubr.bf16.gmra.mxu0 %v1959
  %v2535 = vpop.f32.mrf.mxu0
  %v2536 = vadd.f32 %v2009, %v2535
  %v2537 = vpop.f32.mrf.mxu0
  %v2538 = vadd.f32 %v2013, %v2537
  %v2539 = vpop.f32.mrf.mxu0
  %v2540 = vadd.f32 %v2009, %v2539
  %v2541 = vpop.f32.mrf.mxu0
  %v2542 = vadd.f32 %v2013, %v2541
  %2543 = vmatprep.mubr.bf16.mxu0 0
  %2544 = vmatmul.mubr.bf16.gmra.mxu0 %v1960
  %v2545 = vpop.f32.mrf.mxu0
  %v2546 = vadd.f32 %v2009, %v2545
  %v2547 = vpop.f32.mrf.mxu0
  %v2548 = vadd.f32 %v2013, %v2547
  %v2549 = vpop.f32.mrf.mxu0
  %v2550 = vadd.f32 %v2009, %v2549
  %v2551 = vpop.f32.mrf.mxu0
  %v2552 = vadd.f32 %v2013, %v2551
  %2553 = vmatprep.mubr.bf16.mxu0 0
  %2554 = vmatmul.mubr.bf16.gmra.mxu0 %v1961
  %v2555 = vpop.f32.mrf.mxu0
  %v2556 = vadd.f32 %v2009, %v2555
  %v2557 = vpop.f32.mrf.mxu0
  %v2558 = vadd.f32 %v2013, %v2557
  %v2559 = vpop.f32.mrf.mxu0
  %v2560 = vadd.f32 %v2009, %v2559
  %v2561 = vpop.f32.mrf.mxu0
  %v2562 = vadd.f32 %v2013, %v2561
  %2563 = vdwg.mxu0
  %v2564 = vmax.f32 %v2213, 0.0
  %v2565 = vmax.f32 %v2215, 0.0
  %v2566 = vmax.f32 %v2406, 0.0
  %v2567 = vmax.f32 %v2408, 0.0
  %v2568 = vmax.f32 %v2217, 0.0
  %v2569 = vmax.f32 %v2219, 0.0
  %v2570 = vmax.f32 %v2410, 0.0
  %v2571 = vmax.f32 %v2412, 0.0
  %v2572 = vmax.f32 %v2223, 0.0
  %v2573 = vmax.f32 %v2225, 0.0
  %v2574 = vmax.f32 %v2416, 0.0
  %v2575 = vmax.f32 %v2418, 0.0
  %v2576 = vmax.f32 %v2227, 0.0
  %v2577 = vmax.f32 %v2229, 0.0
  %v2578 = vmax.f32 %v2420, 0.0
  %v2579 = vmax.f32 %v2422, 0.0
  %v2580 = vmax.f32 %v2233, 0.0
  %v2581 = vmax.f32 %v2235, 0.0
  %v2582 = vmax.f32 %v2426, 0.0
  %v2583 = vmax.f32 %v2428, 0.0
  %v2584 = vmax.f32 %v2237, 0.0
  %v2585 = vmax.f32 %v2239, 0.0
  %v2586 = vmax.f32 %v2430, 0.0
  %v2587 = vmax.f32 %v2432, 0.0
  %v2588 = vmax.f32 %v2243, 0.0
  %v2589 = vmax.f32 %v2245, 0.0
  %v2590 = vmax.f32 %v2436, 0.0
  %v2591 = vmax.f32 %v2438, 0.0
  %v2592 = vmax.f32 %v2247, 0.0
  %v2593 = vmax.f32 %v2249, 0.0
  %v2594 = vmax.f32 %v2440, 0.0
  %v2595 = vmax.f32 %v2442, 0.0
  %v2596 = vmax.f32 %v2253, 0.0
  %v2597 = vmax.f32 %v2255, 0.0
  %v2598 = vmax.f32 %v2446, 0.0
  %v2599 = vmax.f32 %v2448, 0.0
  %v2600 = vmax.f32 %v2257, 0.0
  %v2601 = vmax.f32 %v2259, 0.0
  %v2602 = vmax.f32 %v2450, 0.0
  %v2603 = vmax.f32 %v2452, 0.0
  %v2604 = vmax.f32 %v2263, 0.0
  %v2605 = vmax.f32 %v2265, 0.0
  %v2606 = vmax.f32 %v2456, 0.0
  %v2607 = vmax.f32 %v2458, 0.0
  %v2608 = vmax.f32 %v2267, 0.0
  %v2609 = vmax.f32 %v2269, 0.0
  %v2610 = vmax.f32 %v2460, 0.0
  %v2611 = vmax.f32 %v2462, 0.0
  %v2612 = vmax.f32 %v2273, 0.0
  %v2613 = vmax.f32 %v2275, 0.0
  %v2614 = vmax.f32 %v2466, 0.0
  %v2615 = vmax.f32 %v2468, 0.0
  %v2616 = vmax.f32 %v2277, 0.0
  %v2617 = vmax.f32 %v2279, 0.0
  %v2618 = vmax.f32 %v2470, 0.0
  %v2619 = vmax.f32 %v2472, 0.0
  %v2620 = vmax.f32 %v2283, 0.0
  %v2621 = vmax.f32 %v2285, 0.0
  %v2622 = vmax.f32 %v2476, 0.0
  %v2623 = vmax.f32 %v2478, 0.0
  %v2624 = vmax.f32 %v2287, 0.0
  %v2625 = vmax.f32 %v2289, 0.0
  %v2626 = vmax.f32 %v2480, 0.0
  %v2627 = vmax.f32 %v2482, 0.0
  %v2628 = vmax.f32 %v2293, 0.0
  %v2629 = vmax.f32 %v2295, 0.0
  %v2630 = vmax.f32 %v2486, 0.0
  %v2631 = vmax.f32 %v2488, 0.0
  %v2632 = vmax.f32 %v2297, 0.0
  %v2633 = vmax.f32 %v2299, 0.0
  %v2634 = vmax.f32 %v2490, 0.0
  %v2635 = vmax.f32 %v2492, 0.0
  %v2636 = vmax.f32 %v2303, 0.0
  %v2637 = vmax.f32 %v2305, 0.0
  %v2638 = vmax.f32 %v2496, 0.0
  %v2639 = vmax.f32 %v2498, 0.0
  %v2640 = vmax.f32 %v2307, 0.0
  %v2641 = vmax.f32 %v2309, 0.0
  %v2642 = vmax.f32 %v2500, 0.0
  %v2643 = vmax.f32 %v2502, 0.0
  %v2644 = vmax.f32 %v2313, 0.0
  %v2645 = vmax.f32 %v2315, 0.0
  %v2646 = vmax.f32 %v2506, 0.0
  %v2647 = vmax.f32 %v2508, 0.0
  %v2648 = vmax.f32 %v2317, 0.0
  %v2649 = vmax.f32 %v2319, 0.0
  %v2650 = vmax.f32 %v2510, 0.0
  %v2651 = vmax.f32 %v2512, 0.0
  %v2652 = vmax.f32 %v2323, 0.0
  %v2653 = vmax.f32 %v2325, 0.0
  %v2654 = vmax.f32 %v2516, 0.0
  %v2655 = vmax.f32 %v2518, 0.0
  %v2656 = vmax.f32 %v2327, 0.0
  %v2657 = vmax.f32 %v2329, 0.0
  %v2658 = vmax.f32 %v2520, 0.0
  %v2659 = vmax.f32 %v2522, 0.0
  %v2660 = vmax.f32 %v2333, 0.0
  %v2661 = vmax.f32 %v2335, 0.0
  %v2662 = vmax.f32 %v2526, 0.0
  %v2663 = vmax.f32 %v2528, 0.0
  %v2664 = vmax.f32 %v2337, 0.0
  %v2665 = vmax.f32 %v2339, 0.0
  %v2666 = vmax.f32 %v2530, 0.0
  %v2667 = vmax.f32 %v2532, 0.0
  %v2668 = vmax.f32 %v2343, 0.0
  %v2669 = vmax.f32 %v2345, 0.0
  %v2670 = vmax.f32 %v2536, 0.0
  %v2671 = vmax.f32 %v2538, 0.0
  %v2672 = vmax.f32 %v2347, 0.0
  %v2673 = vmax.f32 %v2349, 0.0
  %v2674 = vmax.f32 %v2540, 0.0
  %v2675 = vmax.f32 %v2542, 0.0
  %v2676 = vmax.f32 %v2353, 0.0
  %v2677 = vmax.f32 %v2355, 0.0
  %v2678 = vmax.f32 %v2546, 0.0
  %v2679 = vmax.f32 %v2548, 0.0
  %v2680 = vmax.f32 %v2357, 0.0
  %v2681 = vmax.f32 %v2359, 0.0
  %v2682 = vmax.f32 %v2550, 0.0
  %v2683 = vmax.f32 %v2552, 0.0
  %v2684 = vmax.f32 %v2363, 0.0
  %v2685 = vmax.f32 %v2365, 0.0
  %v2686 = vmax.f32 %v2556, 0.0
  %v2687 = vmax.f32 %v2558, 0.0
  %v2688 = vmax.f32 %v2367, 0.0
  %v2689 = vmax.f32 %v2369, 0.0
  %v2690 = vmax.f32 %v2560, 0.0
  %v2691 = vmax.f32 %v2562, 0.0
  %v2692 = vpack.c.bf16 %v2568, %v2564
  %v2693 = vpack.c.bf16 %v2569, %v2565
  %v2694 = vpack.c.bf16 %v2570, %v2566
  %v2695 = vpack.c.bf16 %v2571, %v2567
  %v2696 = vpack.c.bf16 %v2576, %v2572
  %v2697 = vpack.c.bf16 %v2577, %v2573
  %v2698 = vpack.c.bf16 %v2578, %v2574
  %v2699 = vpack.c.bf16 %v2579, %v2575
  %v2700 = vpack.c.bf16 %v2584, %v2580
  %v2701 = vpack.c.bf16 %v2585, %v2581
  %v2702 = vpack.c.bf16 %v2586, %v2582
  %v2703 = vpack.c.bf16 %v2587, %v2583
  %v2704 = vpack.c.bf16 %v2592, %v2588
  %v2705 = vpack.c.bf16 %v2593, %v2589
  %v2706 = vpack.c.bf16 %v2594, %v2590
  %v2707 = vpack.c.bf16 %v2595, %v2591
  %v2708 = vpack.c.bf16 %v2600, %v2596
  %v2709 = vpack.c.bf16 %v2601, %v2597
  %v2710 = vpack.c.bf16 %v2602, %v2598
  %v2711 = vpack.c.bf16 %v2603, %v2599
  %v2712 = vpack.c.bf16 %v2608, %v2604
  %v2713 = vpack.c.bf16 %v2609, %v2605
  %v2714 = vpack.c.bf16 %v2610, %v2606
  %v2715 = vpack.c.bf16 %v2611, %v2607
  %v2716 = vpack.c.bf16 %v2616, %v2612
  %v2717 = vpack.c.bf16 %v2617, %v2613
  %v2718 = vpack.c.bf16 %v2618, %v2614
  %v2719 = vpack.c.bf16 %v2619, %v2615
  %v2720 = vpack.c.bf16 %v2624, %v2620
  %v2721 = vpack.c.bf16 %v2625, %v2621
  %v2722 = vpack.c.bf16 %v2626, %v2622
  %v2723 = vpack.c.bf16 %v2627, %v2623
  %v2724 = vpack.c.bf16 %v2632, %v2628
  %v2725 = vpack.c.bf16 %v2633, %v2629
  %v2726 = vpack.c.bf16 %v2634, %v2630
  %v2727 = vpack.c.bf16 %v2635, %v2631
  %v2728 = vpack.c.bf16 %v2640, %v2636
  %v2729 = vpack.c.bf16 %v2641, %v2637
  %v2730 = vpack.c.bf16 %v2642, %v2638
  %v2731 = vpack.c.bf16 %v2643, %v2639
  %v2732 = vpack.c.bf16 %v2648, %v2644
  %v2733 = vpack.c.bf16 %v2649, %v2645
  %v2734 = vpack.c.bf16 %v2650, %v2646
  %v2735 = vpack.c.bf16 %v2651, %v2647
  %v2736 = vpack.c.bf16 %v2656, %v2652
  %v2737 = vpack.c.bf16 %v2657, %v2653
  %v2738 = vpack.c.bf16 %v2658, %v2654
  %v2739 = vpack.c.bf16 %v2659, %v2655
  %v2740 = vpack.c.bf16 %v2664, %v2660
  %v2741 = vpack.c.bf16 %v2665, %v2661
  %v2742 = vpack.c.bf16 %v2666, %v2662
  %v2743 = vpack.c.bf16 %v2667, %v2663
  %v2744 = vpack.c.bf16 %v2672, %v2668
  %v2745 = vpack.c.bf16 %v2673, %v2669
  %v2746 = vpack.c.bf16 %v2674, %v2670
  %v2747 = vpack.c.bf16 %v2675, %v2671
  %v2748 = vpack.c.bf16 %v2680, %v2676
  %v2749 = vpack.c.bf16 %v2681, %v2677
  %v2750 = vpack.c.bf16 %v2682, %v2678
  %v2751 = vpack.c.bf16 %v2683, %v2679
  %v2752 = vpack.c.bf16 %v2688, %v2684
  %v2753 = vpack.c.bf16 %v2689, %v2685
  %v2754 = vpack.c.bf16 %v2690, %v2686
  %v2755 = vpack.c.bf16 %v2691, %v2687
  %s2756 = scalar_lea.vmem %s5, 256
  %v2757 = vld [vmem:[%s2756] sm:$0xf]
  %v2758 = vld [vmem:[%s2756 + $0x4] sm:$0xf]
  %v2759 = vld [vmem:[%s2756 + $0x8] sm:$0xf]
  %v2760 = vld [vmem:[%s2756 + $0xc] sm:$0xf]
  %v2761 = vld [vmem:[%s2756 + $0x10] sm:$0xf]
  %v2762 = vld [vmem:[%s2756 + $0x14] sm:$0xf]
  %v2763 = vld [vmem:[%s2756 + $0x18] sm:$0xf]
  %v2764 = vld [vmem:[%s2756 + $0x1c] sm:$0xf]
  %v2765 = vld [vmem:[%s2756 + $0x20] sm:$0xf]
  %v2766 = vld [vmem:[%s2756 + $0x24] sm:$0xf]
  %v2767 = vld [vmem:[%s2756 + $0x28] sm:$0xf]
  %v2768 = vld [vmem:[%s2756 + $0x2c] sm:$0xf]
  %v2769 = vld [vmem:[%s2756 + $0x30] sm:$0xf]
  %v2770 = vld [vmem:[%s2756 + $0x34] sm:$0xf]
  %v2771 = vld [vmem:[%s2756 + $0x38] sm:$0xf]
  %v2772 = vld [vmem:[%s2756 + $0x3c] sm:$0xf]
  %v2773 = vld [vmem:[%s2756 + $0x40] sm:$0xf]
  %v2774 = vld [vmem:[%s2756 + $0x44] sm:$0xf]
  %v2775 = vld [vmem:[%s2756 + $0x48] sm:$0xf]
  %v2776 = vld [vmem:[%s2756 + $0x4c] sm:$0xf]
  %v2777 = vld [vmem:[%s2756 + $0x50] sm:$0xf]
  %v2778 = vld [vmem:[%s2756 + $0x54] sm:$0xf]
  %v2779 = vld [vmem:[%s2756 + $0x58] sm:$0xf]
  %v2780 = vld [vmem:[%s2756 + $0x5c] sm:$0xf]
  %v2781 = vld [vmem:[%s2756 + $0x60] sm:$0xf]
  %v2782 = vld [vmem:[%s2756 + $0x64] sm:$0xf]
  %v2783 = vld [vmem:[%s2756 + $0x68] sm:$0xf]
  %v2784 = vld [vmem:[%s2756 + $0x6c] sm:$0xf]
  %v2785 = vld [vmem:[%s2756 + $0x70] sm:$0xf]
  %v2786 = vld [vmem:[%s2756 + $0x74] sm:$0xf]
  %v2787 = vld [vmem:[%s2756 + $0x78] sm:$0xf]
  %v2788 = vld [vmem:[%s2756 + $0x7c] sm:$0xf]
  %v2789 = vld [vmem:[%s2756 + $0x80] sm:$0xf]
  %v2790 = vld [vmem:[%s2756 + $0x84] sm:$0xf]
  %v2791 = vld [vmem:[%s2756 + $0x88] sm:$0xf]
  %v2792 = vld [vmem:[%s2756 + $0x8c] sm:$0xf]
  %v2793 = vld [vmem:[%s2756 + $0x90] sm:$0xf]
  %v2794 = vld [vmem:[%s2756 + $0x94] sm:$0xf]
  %v2795 = vld [vmem:[%s2756 + $0x98] sm:$0xf]
  %v2796 = vld [vmem:[%s2756 + $0x9c] sm:$0xf]
  %v2797 = vld [vmem:[%s2756 + $0xa0] sm:$0xf]
  %v2798 = vld [vmem:[%s2756 + $0xa4] sm:$0xf]
  %v2799 = vld [vmem:[%s2756 + $0xa8] sm:$0xf]
  %v2800 = vld [vmem:[%s2756 + $0xac] sm:$0xf]
  %v2801 = vld [vmem:[%s2756 + $0xb0] sm:$0xf]
  %v2802 = vld [vmem:[%s2756 + $0xb4] sm:$0xf]
  %v2803 = vld [vmem:[%s2756 + $0xb8] sm:$0xf]
  %v2804 = vld [vmem:[%s2756 + $0xbc] sm:$0xf]
  %v2805 = vld [vmem:[%s2756 + $0xc0] sm:$0xf]
  %v2806 = vld [vmem:[%s2756 + $0xc4] sm:$0xf]
  %v2807 = vld [vmem:[%s2756 + $0xc8] sm:$0xf]
  %v2808 = vld [vmem:[%s2756 + $0xcc] sm:$0xf]
  %v2809 = vld [vmem:[%s2756 + $0xd0] sm:$0xf]
  %v2810 = vld [vmem:[%s2756 + $0xd4] sm:$0xf]
  %v2811 = vld [vmem:[%s2756 + $0xd8] sm:$0xf]
  %v2812 = vld [vmem:[%s2756 + $0xdc] sm:$0xf]
  %v2813 = vld [vmem:[%s2756 + $0xe0] sm:$0xf]
  %v2814 = vld [vmem:[%s2756 + $0xe4] sm:$0xf]
  %v2815 = vld [vmem:[%s2756 + $0xe8] sm:$0xf]
  %v2816 = vld [vmem:[%s2756 + $0xec] sm:$0xf]
  %v2817 = vld [vmem:[%s2756 + $0xf0] sm:$0xf]
  %v2818 = vld [vmem:[%s2756 + $0xf4] sm:$0xf]
  %v2819 = vld [vmem:[%s2756 + $0xf8] sm:$0xf]
  %v2820 = vld [vmem:[%s2756 + $0xfc] sm:$0xf]
  %s2821 = scalar_lea.vmem %s6, 1
  %v2822 = vld [vmem:[%s2821] sm:$0x1]
  %v2824 = vlaneseq
  %v2825 = vshrl.u32 %v2824, 7
  %v2826 = vsub.s32 0, %v2825
  %v2827 = vrot.slane %v2822, %v2826
  %v2893 = vunpack.c.l.b16 %v2757
  %v2894 = vunpack.c.l.b16 %v2758
  %v2895 = vunpack.c.l.b16 %v2759
  %v2896 = vunpack.c.l.b16 %v2760
  %v2897 = vunpack.c.l.b16 %v2761
  %v2898 = vunpack.c.l.b16 %v2762
  %v2899 = vunpack.c.l.b16 %v2763
  %v2900 = vunpack.c.l.b16 %v2764
  %v2901 = vunpack.c.l.b16 %v2765
  %v2902 = vunpack.c.l.b16 %v2766
  %v2903 = vunpack.c.l.b16 %v2767
  %v2904 = vunpack.c.l.b16 %v2768
  %v2905 = vunpack.c.l.b16 %v2769
  %v2906 = vunpack.c.l.b16 %v2770
  %v2907 = vunpack.c.l.b16 %v2771
  %v2908 = vunpack.c.l.b16 %v2772
  %v2909 = vunpack.c.l.b16 %v2773
  %v2910 = vunpack.c.l.b16 %v2774
  %v2911 = vunpack.c.l.b16 %v2775
  %v2912 = vunpack.c.l.b16 %v2776
  %v2913 = vunpack.c.l.b16 %v2777
  %v2914 = vunpack.c.l.b16 %v2778
  %v2915 = vunpack.c.l.b16 %v2779
  %v2916 = vunpack.c.l.b16 %v2780
  %v2917 = vunpack.c.l.b16 %v2781
  %v2918 = vunpack.c.l.b16 %v2782
  %v2919 = vunpack.c.l.b16 %v2783
  %v2920 = vunpack.c.l.b16 %v2784
  %v2921 = vunpack.c.l.b16 %v2785
  %v2922 = vunpack.c.l.b16 %v2786
  %v2923 = vunpack.c.l.b16 %v2787
  %v2924 = vunpack.c.l.b16 %v2788
  %v2925 = vunpack.c.l.b16 %v2789
  %v2926 = vunpack.c.l.b16 %v2790
  %v2927 = vunpack.c.l.b16 %v2791
  %v2928 = vunpack.c.l.b16 %v2792
  %v2929 = vunpack.c.l.b16 %v2793
  %v2930 = vunpack.c.l.b16 %v2794
  %v2931 = vunpack.c.l.b16 %v2795
  %v2932 = vunpack.c.l.b16 %v2796
  %v2933 = vunpack.c.l.b16 %v2797
  %v2934 = vunpack.c.l.b16 %v2798
  %v2935 = vunpack.c.l.b16 %v2799
  %v2936 = vunpack.c.l.b16 %v2800
  %v2937 = vunpack.c.l.b16 %v2801
  %v2938 = vunpack.c.l.b16 %v2802
  %v2939 = vunpack.c.l.b16 %v2803
  %v2940 = vunpack.c.l.b16 %v2804
  %v2941 = vunpack.c.l.b16 %v2805
  %v2942 = vunpack.c.l.b16 %v2806
  %v2943 = vunpack.c.l.b16 %v2807
  %v2944 = vunpack.c.l.b16 %v2808
  %v2945 = vunpack.c.l.b16 %v2809
  %v2946 = vunpack.c.l.b16 %v2810
  %v2947 = vunpack.c.l.b16 %v2811
  %v2948 = vunpack.c.l.b16 %v2812
  %v2949 = vunpack.c.l.b16 %v2813
  %v2950 = vunpack.c.l.b16 %v2814
  %v2951 = vunpack.c.l.b16 %v2815
  %v2952 = vunpack.c.l.b16 %v2816
  %v2953 = vunpack.c.l.b16 %v2817
  %v2954 = vunpack.c.l.b16 %v2818
  %v2955 = vunpack.c.l.b16 %v2819
  %v2956 = vunpack.c.l.b16 %v2820
  %v2957 = vpack.c.b16 %v2894, %v2893
  %v2958 = vpack.c.b16 %v2896, %v2895
  %v2959 = vpack.c.b16 %v2898, %v2897
  %v2960 = vpack.c.b16 %v2900, %v2899
  %v2961 = vpack.c.b16 %v2902, %v2901
  %v2962 = vpack.c.b16 %v2904, %v2903
  %v2963 = vpack.c.b16 %v2906, %v2905
  %v2964 = vpack.c.b16 %v2908, %v2907
  %v2965 = vpack.c.b16 %v2910, %v2909
  %v2966 = vpack.c.b16 %v2912, %v2911
  %v2967 = vpack.c.b16 %v2914, %v2913
  %v2968 = vpack.c.b16 %v2916, %v2915
  %v2969 = vpack.c.b16 %v2918, %v2917
  %v2970 = vpack.c.b16 %v2920, %v2919
  %v2971 = vpack.c.b16 %v2922, %v2921
  %v2972 = vpack.c.b16 %v2924, %v2923
  %v2973 = vpack.c.b16 %v2926, %v2925
  %v2974 = vpack.c.b16 %v2928, %v2927
  %v2975 = vpack.c.b16 %v2930, %v2929
  %v2976 = vpack.c.b16 %v2932, %v2931
  %v2977 = vpack.c.b16 %v2934, %v2933
  %v2978 = vpack.c.b16 %v2936, %v2935
  %v2979 = vpack.c.b16 %v2938, %v2937
  %v2980 = vpack.c.b16 %v2940, %v2939
  %v2981 = vpack.c.b16 %v2942, %v2941
  %v2982 = vpack.c.b16 %v2944, %v2943
  %v2983 = vpack.c.b16 %v2946, %v2945
  %v2984 = vpack.c.b16 %v2948, %v2947
  %v2985 = vpack.c.b16 %v2950, %v2949
  %v2986 = vpack.c.b16 %v2952, %v2951
  %v2987 = vpack.c.b16 %v2954, %v2953
  %v2988 = vpack.c.b16 %v2956, %v2955
  %3021 = vmatprep.subr.bf16.mxu0 0
  %3022 = vmatpush1.bf16.msra.mxu0 %v2964
  %3023 = vmatprep.subr.bf16.mxu0 0
  %3024 = vmatpush1.bf16.msra.mxu0 %v2963
  %3025 = vmatprep.subr.bf16.mxu0 0
  %3026 = vmatpush1.bf16.msra.mxu0 %v2962
  %3027 = vmatprep.subr.bf16.mxu0 0
  %3028 = vmatpush1.bf16.msra.mxu0 %v2961
  %3029 = vmatprep.subr.bf16.mxu0 0
  %3030 = vmatpush1.bf16.msra.mxu0 %v2960
  %3031 = vmatprep.subr.bf16.mxu0 0
  %3032 = vmatpush1.bf16.msra.mxu0 %v2959
  %3033 = vmatprep.subr.bf16.mxu0 0
  %3034 = vmatpush1.bf16.msra.mxu0 %v2958
  %3035 = vmatprep.subr.bf16.mxu0 0
  %3036 = vmatpush1.bf16.msra.mxu0 %v2957
  %3037 = vmatprep.subr.bf16.mxu0 0
  %3038 = vmatpush2.bf16.msra.mxu0 %v2972
  %3039 = vmatprep.subr.bf16.mxu0 0
  %3040 = vmatpush2.bf16.msra.mxu0 %v2971
  %3041 = vmatprep.subr.bf16.mxu0 0
  %3042 = vmatpush2.bf16.msra.mxu0 %v2970
  %3043 = vmatprep.subr.bf16.mxu0 0
  %3044 = vmatpush2.bf16.msra.mxu0 %v2969
  %3045 = vmatprep.subr.bf16.mxu0 0
  %3046 = vmatpush2.bf16.msra.mxu0 %v2968
  %3047 = vmatprep.subr.bf16.mxu0 0
  %3048 = vmatpush2.bf16.msra.mxu0 %v2967
  %3049 = vmatprep.subr.bf16.mxu0 0
  %3050 = vmatpush2.bf16.msra.mxu0 %v2966
  %3051 = vmatprep.subr.bf16.mxu0 0
  %3052 = vmatpush2.bf16.msra.mxu0 %v2965
  %3053 = vmatprep.mubr.bf16.mxu0 %v2693
  %3054 = vmatmul.mubr.bf16.gmra.mxu0 %v2692
  %v3055 = vpop.f32.mrf.mxu0
  %v3056 = vadd.f32 %v2827, %v3055
  %v3057 = vpop.f32.mrf.mxu0
  %v3058 = vpop.f32.mrf.mxu0
  %v3059 = vadd.f32 %v2827, %v3058
  %v3060 = vpop.f32.mrf.mxu0
  %3061 = vmatprep.mubr.bf16.mxu0 %v2697
  %3062 = vmatmul.mubr.bf16.gmra.mxu0 %v2696
  %v3063 = vpop.f32.mrf.mxu0
  %v3064 = vadd.f32 %v2827, %v3063
  %v3065 = vpop.f32.mrf.mxu0
  %v3066 = vpop.f32.mrf.mxu0
  %v3067 = vadd.f32 %v2827, %v3066
  %v3068 = vpop.f32.mrf.mxu0
  %3069 = vmatprep.mubr.bf16.mxu0 %v2701
  %3070 = vmatmul.mubr.bf16.gmra.mxu0 %v2700
  %v3071 = vpop.f32.mrf.mxu0
  %v3072 = vadd.f32 %v2827, %v3071
  %v3073 = vpop.f32.mrf.mxu0
  %v3074 = vpop.f32.mrf.mxu0
  %v3075 = vadd.f32 %v2827, %v3074
  %v3076 = vpop.f32.mrf.mxu0
  %3077 = vmatprep.mubr.bf16.mxu0 %v2705
  %3078 = vmatmul.mubr.bf16.gmra.mxu0 %v2704
  %v3079 = vpop.f32.mrf.mxu0
  %v3080 = vadd.f32 %v2827, %v3079
  %v3081 = vpop.f32.mrf.mxu0
  %v3082 = vpop.f32.mrf.mxu0
  %v3083 = vadd.f32 %v2827, %v3082
  %v3084 = vpop.f32.mrf.mxu0
  %3085 = vmatprep.mubr.bf16.mxu0 %v2709
  %3086 = vmatmul.mubr.bf16.gmra.mxu0 %v2708
  %v3087 = vpop.f32.mrf.mxu0
  %v3088 = vadd.f32 %v2827, %v3087
  %v3089 = vpop.f32.mrf.mxu0
  %v3090 = vpop.f32.mrf.mxu0
  %v3091 = vadd.f32 %v2827, %v3090
  %v3092 = vpop.f32.mrf.mxu0
  %3093 = vmatprep.mubr.bf16.mxu0 %v2713
  %3094 = vmatmul.mubr.bf16.gmra.mxu0 %v2712
  %v3095 = vpop.f32.mrf.mxu0
  %v3096 = vadd.f32 %v2827, %v3095
  %v3097 = vpop.f32.mrf.mxu0
  %v3098 = vpop.f32.mrf.mxu0
  %v3099 = vadd.f32 %v2827, %v3098
  %v3100 = vpop.f32.mrf.mxu0
  %3101 = vmatprep.mubr.bf16.mxu0 %v2717
  %3102 = vmatmul.mubr.bf16.gmra.mxu0 %v2716
  %v3103 = vpop.f32.mrf.mxu0
  %v3104 = vadd.f32 %v2827, %v3103
  %v3105 = vpop.f32.mrf.mxu0
  %v3106 = vpop.f32.mrf.mxu0
  %v3107 = vadd.f32 %v2827, %v3106
  %v3108 = vpop.f32.mrf.mxu0
  %3109 = vmatprep.mubr.bf16.mxu0 %v2721
  %3110 = vmatmul.mubr.bf16.gmra.mxu0 %v2720
  %v3111 = vpop.f32.mrf.mxu0
  %v3112 = vadd.f32 %v2827, %v3111
  %v3113 = vpop.f32.mrf.mxu0
  %v3114 = vpop.f32.mrf.mxu0
  %v3115 = vadd.f32 %v2827, %v3114
  %v3116 = vpop.f32.mrf.mxu0
  %3117 = vmatprep.mubr.bf16.mxu0 %v2725
  %3118 = vmatmul.mubr.bf16.gmra.mxu0 %v2724
  %v3119 = vpop.f32.mrf.mxu0
  %v3120 = vadd.f32 %v2827, %v3119
  %v3121 = vpop.f32.mrf.mxu0
  %v3122 = vpop.f32.mrf.mxu0
  %v3123 = vadd.f32 %v2827, %v3122
  %v3124 = vpop.f32.mrf.mxu0
  %3125 = vmatprep.mubr.bf16.mxu0 %v2729
  %3126 = vmatmul.mubr.bf16.gmra.mxu0 %v2728
  %v3127 = vpop.f32.mrf.mxu0
  %v3128 = vadd.f32 %v2827, %v3127
  %v3129 = vpop.f32.mrf.mxu0
  %v3130 = vpop.f32.mrf.mxu0
  %v3131 = vadd.f32 %v2827, %v3130
  %v3132 = vpop.f32.mrf.mxu0
  %3133 = vmatprep.mubr.bf16.mxu0 %v2733
  %3134 = vmatmul.mubr.bf16.gmra.mxu0 %v2732
  %v3135 = vpop.f32.mrf.mxu0
  %v3136 = vadd.f32 %v2827, %v3135
  %v3137 = vpop.f32.mrf.mxu0
  %v3138 = vpop.f32.mrf.mxu0
  %v3139 = vadd.f32 %v2827, %v3138
  %v3140 = vpop.f32.mrf.mxu0
  %3141 = vmatprep.mubr.bf16.mxu0 %v2737
  %3142 = vmatmul.mubr.bf16.gmra.mxu0 %v2736
  %v3143 = vpop.f32.mrf.mxu0
  %v3144 = vadd.f32 %v2827, %v3143
  %v3145 = vpop.f32.mrf.mxu0
  %v3146 = vpop.f32.mrf.mxu0
  %v3147 = vadd.f32 %v2827, %v3146
  %v3148 = vpop.f32.mrf.mxu0
  %3149 = vmatprep.mubr.bf16.mxu0 %v2741
  %3150 = vmatmul.mubr.bf16.gmra.mxu0 %v2740
  %v3151 = vpop.f32.mrf.mxu0
  %v3152 = vadd.f32 %v2827, %v3151
  %v3153 = vpop.f32.mrf.mxu0
  %v3154 = vpop.f32.mrf.mxu0
  %v3155 = vadd.f32 %v2827, %v3154
  %v3156 = vpop.f32.mrf.mxu0
  %3157 = vmatprep.mubr.bf16.mxu0 %v2745
  %3158 = vmatmul.mubr.bf16.gmra.mxu0 %v2744
  %v3159 = vpop.f32.mrf.mxu0
  %v3160 = vadd.f32 %v2827, %v3159
  %v3161 = vpop.f32.mrf.mxu0
  %v3162 = vpop.f32.mrf.mxu0
  %v3163 = vadd.f32 %v2827, %v3162
  %v3164 = vpop.f32.mrf.mxu0
  %3165 = vmatprep.mubr.bf16.mxu0 %v2749
  %3166 = vmatmul.mubr.bf16.gmra.mxu0 %v2748
  %v3167 = vpop.f32.mrf.mxu0
  %v3168 = vadd.f32 %v2827, %v3167
  %v3169 = vpop.f32.mrf.mxu0
  %v3170 = vpop.f32.mrf.mxu0
  %v3171 = vadd.f32 %v2827, %v3170
  %v3172 = vpop.f32.mrf.mxu0
  %3173 = vmatprep.mubr.bf16.mxu0 %v2753
  %3174 = vmatmul.mubr.bf16.gmra.mxu0 %v2752
  %v3175 = vpop.f32.mrf.mxu0
  %v3176 = vadd.f32 %v2827, %v3175
  %v3177 = vpop.f32.mrf.mxu0
  %v3178 = vpop.f32.mrf.mxu0
  %v3179 = vadd.f32 %v2827, %v3178
  %v3180 = vpop.f32.mrf.mxu0
  %3181 = vdwg.mxu0
  %3182 = vmatprep.subr.bf16.mxu0 0
  %3183 = vmatpush1.bf16.msra.mxu0 %v2980
  %3184 = vmatprep.subr.bf16.mxu0 0
  %3185 = vmatpush1.bf16.msra.mxu0 %v2979
  %3186 = vmatprep.subr.bf16.mxu0 0
  %3187 = vmatpush1.bf16.msra.mxu0 %v2978
  %3188 = vmatprep.subr.bf16.mxu0 0
  %3189 = vmatpush1.bf16.msra.mxu0 %v2977
  %3190 = vmatprep.subr.bf16.mxu0 0
  %3191 = vmatpush1.bf16.msra.mxu0 %v2976
  %3192 = vmatprep.subr.bf16.mxu0 0
  %3193 = vmatpush1.bf16.msra.mxu0 %v2975
  %3194 = vmatprep.subr.bf16.mxu0 0
  %3195 = vmatpush1.bf16.msra.mxu0 %v2974
  %3196 = vmatprep.subr.bf16.mxu0 0
  %3197 = vmatpush1.bf16.msra.mxu0 %v2973
  %3198 = vmatprep.subr.bf16.mxu0 0
  %3199 = vmatpush2.bf16.msra.mxu0 %v2988
  %3200 = vmatprep.subr.bf16.mxu0 0
  %3201 = vmatpush2.bf16.msra.mxu0 %v2987
  %3202 = vmatprep.subr.bf16.mxu0 0
  %3203 = vmatpush2.bf16.msra.mxu0 %v2986
  %3204 = vmatprep.subr.bf16.mxu0 0
  %3205 = vmatpush2.bf16.msra.mxu0 %v2985
  %3206 = vmatprep.subr.bf16.mxu0 0
  %3207 = vmatpush2.bf16.msra.mxu0 %v2984
  %3208 = vmatprep.subr.bf16.mxu0 0
  %3209 = vmatpush2.bf16.msra.mxu0 %v2983
  %3210 = vmatprep.subr.bf16.mxu0 0
  %3211 = vmatpush2.bf16.msra.mxu0 %v2982
  %3212 = vmatprep.subr.bf16.mxu0 0
  %3213 = vmatpush2.bf16.msra.mxu0 %v2981
  %3214 = vmatprep.mubr.bf16.mxu0 %v2695
  %3215 = vmatmul.mubr.bf16.gmra.mxu0 %v2694
  %v3216 = vpop.f32.mrf.mxu0
  %v3217 = vadd.f32 %v3056, %v3216
  %v3218 = vpop.f32.mrf.mxu0
  %v3219 = vpop.f32.mrf.mxu0
  %v3220 = vadd.f32 %v3059, %v3219
  %v3221 = vpop.f32.mrf.mxu0
  %3222 = vmatprep.mubr.bf16.mxu0 %v2699
  %3223 = vmatmul.mubr.bf16.gmra.mxu0 %v2698
  %v3224 = vpop.f32.mrf.mxu0
  %v3225 = vadd.f32 %v3064, %v3224
  %v3226 = vpop.f32.mrf.mxu0
  %v3227 = vpop.f32.mrf.mxu0
  %v3228 = vadd.f32 %v3067, %v3227
  %v3229 = vpop.f32.mrf.mxu0
  %3230 = vmatprep.mubr.bf16.mxu0 %v2703
  %3231 = vmatmul.mubr.bf16.gmra.mxu0 %v2702
  %v3232 = vpop.f32.mrf.mxu0
  %v3233 = vadd.f32 %v3072, %v3232
  %v3234 = vpop.f32.mrf.mxu0
  %v3235 = vpop.f32.mrf.mxu0
  %v3236 = vadd.f32 %v3075, %v3235
  %v3237 = vpop.f32.mrf.mxu0
  %3238 = vmatprep.mubr.bf16.mxu0 %v2707
  %3239 = vmatmul.mubr.bf16.gmra.mxu0 %v2706
  %v3240 = vpop.f32.mrf.mxu0
  %v3241 = vadd.f32 %v3080, %v3240
  %v3242 = vpop.f32.mrf.mxu0
  %v3243 = vpop.f32.mrf.mxu0
  %v3244 = vadd.f32 %v3083, %v3243
  %v3245 = vpop.f32.mrf.mxu0
  %3246 = vmatprep.mubr.bf16.mxu0 %v2711
  %3247 = vmatmul.mubr.bf16.gmra.mxu0 %v2710
  %v3248 = vpop.f32.mrf.mxu0
  %v3249 = vadd.f32 %v3088, %v3248
  %v3250 = vpop.f32.mrf.mxu0
  %v3251 = vpop.f32.mrf.mxu0
  %v3252 = vadd.f32 %v3091, %v3251
  %v3253 = vpop.f32.mrf.mxu0
  %3254 = vmatprep.mubr.bf16.mxu0 %v2715
  %3255 = vmatmul.mubr.bf16.gmra.mxu0 %v2714
  %v3256 = vpop.f32.mrf.mxu0
  %v3257 = vadd.f32 %v3096, %v3256
  %v3258 = vpop.f32.mrf.mxu0
  %v3259 = vpop.f32.mrf.mxu0
  %v3260 = vadd.f32 %v3099, %v3259
  %v3261 = vpop.f32.mrf.mxu0
  %3262 = vmatprep.mubr.bf16.mxu0 %v2719
  %3263 = vmatmul.mubr.bf16.gmra.mxu0 %v2718
  %v3264 = vpop.f32.mrf.mxu0
  %v3265 = vadd.f32 %v3104, %v3264
  %v3266 = vpop.f32.mrf.mxu0
  %v3267 = vpop.f32.mrf.mxu0
  %v3268 = vadd.f32 %v3107, %v3267
  %v3269 = vpop.f32.mrf.mxu0
  %3270 = vmatprep.mubr.bf16.mxu0 %v2723
  %3271 = vmatmul.mubr.bf16.gmra.mxu0 %v2722
  %v3272 = vpop.f32.mrf.mxu0
  %v3273 = vadd.f32 %v3112, %v3272
  %v3274 = vpop.f32.mrf.mxu0
  %v3275 = vpop.f32.mrf.mxu0
  %v3276 = vadd.f32 %v3115, %v3275
  %v3277 = vpop.f32.mrf.mxu0
  %3278 = vmatprep.mubr.bf16.mxu0 %v2727
  %3279 = vmatmul.mubr.bf16.gmra.mxu0 %v2726
  %v3280 = vpop.f32.mrf.mxu0
  %v3281 = vadd.f32 %v3120, %v3280
  %v3282 = vpop.f32.mrf.mxu0
  %v3283 = vpop.f32.mrf.mxu0
  %v3284 = vadd.f32 %v3123, %v3283
  %v3285 = vpop.f32.mrf.mxu0
  %3286 = vmatprep.mubr.bf16.mxu0 %v2731
  %3287 = vmatmul.mubr.bf16.gmra.mxu0 %v2730
  %v3288 = vpop.f32.mrf.mxu0
  %v3289 = vadd.f32 %v3128, %v3288
  %v3290 = vpop.f32.mrf.mxu0
  %v3291 = vpop.f32.mrf.mxu0
  %v3292 = vadd.f32 %v3131, %v3291
  %v3293 = vpop.f32.mrf.mxu0
  %3294 = vmatprep.mubr.bf16.mxu0 %v2735
  %3295 = vmatmul.mubr.bf16.gmra.mxu0 %v2734
  %v3296 = vpop.f32.mrf.mxu0
  %v3297 = vadd.f32 %v3136, %v3296
  %v3298 = vpop.f32.mrf.mxu0
  %v3299 = vpop.f32.mrf.mxu0
  %v3300 = vadd.f32 %v3139, %v3299
  %v3301 = vpop.f32.mrf.mxu0
  %3302 = vmatprep.mubr.bf16.mxu0 %v2739
  %3303 = vmatmul.mubr.bf16.gmra.mxu0 %v2738
  %v3304 = vpop.f32.mrf.mxu0
  %v3305 = vadd.f32 %v3144, %v3304
  %v3306 = vpop.f32.mrf.mxu0
  %v3307 = vpop.f32.mrf.mxu0
  %v3308 = vadd.f32 %v3147, %v3307
  %v3309 = vpop.f32.mrf.mxu0
  %3310 = vmatprep.mubr.bf16.mxu0 %v2743
  %3311 = vmatmul.mubr.bf16.gmra.mxu0 %v2742
  %v3312 = vpop.f32.mrf.mxu0
  %v3313 = vadd.f32 %v3152, %v3312
  %v3314 = vpop.f32.mrf.mxu0
  %v3315 = vpop.f32.mrf.mxu0
  %v3316 = vadd.f32 %v3155, %v3315
  %v3317 = vpop.f32.mrf.mxu0
  %3318 = vmatprep.mubr.bf16.mxu0 %v2747
  %3319 = vmatmul.mubr.bf16.gmra.mxu0 %v2746
  %v3320 = vpop.f32.mrf.mxu0
  %v3321 = vadd.f32 %v3160, %v3320
  %v3322 = vpop.f32.mrf.mxu0
  %v3323 = vpop.f32.mrf.mxu0
  %v3324 = vadd.f32 %v3163, %v3323
  %v3325 = vpop.f32.mrf.mxu0
  %3326 = vmatprep.mubr.bf16.mxu0 %v2751
  %3327 = vmatmul.mubr.bf16.gmra.mxu0 %v2750
  %v3328 = vpop.f32.mrf.mxu0
  %v3329 = vadd.f32 %v3168, %v3328
  %v3330 = vpop.f32.mrf.mxu0
  %v3331 = vpop.f32.mrf.mxu0
  %v3332 = vadd.f32 %v3171, %v3331
  %v3333 = vpop.f32.mrf.mxu0
  %3334 = vmatprep.mubr.bf16.mxu0 %v2755
  %3335 = vmatmul.mubr.bf16.gmra.mxu0 %v2754
  %v3336 = vpop.f32.mrf.mxu0
  %v3337 = vadd.f32 %v3176, %v3336
  %v3338 = vpop.f32.mrf.mxu0
  %v3339 = vpop.f32.mrf.mxu0
  %v3340 = vadd.f32 %v3179, %v3339
  %v3341 = vpop.f32.mrf.mxu0
  %3342 = vdwg.mxu0
  %v3343 = vadd.f32 %v1914, %v3217
  %v3344 = vadd.f32 %v1915, %v3220
  %v3345 = vadd.f32 %v1916, %v3225
  %v3346 = vadd.f32 %v1917, %v3228
  %v3347 = vadd.f32 %v1918, %v3233
  %v3348 = vadd.f32 %v1919, %v3236
  %v3349 = vadd.f32 %v1920, %v3241
  %v3350 = vadd.f32 %v1921, %v3244
  %v3351 = vadd.f32 %v1922, %v3249
  %v3352 = vadd.f32 %v1923, %v3252
  %v3353 = vadd.f32 %v1924, %v3257
  %v3354 = vadd.f32 %v1925, %v3260
  %v3355 = vadd.f32 %v1926, %v3265
  %v3356 = vadd.f32 %v1927, %v3268
  %v3357 = vadd.f32 %v1928, %v3273
  %v3358 = vadd.f32 %v1929, %v3276
  %v3359 = vadd.f32 %v1930, %v3281
  %v3360 = vadd.f32 %v1931, %v3284
  %v3361 = vadd.f32 %v1932, %v3289
  %v3362 = vadd.f32 %v1933, %v3292
  %v3363 = vadd.f32 %v1934, %v3297
  %v3364 = vadd.f32 %v1935, %v3300
  %v3365 = vadd.f32 %v1936, %v3305
  %v3366 = vadd.f32 %v1937, %v3308
  %v3367 = vadd.f32 %v1938, %v3313
  %v3368 = vadd.f32 %v1939, %v3316
  %v3369 = vadd.f32 %v1940, %v3321
  %v3370 = vadd.f32 %v1941, %v3324
  %v3371 = vadd.f32 %v1942, %v3329
  %v3372 = vadd.f32 %v1943, %v3332
  %v3373 = vadd.f32 %v1944, %v3337
  %v3374 = vadd.f32 %v1945, %v3340
  %v3375 = vmax.f32 %v3343, 0.0
  %v3376 = vmax.f32 %v3344, 0.0
  %v3377 = vmax.f32 %v3345, 0.0
  %v3378 = vmax.f32 %v3346, 0.0
  %v3379 = vmax.f32 %v3347, 0.0
  %v3380 = vmax.f32 %v3348, 0.0
  %v3381 = vmax.f32 %v3349, 0.0
  %v3382 = vmax.f32 %v3350, 0.0
  %v3383 = vmax.f32 %v3351, 0.0
  %v3384 = vmax.f32 %v3352, 0.0
  %v3385 = vmax.f32 %v3353, 0.0
  %v3386 = vmax.f32 %v3354, 0.0
  %v3387 = vmax.f32 %v3355, 0.0
  %v3388 = vmax.f32 %v3356, 0.0
  %v3389 = vmax.f32 %v3357, 0.0
  %v3390 = vmax.f32 %v3358, 0.0
  %v3391 = vmax.f32 %v3359, 0.0
  %v3392 = vmax.f32 %v3360, 0.0
  %v3393 = vmax.f32 %v3361, 0.0
  %v3394 = vmax.f32 %v3362, 0.0
  %v3395 = vmax.f32 %v3363, 0.0
  %v3396 = vmax.f32 %v3364, 0.0
  %v3397 = vmax.f32 %v3365, 0.0
  %v3398 = vmax.f32 %v3366, 0.0
  %v3399 = vmax.f32 %v3367, 0.0
  %v3400 = vmax.f32 %v3368, 0.0
  %v3401 = vmax.f32 %v3369, 0.0
  %v3402 = vmax.f32 %v3370, 0.0
  %v3403 = vmax.f32 %v3371, 0.0
  %v3404 = vmax.f32 %v3372, 0.0
  %v3405 = vmax.f32 %v3373, 0.0
  %v3406 = vmax.f32 %v3374, 0.0
  %v3407 = vpack.c.bf16 %v3376, %v3375
  %v3408 = vpack.c.bf16 %v3378, %v3377
  %v3409 = vpack.c.bf16 %v3380, %v3379
  %v3410 = vpack.c.bf16 %v3382, %v3381
  %v3411 = vpack.c.bf16 %v3384, %v3383
  %v3412 = vpack.c.bf16 %v3386, %v3385
  %v3413 = vpack.c.bf16 %v3388, %v3387
  %v3414 = vpack.c.bf16 %v3390, %v3389
  %v3415 = vpack.c.bf16 %v3392, %v3391
  %v3416 = vpack.c.bf16 %v3394, %v3393
  %v3417 = vpack.c.bf16 %v3396, %v3395
  %v3418 = vpack.c.bf16 %v3398, %v3397
  %v3419 = vpack.c.bf16 %v3400, %v3399
  %v3420 = vpack.c.bf16 %v3402, %v3401
  %v3421 = vpack.c.bf16 %v3404, %v3403
  %v3422 = vpack.c.bf16 %v3406, %v3405
  %v3423 = vld [vmem:[%s7] sm:$0xf]
  %v3424 = vld [vmem:[%s7 + $0x4] sm:$0xf]
  %v3425 = vld [vmem:[%s7 + $0x8] sm:$0xf]
  %v3426 = vld [vmem:[%s7 + $0xc] sm:$0xf]
  %v3427 = vld [vmem:[%s7 + $0x10] sm:$0xf]
  %v3428 = vld [vmem:[%s7 + $0x14] sm:$0xf]
  %v3429 = vld [vmem:[%s7 + $0x18] sm:$0xf]
  %v3430 = vld [vmem:[%s7 + $0x1c] sm:$0xf]
  %v3431 = vld [vmem:[%s7 + $0x20] sm:$0xf]
  %v3432 = vld [vmem:[%s7 + $0x24] sm:$0xf]
  %v3433 = vld [vmem:[%s7 + $0x28] sm:$0xf]
  %v3434 = vld [vmem:[%s7 + $0x2c] sm:$0xf]
  %v3435 = vld [vmem:[%s7 + $0x30] sm:$0xf]
  %v3436 = vld [vmem:[%s7 + $0x34] sm:$0xf]
  %v3437 = vld [vmem:[%s7 + $0x38] sm:$0xf]
  %v3438 = vld [vmem:[%s7 + $0x3c] sm:$0xf]
  %v3439 = vld [vmem:[%s8] sm:$0x1]
  %v3441 = vlaneseq
  %v3442 = vshrl.u32 %v3441, 7
  %v3443 = vsub.s32 0, %v3442
  %v3444 = vrot.slane %v3439, %v3443
  %v3462 = vunpack.c.l.b16 %v3423
  %v3463 = vunpack.c.l.b16 %v3424
  %v3464 = vunpack.c.l.b16 %v3425
  %v3465 = vunpack.c.l.b16 %v3426
  %v3466 = vunpack.c.l.b16 %v3427
  %v3467 = vunpack.c.l.b16 %v3428
  %v3468 = vunpack.c.l.b16 %v3429
  %v3469 = vunpack.c.l.b16 %v3430
  %v3470 = vunpack.c.l.b16 %v3431
  %v3471 = vunpack.c.l.b16 %v3432
  %v3472 = vunpack.c.l.b16 %v3433
  %v3473 = vunpack.c.l.b16 %v3434
  %v3474 = vunpack.c.l.b16 %v3435
  %v3475 = vunpack.c.l.b16 %v3436
  %v3476 = vunpack.c.l.b16 %v3437
  %v3477 = vunpack.c.l.b16 %v3438
  %v3478 = vpack.c.b16 %v3463, %v3462
  %v3479 = vpack.c.b16 %v3465, %v3464
  %v3480 = vpack.c.b16 %v3467, %v3466
  %v3481 = vpack.c.b16 %v3469, %v3468
  %v3482 = vpack.c.b16 %v3471, %v3470
  %v3483 = vpack.c.b16 %v3473, %v3472
  %v3484 = vpack.c.b16 %v3475, %v3474
  %v3485 = vpack.c.b16 %v3477, %v3476
  %3494 = vmatprep.subr.bf16.mxu0 0
  %3495 = vmatpush1.bf16.msra.mxu0 %v3485
  %3496 = vmatprep.subr.bf16.mxu0 0
  %3497 = vmatpush1.bf16.msra.mxu0 %v3484
  %3498 = vmatprep.subr.bf16.mxu0 0
  %3499 = vmatpush1.bf16.msra.mxu0 %v3483
  %3500 = vmatprep.subr.bf16.mxu0 0
  %3501 = vmatpush1.bf16.msra.mxu0 %v3482
  %3502 = vmatprep.subr.bf16.mxu0 0
  %3503 = vmatpush1.bf16.msra.mxu0 %v3481
  %3504 = vmatprep.subr.bf16.mxu0 0
  %3505 = vmatpush1.bf16.msra.mxu0 %v3480
  %3506 = vmatprep.subr.bf16.mxu0 0
  %3507 = vmatpush1.bf16.msra.mxu0 %v3479
  %3508 = vmatprep.subr.bf16.mxu0 0
  %3509 = vmatpush1.bf16.msra.mxu0 %v3478
  %3510 = vmatprep.subr.bf16.mxu0 0
  %3511 = vmatpush2.bf16.msra.mxu0 0
  %3512 = vmatprep.subr.bf16.mxu0 0
  %3513 = vmatpush2.bf16.msra.mxu0 0
  %3514 = vmatprep.subr.bf16.mxu0 0
  %3515 = vmatpush2.bf16.msra.mxu0 0
  %3516 = vmatprep.subr.bf16.mxu0 0
  %3517 = vmatpush2.bf16.msra.mxu0 0
  %3518 = vmatprep.subr.bf16.mxu0 0
  %3519 = vmatpush2.bf16.msra.mxu0 0
  %3520 = vmatprep.subr.bf16.mxu0 0
  %3521 = vmatpush2.bf16.msra.mxu0 0
  %3522 = vmatprep.subr.bf16.mxu0 0
  %3523 = vmatpush2.bf16.msra.mxu0 0
  %3524 = vmatprep.subr.bf16.mxu0 0
  %3525 = vmatpush2.bf16.msra.mxu0 0
  %3526 = vmatprep.mubr.bf16.mxu0 0
  %3527 = vmatmul.mubr.bf16.gmra.mxu0 %v3407
  %v3528 = vpop.f32.mrf.mxu0
  %v3529 = vadd.f32 %v3444, %v3528
  %v3530 = vpop.f32.mrf.mxu0
  %v3531 = vpop.f32.mrf.mxu0
  %v3532 = vadd.f32 %v3444, %v3531
  %v3533 = vpop.f32.mrf.mxu0
  %3534 = vmatprep.mubr.bf16.mxu0 0
  %3535 = vmatmul.mubr.bf16.gmra.mxu0 %v3408
  %v3536 = vpop.f32.mrf.mxu0
  %v3537 = vadd.f32 %v3444, %v3536
  %v3538 = vpop.f32.mrf.mxu0
  %v3539 = vpop.f32.mrf.mxu0
  %v3540 = vadd.f32 %v3444, %v3539
  %v3541 = vpop.f32.mrf.mxu0
  %3542 = vmatprep.mubr.bf16.mxu0 0
  %3543 = vmatmul.mubr.bf16.gmra.mxu0 %v3409
  %v3544 = vpop.f32.mrf.mxu0
  %v3545 = vadd.f32 %v3444, %v3544
  %v3546 = vpop.f32.mrf.mxu0
  %v3547 = vpop.f32.mrf.mxu0
  %v3548 = vadd.f32 %v3444, %v3547
  %v3549 = vpop.f32.mrf.mxu0
  %3550 = vmatprep.mubr.bf16.mxu0 0
  %3551 = vmatmul.mubr.bf16.gmra.mxu0 %v3410
  %v3552 = vpop.f32.mrf.mxu0
  %v3553 = vadd.f32 %v3444, %v3552
  %v3554 = vpop.f32.mrf.mxu0
  %v3555 = vpop.f32.mrf.mxu0
  %v3556 = vadd.f32 %v3444, %v3555
  %v3557 = vpop.f32.mrf.mxu0
  %3558 = vmatprep.mubr.bf16.mxu0 0
  %3559 = vmatmul.mubr.bf16.gmra.mxu0 %v3411
  %v3560 = vpop.f32.mrf.mxu0
  %v3561 = vadd.f32 %v3444, %v3560
  %v3562 = vpop.f32.mrf.mxu0
  %v3563 = vpop.f32.mrf.mxu0
  %v3564 = vadd.f32 %v3444, %v3563
  %v3565 = vpop.f32.mrf.mxu0
  %3566 = vmatprep.mubr.bf16.mxu0 0
  %3567 = vmatmul.mubr.bf16.gmra.mxu0 %v3412
  %v3568 = vpop.f32.mrf.mxu0
  %v3569 = vadd.f32 %v3444, %v3568
  %v3570 = vpop.f32.mrf.mxu0
  %v3571 = vpop.f32.mrf.mxu0
  %v3572 = vadd.f32 %v3444, %v3571
  %v3573 = vpop.f32.mrf.mxu0
  %3574 = vmatprep.mubr.bf16.mxu0 0
  %3575 = vmatmul.mubr.bf16.gmra.mxu0 %v3413
  %v3576 = vpop.f32.mrf.mxu0
  %v3577 = vadd.f32 %v3444, %v3576
  %v3578 = vpop.f32.mrf.mxu0
  %v3579 = vpop.f32.mrf.mxu0
  %v3580 = vadd.f32 %v3444, %v3579
  %v3581 = vpop.f32.mrf.mxu0
  %3582 = vmatprep.mubr.bf16.mxu0 0
  %3583 = vmatmul.mubr.bf16.gmra.mxu0 %v3414
  %v3584 = vpop.f32.mrf.mxu0
  %v3585 = vadd.f32 %v3444, %v3584
  %v3586 = vpop.f32.mrf.mxu0
  %v3587 = vpop.f32.mrf.mxu0
  %v3588 = vadd.f32 %v3444, %v3587
  %v3589 = vpop.f32.mrf.mxu0
  %3590 = vmatprep.mubr.bf16.mxu0 0
  %3591 = vmatmul.mubr.bf16.gmra.mxu0 %v3415
  %v3592 = vpop.f32.mrf.mxu0
  %v3593 = vadd.f32 %v3444, %v3592
  %v3594 = vpop.f32.mrf.mxu0
  %v3595 = vpop.f32.mrf.mxu0
  %v3596 = vadd.f32 %v3444, %v3595
  %v3597 = vpop.f32.mrf.mxu0
  %3598 = vmatprep.mubr.bf16.mxu0 0
  %3599 = vmatmul.mubr.bf16.gmra.mxu0 %v3416
  %v3600 = vpop.f32.mrf.mxu0
  %v3601 = vadd.f32 %v3444, %v3600
  %v3602 = vpop.f32.mrf.mxu0
  %v3603 = vpop.f32.mrf.mxu0
  %v3604 = vadd.f32 %v3444, %v3603
  %v3605 = vpop.f32.mrf.mxu0
  %3606 = vmatprep.mubr.bf16.mxu0 0
  %3607 = vmatmul.mubr.bf16.gmra.mxu0 %v3417
  %v3608 = vpop.f32.mrf.mxu0
  %v3609 = vadd.f32 %v3444, %v3608
  %v3610 = vpop.f32.mrf.mxu0
  %v3611 = vpop.f32.mrf.mxu0
  %v3612 = vadd.f32 %v3444, %v3611
  %v3613 = vpop.f32.mrf.mxu0
  %3614 = vmatprep.mubr.bf16.mxu0 0
  %3615 = vmatmul.mubr.bf16.gmra.mxu0 %v3418
  %v3616 = vpop.f32.mrf.mxu0
  %v3617 = vadd.f32 %v3444, %v3616
  %v3618 = vpop.f32.mrf.mxu0
  %v3619 = vpop.f32.mrf.mxu0
  %v3620 = vadd.f32 %v3444, %v3619
  %v3621 = vpop.f32.mrf.mxu0
  %3622 = vmatprep.mubr.bf16.mxu0 0
  %3623 = vmatmul.mubr.bf16.gmra.mxu0 %v3419
  %v3624 = vpop.f32.mrf.mxu0
  %v3625 = vadd.f32 %v3444, %v3624
  %v3626 = vpop.f32.mrf.mxu0
  %v3627 = vpop.f32.mrf.mxu0
  %v3628 = vadd.f32 %v3444, %v3627
  %v3629 = vpop.f32.mrf.mxu0
  %3630 = vmatprep.mubr.bf16.mxu0 0
  %3631 = vmatmul.mubr.bf16.gmra.mxu0 %v3420
  %v3632 = vpop.f32.mrf.mxu0
  %v3633 = vadd.f32 %v3444, %v3632
  %v3634 = vpop.f32.mrf.mxu0
  %v3635 = vpop.f32.mrf.mxu0
  %v3636 = vadd.f32 %v3444, %v3635
  %v3637 = vpop.f32.mrf.mxu0
  %3638 = vmatprep.mubr.bf16.mxu0 0
  %3639 = vmatmul.mubr.bf16.gmra.mxu0 %v3421
  %v3640 = vpop.f32.mrf.mxu0
  %v3641 = vadd.f32 %v3444, %v3640
  %v3642 = vpop.f32.mrf.mxu0
  %v3643 = vpop.f32.mrf.mxu0
  %v3644 = vadd.f32 %v3444, %v3643
  %v3645 = vpop.f32.mrf.mxu0
  %3646 = vmatprep.mubr.bf16.mxu0 0
  %3647 = vmatmul.mubr.bf16.gmra.mxu0 %v3422
  %v3648 = vpop.f32.mrf.mxu0
  %v3649 = vadd.f32 %v3444, %v3648
  %v3650 = vpop.f32.mrf.mxu0
  %v3651 = vpop.f32.mrf.mxu0
  %v3652 = vadd.f32 %v3444, %v3651
  %v3653 = vpop.f32.mrf.mxu0
  %3654 = vdwg.mxu0
  %v3655 = vpack.c.bf16 %v3532, %v3529
  %v3656 = vpack.c.bf16 %v3540, %v3537
  %v3657 = vpack.c.bf16 %v3548, %v3545
  %v3658 = vpack.c.bf16 %v3556, %v3553
  %v3659 = vpack.c.bf16 %v3564, %v3561
  %v3660 = vpack.c.bf16 %v3572, %v3569
  %v3661 = vpack.c.bf16 %v3580, %v3577
  %v3662 = vpack.c.bf16 %v3588, %v3585
  %v3663 = vpack.c.bf16 %v3596, %v3593
  %v3664 = vpack.c.bf16 %v3604, %v3601
  %v3665 = vpack.c.bf16 %v3612, %v3609
  %v3666 = vpack.c.bf16 %v3620, %v3617
  %v3667 = vpack.c.bf16 %v3628, %v3625
  %v3668 = vpack.c.bf16 %v3636, %v3633
  %v3669 = vpack.c.bf16 %v3644, %v3641
  %v3670 = vpack.c.bf16 %v3652, %v3649
  %v3687 = vunpack.c.l.b16 %v3655
  %v3688 = vunpack.c.h.b16 %v3655
  %v3689 = vunpack.c.l.b16 %v3656
  %v3690 = vunpack.c.h.b16 %v3656
  %v3691 = vunpack.c.l.b16 %v3657
  %v3692 = vunpack.c.h.b16 %v3657
  %v3693 = vunpack.c.l.b16 %v3658
  %v3694 = vunpack.c.h.b16 %v3658
  %v3695 = vunpack.c.l.b16 %v3659
  %v3696 = vunpack.c.h.b16 %v3659
  %v3697 = vunpack.c.l.b16 %v3660
  %v3698 = vunpack.c.h.b16 %v3660
  %v3699 = vunpack.c.l.b16 %v3661
  %v3700 = vunpack.c.h.b16 %v3661
  %v3701 = vunpack.c.l.b16 %v3662
  %v3702 = vunpack.c.h.b16 %v3662
  %v3703 = vunpack.c.l.b16 %v3663
  %v3704 = vunpack.c.h.b16 %v3663
  %v3705 = vunpack.c.l.b16 %v3664
  %v3706 = vunpack.c.h.b16 %v3664
  %v3707 = vunpack.c.l.b16 %v3665
  %v3708 = vunpack.c.h.b16 %v3665
  %v3709 = vunpack.c.l.b16 %v3666
  %v3710 = vunpack.c.h.b16 %v3666
  %v3711 = vunpack.c.l.b16 %v3667
  %v3712 = vunpack.c.h.b16 %v3667
  %v3713 = vunpack.c.l.b16 %v3668
  %v3714 = vunpack.c.h.b16 %v3668
  %v3715 = vunpack.c.l.b16 %v3669
  %v3716 = vunpack.c.h.b16 %v3669
  %v3717 = vunpack.c.l.b16 %v3670
  %v3718 = vunpack.c.h.b16 %v3670
  %v3719 = vpack.c.b16 %v3687, %v3687
  %v3720 = vpack.c.b16 %v3688, %v3688
  %v3721 = vpack.c.b16 %v3689, %v3689
  %v3722 = vpack.c.b16 %v3690, %v3690
  %v3723 = vpack.c.b16 %v3691, %v3691
  %v3724 = vpack.c.b16 %v3692, %v3692
  %v3725 = vpack.c.b16 %v3693, %v3693
  %v3726 = vpack.c.b16 %v3694, %v3694
  %v3727 = vpack.c.b16 %v3695, %v3695
  %v3728 = vpack.c.b16 %v3696, %v3696
  %v3729 = vpack.c.b16 %v3697, %v3697
  %v3730 = vpack.c.b16 %v3698, %v3698
  %v3731 = vpack.c.b16 %v3699, %v3699
  %v3732 = vpack.c.b16 %v3700, %v3700
  %v3733 = vpack.c.b16 %v3701, %v3701
  %v3734 = vpack.c.b16 %v3702, %v3702
  %v3735 = vpack.c.b16 %v3703, %v3703
  %v3736 = vpack.c.b16 %v3704, %v3704
  %v3737 = vpack.c.b16 %v3705, %v3705
  %v3738 = vpack.c.b16 %v3706, %v3706
  %v3739 = vpack.c.b16 %v3707, %v3707
  %v3740 = vpack.c.b16 %v3708, %v3708
  %v3741 = vpack.c.b16 %v3709, %v3709
  %v3742 = vpack.c.b16 %v3710, %v3710
  %v3743 = vpack.c.b16 %v3711, %v3711
  %v3744 = vpack.c.b16 %v3712, %v3712
  %v3745 = vpack.c.b16 %v3713, %v3713
  %v3746 = vpack.c.b16 %v3714, %v3714
  %v3747 = vpack.c.b16 %v3715, %v3715
  %v3748 = vpack.c.b16 %v3716, %v3716
  %v3749 = vpack.c.b16 %v3717, %v3717
  %v3750 = vpack.c.b16 %v3718, %v3718
  %3783 = vst [vmem:[%s9] sm:$0xf] %v3719
  %3784 = vst [vmem:[%s9 + $0x4] sm:$0xf] %v3720
  %3785 = vst [vmem:[%s9 + $0x8] sm:$0xf] %v3721
  %3786 = vst [vmem:[%s9 + $0xc] sm:$0xf] %v3722
  %3787 = vst [vmem:[%s9 + $0x10] sm:$0xf] %v3723
  %3788 = vst [vmem:[%s9 + $0x14] sm:$0xf] %v3724
  %3789 = vst [vmem:[%s9 + $0x18] sm:$0xf] %v3725
  %3790 = vst [vmem:[%s9 + $0x1c] sm:$0xf] %v3726
  %3791 = vst [vmem:[%s9 + $0x20] sm:$0xf] %v3727
  %3792 = vst [vmem:[%s9 + $0x24] sm:$0xf] %v3728
  %3793 = vst [vmem:[%s9 + $0x28] sm:$0xf] %v3729
  %3794 = vst [vmem:[%s9 + $0x2c] sm:$0xf] %v3730
  %3795 = vst [vmem:[%s9 + $0x30] sm:$0xf] %v3731
  %3796 = vst [vmem:[%s9 + $0x34] sm:$0xf] %v3732
  %3797 = vst [vmem:[%s9 + $0x38] sm:$0xf] %v3733
  %3798 = vst [vmem:[%s9 + $0x3c] sm:$0xf] %v3734
  %3799 = vst [vmem:[%s9 + $0x40] sm:$0xf] %v3735
  %3800 = vst [vmem:[%s9 + $0x44] sm:$0xf] %v3736
  %3801 = vst [vmem:[%s9 + $0x48] sm:$0xf] %v3737
  %3802 = vst [vmem:[%s9 + $0x4c] sm:$0xf] %v3738
  %3803 = vst [vmem:[%s9 + $0x50] sm:$0xf] %v3739
  %3804 = vst [vmem:[%s9 + $0x54] sm:$0xf] %v3740
  %3805 = vst [vmem:[%s9 + $0x58] sm:$0xf] %v3741
  %3806 = vst [vmem:[%s9 + $0x5c] sm:$0xf] %v3742
  %3807 = vst [vmem:[%s9 + $0x60] sm:$0xf] %v3743
  %3808 = vst [vmem:[%s9 + $0x64] sm:$0xf] %v3744
  %3809 = vst [vmem:[%s9 + $0x68] sm:$0xf] %v3745
  %3810 = vst [vmem:[%s9 + $0x6c] sm:$0xf] %v3746
  %3811 = vst [vmem:[%s9 + $0x70] sm:$0xf] %v3747
  %3812 = vst [vmem:[%s9 + $0x74] sm:$0xf] %v3748
  %3813 = vst [vmem:[%s9 + $0x78] sm:$0xf] %v3749
  %3814 = vst [vmem:[%s9 + $0x7c] sm:$0xf] %v3750
  // Predicated region
  $region38: #{mlp_resnet_forward.1} parent=0 // pred_check
    _
  $region39: #{mlp_resnet_forward.1} parent=0 // pred_check_branch
    %3816 = sbr.rel (0) target = $region41
  $region40: #{mlp_resnet_forward.1} parent=0 // pred_region
    _
  $region41: #{mlp_resnet_forward.1} parent=0 // pred_fallthru
    _
  // Predicated region
  $region42: #{mlp_resnet_forward.1} parent=0 // pred_check
    _
  $region43: #{mlp_resnet_forward.1} parent=0 // pred_check_branch
    %3818 = sbr.rel (0) target = $region45
  $region44: #{mlp_resnet_forward.1} parent=0 // pred_region
    _
  $region45: #{mlp_resnet_forward.1} parent=0 // pred_fallthru
    _

</llo_original>
